<compile_context>
chip_gen: v6e
topology: v6e:2x2x1
jax: 0.10.0
libtpu: 0.0.40
codegen_flags: <defaults>
</compile_context>

<pallas_src>
import functools
import math

import numpy as np
import jax
import jax.numpy as jnp
from jax import lax
from jax.experimental import pallas as pl
from jax.experimental.pallas import tpu as pltpu


def _elu(x):
    # F.elu with alpha=1; clamp exp arg so the untaken branch stays finite.
    return jnp.where(x > 0, x, jnp.exp(jnp.minimum(x, 0.0)) - 1.0)


def _fast_recip(x):
    # EUP approximate reciprocal + one Newton-Raphson step (~f32 accurate).
    r = pl.reciprocal(x, approx=True)
    return r * (2.0 - x * r)


# --------------------------------------------------------------------------
# Parameter preparation: convs -> band / row-selection matrices
# --------------------------------------------------------------------------
def _conv_matmul_consts(w, b, stride, pad, h_in, w_in):
    """Precompute (B_i, R_i, bias_row) so that for a channel-concatenated input
    X (h_in, cin*w_in):   relu(conv2d) == relu(sum_i R_i @ (X @ B_i) + bias_row)
    with the output laid out as (ho, cout*wo)."""
    w = jnp.asarray(w, jnp.float32)
    cout, cin, kh, kw = w.shape
    ho = (h_in + 2 * pad - kh) // stride + 1
    wo = (w_in + 2 * pad - kw) // stride + 1

    # Band matrices: B[i, ci*w_in + u, co*wo + x] = w[co, ci, i, (u+pad)-stride*x]
    u = np.arange(w_in)[:, None]
    xo = np.arange(wo)[None, :]
    j = u + pad - stride * xo                                  # (w_in, wo)
    valid = jnp.asarray((j >= 0) & (j < kw), jnp.float32)
    jc = np.clip(j, 0, kw - 1)
    band = w[:, :, :, jc] * valid                              # (cout,cin,kh,w_in,wo)
    band = jnp.transpose(band, (2, 1, 3, 0, 4)).reshape(kh, cin * w_in, cout * wo)

    # Row selection: R[i, y, h] = 1 iff h == stride*y + i - pad (H-pad folded in)
    hh = np.arange(h_in)[None, None, :]
    yy = np.arange(ho)[None, :, None]
    ii = np.arange(kh)[:, None, None]
    rsel = jnp.asarray((stride * yy + ii - pad) == hh, jnp.float32)  # (kh, ho, h_in)

    bias_row = jnp.repeat(jnp.asarray(b, jnp.float32).reshape(cout), wo)[None, :]
    return band, rsel, bias_row, ho, wo


def init_params(key, num_edge, num_pos, num_evader, num_action=3):
    """PyTorch-layout parameters (Linear stored as (in,out), Conv as OIHW)."""
    ks = jax.random.split(key, 9)

    def lin(k, fan_in, fan_out):
        bound = 1.0 / math.sqrt(fan_in)
        kw_, kb = jax.random.split(k)
        w = jax.random.uniform(kw_, (fan_in, fan_out), jnp.float32, -bound, bound)
        b = jax.random.uniform(kb, (1, fan_out), jnp.float32, -bound, bound)
        return w, b

    def conv(k, cout, cin, kh, kw_):
        fan_in = cin * kh * kw_
        bound = 1.0 / math.sqrt(fan_in)
        k1, kb = jax.random.split(k)
        w = jax.random.uniform(k1, (cout, cin, kh, kw_), jnp.float32, -bound, bound)
        b = jax.random.uniform(kb, (cout,), jnp.float32, -bound, bound)
        return w, b

    p = {}
    d0 = num_pos + num_pos + num_edge + 1
    p["fc_n1_w"], p["fc_n1_b"] = lin(ks[0], d0, 32)
    p["conv1_w"], p["conv1_b"] = conv(ks[1], 3, 1, 7, 7)
    p["conv2_w"], p["conv2_b"] = conv(ks[2], 3, 3, 5, 5)
    p["conv3_w"], p["conv3_b"] = conv(ks[3], 1, 3, 3, 3)
    p["fc_link_w"], p["fc_link_b"] = lin(ks[4], 81, 24)
    # nn.MultiheadAttention(num_pos, 1): only the q/k projections influence the
    # returned attention weights (value / out_proj feed atten_output, unused).
    p["attn_wq"], p["attn_bq"] = lin(ks[5], num_pos, num_pos)
    p["attn_wk"], p["attn_bk"] = lin(ks[6], num_pos, num_pos)
    p["fc_hid1_w"], p["fc_hid1_b"] = lin(ks[7], 32 + 24 + num_evader, 48)
    p["fc_action_w"], p["fc_action_b"] = lin(ks[8], 48, num_action)
    return p


def prepare_params(params, img_hw=(101, 101)):
    """Convert PyTorch-layout params into the kernel-ready constant set."""
    H, W = img_hw
    kp = {}
    b1, r1, cb1, h1, w1 = _conv_matmul_consts(params["conv1_w"], params["conv1_b"], 3, 1, H, W)
    b2, r2, cb2, h2, w2 = _conv_matmul_consts(params["conv2_w"], params["conv2_b"], 3, 1, h1, w1)
    b3, r3, cb3, h3, w3 = _conv_matmul_consts(params["conv3_w"], params["conv3_b"], 1, 0, h2, w2)
    assert h3 * w3 == params["fc_link_w"].shape[0], "conv tower must flatten to fc_link input"
    kp.update(r1=r1, b1=b1, cb1=cb1, r2=r2, b2=b2, cb2=cb2, r3=r3, b3=b3, cb3=cb3)

    n_link = params["fc_link_w"].shape[1]
    kp["wl3"] = params["fc_link_w"].reshape(h3, w3, n_link)      # (9, 9, 24)
    kp["bl"] = params["fc_link_b"]

    kp["wn1"], kp["bn1"] = params["fc_n1_w"], params["fc_n1_b"]

    P = params["attn_wq"].shape[0]
    scale = 1.0 / math.sqrt(P)                                   # fold 1/sqrt(P) into q-proj
    kp["wq"] = params["attn_wq"] * scale
    kp["bq"] = params["attn_bq"] * scale
    kp["wkT"] = params["attn_wk"].T
    kp["bk"] = params["attn_bk"]

    wh = params["fc_hid1_w"]
    nf = params["fc_n1_w"].shape[1]
    kp["whf"], kp["wht"], kp["wha"] = wh[:nf], wh[nf:nf + n_link], wh[nf + n_link:]
    kp["bh"] = params["fc_hid1_b"]
    kp["wa"], kp["ba"] = params["fc_action_w"], params["fc_action_b"]
    return kp


# --------------------------------------------------------------------------
# The single fused Pallas kernel
# --------------------------------------------------------------------------
def _dqn_kernel(allin_ref, ego_ref, ev_ref, img_ref,
                r1_ref, b1_ref, cb1_ref,
                r2_ref, b2_ref, cb2_ref,
                r3_ref, b3_ref, cb3_ref,
                wl3_ref, bl_ref,
                wn1_ref, bn1_ref,
                wq_ref, bq_ref, wkT_ref, bk_ref,
                whf_ref, wht_ref, wha_ref, bh_ref,
                wa_ref, ba_ref,
                q_out_ref, attw_out_ref,
                topo_scratch):
    f32 = jnp.float32
    bb = img_ref.shape[0]

    def conv_layer(x, r_ref, band_ref, bias_ref):
        # x: (H_in, Cin*W_in) -> relu(conv) as (Ho, Cout*Wo); all MXU matmuls.
        kh = r_ref.shape[0]
        acc = None
        for i in range(kh):
            rows = jnp.dot(r_ref[i], x, preferred_element_type=f32)       # (Ho, Cin*W_in)
            part = jnp.dot(rows, band_ref[i], preferred_element_type=f32)  # (Ho, Cout*Wo)
            acc = part if acc is None else acc + part
        return jnp.maximum(acc + bias_ref[...], 0.0)

    # ---- conv tower + fc_link contraction, one batch element at a time ----
    @pl.loop(0, bb)
    def _(b):
        x1 = img_ref[b]                                    # (101, 101)
        x2 = conv_layer(x1, r1_ref, b1_ref, cb1_ref)       # (33, 3*33)
        x3 = conv_layer(x2, r2_ref, b2_ref, cb2_ref)       # (11, 3*11)
        x4 = conv_layer(x3, r3_ref, b3_ref, cb3_ref)       # (9, 9)
        # fc_link pre-activation: sum_y x4[y,:] @ W_link[y*9:(y+1)*9, :]
        ho = wl3_ref.shape[0]
        acc = jnp.zeros((1, bl_ref.shape[-1]), f32)
        for y in range(ho):
            acc = acc + jnp.dot(x4[y:y + 1, :], wl3_ref[y],
                                preferred_element_type=f32)
        topo_scratch[pl.ds(b, 1), :] = acc

    # ---- head: vectorised over the batch block (sublane axis) ----
    feature = _elu(jnp.dot(allin_ref[...], wn1_ref[...],
                           preferred_element_type=f32) + bn1_ref[...])
    topo = _elu(topo_scratch[...] + bl_ref[...])

    # single-head attention weights (1/sqrt(P) already folded into wq/bq)
    q_s = jnp.dot(ego_ref[...], wq_ref[...], preferred_element_type=f32) + bq_ref[...]
    m = jnp.dot(q_s, wkT_ref[...], preferred_element_type=f32)            # (BB, P)
    c = jnp.sum(q_s * bk_ref[...], axis=-1, keepdims=True)                # (BB, 1)
    scores = jnp.sum(ev_ref[...] * m[:, None, :], axis=-1) + c            # (BB, E)
    scores = scores - jnp.max(scores, axis=-1, keepdims=True)
    es = jnp.exp(scores)
    attw = es * _fast_recip(jnp.sum(es, axis=-1, keepdims=True))
    attw_out_ref[...] = attw.astype(attw_out_ref.dtype)

    hid = _elu(jnp.dot(feature, whf_ref[...], preferred_element_type=f32)
               + jnp.dot(topo, wht_ref[...], preferred_element_type=f32)
               + jnp.dot(attw, wha_ref[...], preferred_element_type=f32)
               + bh_ref[...])
    logits = jnp.dot(hid, wa_ref[...], preferred_element_type=f32) + ba_ref[...]
    logits = logits - jnp.max(logits, axis=-1, keepdims=True)
    el = jnp.exp(logits)
    q_out_ref[...] = (el * _fast_recip(jnp.sum(el, axis=-1, keepdims=True))
                      ).astype(q_out_ref.dtype)


# --------------------------------------------------------------------------
# Forward wrapper
# --------------------------------------------------------------------------
_WEIGHT_ORDER = ("r1", "b1", "cb1", "r2", "b2", "cb2", "r3", "b3", "cb3",
                 "wl3", "bl", "wn1", "bn1", "wq", "bq", "wkT", "bk",
                 "whf", "wht", "wha", "bh", "wa", "ba")


def dqn_forward(kparams, steps, ego_pos, target_pos, traffic_state,
                topo_link_array, all_evaders_pos, *, num_action,
                batch_block=8, return_attention=False):
    B = steps.shape[0]
    P = ego_pos.shape[1]
    E = all_evaders_pos.shape[1]
    H, W = topo_link_array.shape[-2], topo_link_array.shape[-1]

    all_input = jnp.concatenate([steps, ego_pos, target_pos, traffic_state], axis=1)
    D = all_input.shape[1]
    img = topo_link_array.reshape(B, H, W)            # drop the singleton channel

    # batch blocking: whole batch as one block if small, else blocks of 8
    bb = B if B <= batch_block else batch_block
    b_pad = pl.cdiv(B, bb) * bb
    if b_pad != B:
        padn = b_pad - B
        all_input = jnp.pad(all_input, ((0, padn), (0, 0)))
        ego_pos = jnp.pad(ego_pos, ((0, padn), (0, 0)))
        all_evaders_pos = jnp.pad(all_evaders_pos, ((0, padn), (0, 0), (0, 0)))
        img = jnp.pad(img, ((0, padn), (0, 0), (0, 0)))

    weights = [kparams[k] for k in _WEIGHT_ORDER]

    def _const_spec(arr):
        nd = arr.ndim
        return pl.BlockSpec(arr.shape, lambda g, _nd=nd: (0,) * _nd)

    in_specs = [
        pl.BlockSpec((bb, D), lambda g: (g, 0)),
        pl.BlockSpec((bb, P), lambda g: (g, 0)),
        pl.BlockSpec((bb, E, P), lambda g: (g, 0, 0)),
        pl.BlockSpec((bb, H, W), lambda g: (g, 0, 0)),
    ] + [_const_spec(wgt) for wgt in weights]

    out_specs = (pl.BlockSpec((bb, num_action), lambda g: (g, 0)),
                 pl.BlockSpec((bb, E), lambda g: (g, 0)))
    out_shape = (jax.ShapeDtypeStruct((b_pad, num_action), jnp.float32),
                 jax.ShapeDtypeStruct((b_pad, E), jnp.float32))

    q_values, attn_w = pl.pallas_call(
        _dqn_kernel,
        grid=(b_pad // bb,),
        in_specs=in_specs,
        out_specs=out_specs,
        out_shape=out_shape,
        scratch_shapes=[pltpu.VMEM((bb, kparams["bl"].shape[-1]), jnp.float32)],
        compiler_params=pltpu.CompilerParams(
            dimension_semantics=("parallel",)),
    )(all_input, ego_pos, all_evaders_pos, img, *weights)

    q_values = q_values[:B]
    attn_w = attn_w[:B]
    # TODO(synk): the original forward prints the attention weights and appends
    # them to 'log/atten_weight.csv' (host-side file I/O); attn_w is returned
    # instead so a caller can do that logging outside the kernel.
    if return_attention:
        return q_values, attn_w
    return q_values


# --------------------------------------------------------------------------
# Pure-JAX reference (XLA) for numerical validation
# --------------------------------------------------------------------------
def dqn_forward_ref(params, steps, ego_pos, target_pos, traffic_state,
                    topo_link_array, all_evaders_pos):
    B = steps.shape[0]
    P = ego_pos.shape[1]
    x = jnp.concatenate([steps, ego_pos, target_pos, traffic_state], axis=1)
    feature = _elu(x @ params["fc_n1_w"] + params["fc_n1_b"])

    def conv(t, w, b, stride, pad):
        y = lax.conv_general_dilated(
            t, w, window_strides=(stride, stride),
            padding=[(pad, pad), (pad, pad)],
            dimension_numbers=("NCHW", "OIHW", "NCHW"))
        return jnp.maximum(y + b.reshape(1, -1, 1, 1), 0.0)

    t = conv(topo_link_array, params["conv1_w"], params["conv1_b"], 3, 1)
    t = conv(t, params["conv2_w"], params["conv2_b"], 3, 1)
    t = conv(t, params["conv3_w"], params["conv3_b"], 1, 0)
    topo = _elu(t.reshape(B, -1) @ params["fc_link_w"] + params["fc_link_b"])

    q_s = (ego_pos @ params["attn_wq"] + params["attn_bq"]) / math.sqrt(P)
    keys = jnp.einsum("bep,pk->bek", all_evaders_pos, params["attn_wk"]) + params["attn_bk"]
    scores = jnp.einsum("bp,bep->be", q_s, keys)
    attw = jax.nn.softmax(scores, axis=-1)

    all_feat = jnp.concatenate([feature, topo, attw], axis=1)
    hid = _elu(all_feat @ params["fc_hid1_w"] + params["fc_hid1_b"])
    q = jax.nn.softmax(hid @ params["fc_action_w"] + params["fc_action_b"], axis=-1)
    return q, attw


if __name__ == "__main__":
    num_edge, num_pos, num_evader, num_action = 7, 5, 3, 3
    B = 2
    key = jax.random.PRNGKey(0)
    k_param, k_data = jax.random.split(key)
    params = init_params(k_param, num_edge, num_pos, num_evader, num_action)
    # topo_link_array must be 101x101 so the conv tower flattens to 81 (9x9).
    kparams = prepare_params(params, img_hw=(101, 101))

    kk = jax.random.split(k_data, 6)
    steps = jax.random.uniform(kk[0], (B, 1), jnp.float32)
    ego_pos = jax.random.uniform(kk[1], (B, num_pos), jnp.float32)
    target_pos = jax.random.uniform(kk[2], (B, num_pos), jnp.float32)
    traffic_state = jax.random.uniform(kk[3], (B, num_edge), jnp.float32)
    topo_link_array = jax.random.uniform(kk[4], (B, 1, 101, 101), jnp.float32)
    all_evaders_pos = jax.random.uniform(kk[5], (B, num_evader, num_pos), jnp.float32)

    fwd = jax.jit(functools.partial(dqn_forward, num_action=num_action,
                                    return_attention=True))
    q, attw = fwd(kparams, steps, ego_pos, target_pos, traffic_state,
                  topo_link_array, all_evaders_pos)
    q = jax.block_until_ready(q)

    q_ref, attw_ref = jax.jit(dqn_forward_ref)(
        params, steps, ego_pos, target_pos, traffic_state,
        topo_link_array, all_evaders_pos)
    q_ref = jax.block_until_ready(q_ref)

    assert q.shape == (B, num_action) and attw.shape == (B, num_evader)
    assert bool(jnp.all(jnp.isfinite(q)))
    # rows of the softmax output must sum to 1
    assert bool(jnp.allclose(jnp.sum(q, axis=1), 1.0, atol=1e-5))
    # numerical parity with the pure-JAX / XLA reference
    assert bool(jnp.allclose(q, q_ref, atol=1e-4)), "Q values mismatch vs reference"
    assert bool(jnp.allclose(attw, attw_ref, atol=1e-4)), "attention weights mismatch"
    print("KERNEL_OK")
</pallas_src>

<mosaic_0001>
module attributes {stable_mosaic.version = 11 : i64} {
  func.func @_dqn_kernel(%arg0: i32, %arg1: memref<2x18xf32, #tpu.memory_space<vmem>>, %arg2: memref<2x5xf32, #tpu.memory_space<vmem>>, %arg3: memref<2x3x5xf32, #tpu.memory_space<vmem>>, %arg4: memref<2x101x101xf32, #tpu.memory_space<vmem>>, %arg5: memref<7x33x101xf32, #tpu.memory_space<vmem>>, %arg6: memref<7x101x99xf32, #tpu.memory_space<vmem>>, %arg7: memref<1x99xf32, #tpu.memory_space<vmem>>, %arg8: memref<5x11x33xf32, #tpu.memory_space<vmem>>, %arg9: memref<5x99x33xf32, #tpu.memory_space<vmem>>, %arg10: memref<1x33xf32, #tpu.memory_space<vmem>>, %arg11: memref<3x9x11xf32, #tpu.memory_space<vmem>>, %arg12: memref<3x33x9xf32, #tpu.memory_space<vmem>>, %arg13: memref<1x9xf32, #tpu.memory_space<vmem>>, %arg14: memref<9x9x24xf32, #tpu.memory_space<vmem>>, %arg15: memref<1x24xf32, #tpu.memory_space<vmem>>, %arg16: memref<18x32xf32, #tpu.memory_space<vmem>>, %arg17: memref<1x32xf32, #tpu.memory_space<vmem>>, %arg18: memref<5x5xf32, #tpu.memory_space<vmem>>, %arg19: memref<1x5xf32, #tpu.memory_space<vmem>>, %arg20: memref<5x5xf32, #tpu.memory_space<vmem>>, %arg21: memref<1x5xf32, #tpu.memory_space<vmem>>, %arg22: memref<32x48xf32, #tpu.memory_space<vmem>>, %arg23: memref<24x48xf32, #tpu.memory_space<vmem>>, %arg24: memref<3x48xf32, #tpu.memory_space<vmem>>, %arg25: memref<1x48xf32, #tpu.memory_space<vmem>>, %arg26: memref<48x3xf32, #tpu.memory_space<vmem>>, %arg27: memref<1x3xf32, #tpu.memory_space<vmem>>, %arg28: memref<2x3xf32, #tpu.memory_space<vmem>>, %arg29: memref<2x3xf32, #tpu.memory_space<vmem>>, %arg30: memref<2x24xf32, #tpu.memory_space<vmem>>) attributes {dimension_semantics = [#tpu.dimension_semantics<parallel>], iteration_bounds = array<i64: 1>, scalar_prefetch = 0 : i64, scratch_operands = 1 : i64, tpu.core_type = #tpu.core_type<tc>, window_params = [{transform_indices = @transform_0, window_bounds = array<i64: 2, 18>}, {transform_indices = @transform_1, window_bounds = array<i64: 2, 5>}, {transform_indices = @transform_2, window_bounds = array<i64: 2, 3, 5>}, {transform_indices = @transform_3, window_bounds = array<i64: 2, 101, 101>}, {pipeline_mode = #tpu.pipeline_mode<synchronous>, transform_indices = @transform_4, window_bounds = array<i64: 7, 33, 101>}, {pipeline_mode = #tpu.pipeline_mode<synchronous>, transform_indices = @transform_5, window_bounds = array<i64: 7, 101, 99>}, {pipeline_mode = #tpu.pipeline_mode<synchronous>, transform_indices = @transform_6, window_bounds = array<i64: 1, 99>}, {pipeline_mode = #tpu.pipeline_mode<synchronous>, transform_indices = @transform_7, window_bounds = array<i64: 5, 11, 33>}, {pipeline_mode = #tpu.pipeline_mode<synchronous>, transform_indices = @transform_8, window_bounds = array<i64: 5, 99, 33>}, {pipeline_mode = #tpu.pipeline_mode<synchronous>, transform_indices = @transform_9, window_bounds = array<i64: 1, 33>}, {pipeline_mode = #tpu.pipeline_mode<synchronous>, transform_indices = @transform_10, window_bounds = array<i64: 3, 9, 11>}, {pipeline_mode = #tpu.pipeline_mode<synchronous>, transform_indices = @transform_11, window_bounds = array<i64: 3, 33, 9>}, {pipeline_mode = #tpu.pipeline_mode<synchronous>, transform_indices = @transform_12, window_bounds = array<i64: 1, 9>}, {pipeline_mode = #tpu.pipeline_mode<synchronous>, transform_indices = @transform_13, window_bounds = array<i64: 9, 9, 24>}, {pipeline_mode = #tpu.pipeline_mode<synchronous>, transform_indices = @transform_14, window_bounds = array<i64: 1, 24>}, {pipeline_mode = #tpu.pipeline_mode<synchronous>, transform_indices = @transform_15, window_bounds = array<i64: 18, 32>}, {pipeline_mode = #tpu.pipeline_mode<synchronous>, transform_indices = @transform_16, window_bounds = array<i64: 1, 32>}, {pipeline_mode = #tpu.pipeline_mode<synchronous>, transform_indices = @transform_17, window_bounds = array<i64: 5, 5>}, {pipeline_mode = #tpu.pipeline_mode<synchronous>, transform_indices = @transform_18, window_bounds = array<i64: 1, 5>}, {pipeline_mode = #tpu.pipeline_mode<synchronous>, transform_indices = @transform_19, window_bounds = array<i64: 5, 5>}, {pipeline_mode = #tpu.pipeline_mode<synchronous>, transform_indices = @transform_20, window_bounds = array<i64: 1, 5>}, {pipeline_mode = #tpu.pipeline_mode<synchronous>, transform_indices = @transform_21, window_bounds = array<i64: 32, 48>}, {pipeline_mode = #tpu.pipeline_mode<synchronous>, transform_indices = @transform_22, window_bounds = array<i64: 24, 48>}, {pipeline_mode = #tpu.pipeline_mode<synchronous>, transform_indices = @transform_23, window_bounds = array<i64: 3, 48>}, {pipeline_mode = #tpu.pipeline_mode<synchronous>, transform_indices = @transform_24, window_bounds = array<i64: 1, 48>}, {pipeline_mode = #tpu.pipeline_mode<synchronous>, transform_indices = @transform_25, window_bounds = array<i64: 48, 3>}, {pipeline_mode = #tpu.pipeline_mode<synchronous>, transform_indices = @transform_26, window_bounds = array<i64: 1, 3>}, {transform_indices = @transform_27, window_bounds = array<i64: 2, 3>}, {transform_indices = @transform_28, window_bounds = array<i64: 2, 3>}]} {
    %c0_i32 = arith.constant 0 : i32
    %c2_i32 = arith.constant 2 : i32
    %0 = arith.addi %c0_i32, %c2_i32 : i32
    %c1_i32 = arith.constant 1 : i32
    scf.for %arg31 = %c0_i32 to %0 step %c1_i32  : i32 {
      %c1_i32_62 = arith.constant 1 : i32
      %101 = arith.muli %arg31, %c1_i32_62 : i32
      %c0_i32_63 = arith.constant 0 : i32
      %102 = arith.addi %c0_i32_63, %101 : i32
      %103 = arith.index_cast %102 : i32 to index
      %c0_64 = arith.constant 0 : index
      %c0_65 = arith.constant 0 : index
      %104 = vector.load %arg4[%103, %c0_64, %c0_65] : memref<2x101x101xf32, #tpu.memory_space<vmem>>, vector<1x101x101xf32>
      %105 = vector.shape_cast %104 : vector<1x101x101xf32> to vector<101x101xf32>
      %c0_66 = arith.constant 0 : index
      %c0_67 = arith.constant 0 : index
      %c0_68 = arith.constant 0 : index
      %106 = vector.load %arg5[%c0_66, %c0_67, %c0_68] : memref<7x33x101xf32, #tpu.memory_space<vmem>>, vector<1x33x101xf32>
      %107 = vector.shape_cast %106 : vector<1x33x101xf32> to vector<33x101xf32>
      %cst_69 = arith.constant dense<0.000000e+00> : vector<33x101xf32>
      %108 = tpu.matmul %107, %105, %cst_69 {dimension_numbers = #tpu.dot_dimension_numbers<[1], [0], [0], [1], [0, 0, 1, 1], [], []>} : vector<33x101xf32>, vector<101x101xf32>, vector<33x101xf32> -> vector<33x101xf32>
      %c0_70 = arith.constant 0 : index
      %c0_71 = arith.constant 0 : index
      %c0_72 = arith.constant 0 : index
      %109 = vector.load %arg6[%c0_70, %c0_71, %c0_72] : memref<7x101x99xf32, #tpu.memory_space<vmem>>, vector<1x101x99xf32>
      %110 = vector.shape_cast %109 : vector<1x101x99xf32> to vector<101x99xf32>
      %cst_73 = arith.constant dense<0.000000e+00> : vector<33x99xf32>
      %111 = tpu.matmul %108, %110, %cst_73 {dimension_numbers = #tpu.dot_dimension_numbers<[1], [0], [0], [1], [0, 0, 1, 1], [], []>} : vector<33x101xf32>, vector<101x99xf32>, vector<33x99xf32> -> vector<33x99xf32>
      %c1 = arith.constant 1 : index
      %c0_74 = arith.constant 0 : index
      %c0_75 = arith.constant 0 : index
      %112 = vector.load %arg5[%c1, %c0_74, %c0_75] : memref<7x33x101xf32, #tpu.memory_space<vmem>>, vector<1x33x101xf32>
      %113 = vector.shape_cast %112 : vector<1x33x101xf32> to vector<33x101xf32>
      %cst_76 = arith.constant dense<0.000000e+00> : vector<33x101xf32>
      %114 = tpu.matmul %113, %105, %cst_76 {dimension_numbers = #tpu.dot_dimension_numbers<[1], [0], [0], [1], [0, 0, 1, 1], [], []>} : vector<33x101xf32>, vector<101x101xf32>, vector<33x101xf32> -> vector<33x101xf32>
      %c1_77 = arith.constant 1 : index
      %c0_78 = arith.constant 0 : index
      %c0_79 = arith.constant 0 : index
      %115 = vector.load %arg6[%c1_77, %c0_78, %c0_79] : memref<7x101x99xf32, #tpu.memory_space<vmem>>, vector<1x101x99xf32>
      %116 = vector.shape_cast %115 : vector<1x101x99xf32> to vector<101x99xf32>
      %cst_80 = arith.constant dense<0.000000e+00> : vector<33x99xf32>
      %117 = tpu.matmul %114, %116, %cst_80 {dimension_numbers = #tpu.dot_dimension_numbers<[1], [0], [0], [1], [0, 0, 1, 1], [], []>} : vector<33x101xf32>, vector<101x99xf32>, vector<33x99xf32> -> vector<33x99xf32>
      %118 = arith.addf %111, %117 : vector<33x99xf32>
      %c2 = arith.constant 2 : index
      %c0_81 = arith.constant 0 : index
      %c0_82 = arith.constant 0 : index
      %119 = vector.load %arg5[%c2, %c0_81, %c0_82] : memref<7x33x101xf32, #tpu.memory_space<vmem>>, vector<1x33x101xf32>
      %120 = vector.shape_cast %119 : vector<1x33x101xf32> to vector<33x101xf32>
      %cst_83 = arith.constant dense<0.000000e+00> : vector<33x101xf32>
      %121 = tpu.matmul %120, %105, %cst_83 {dimension_numbers = #tpu.dot_dimension_numbers<[1], [0], [0], [1], [0, 0, 1, 1], [], []>} : vector<33x101xf32>, vector<101x101xf32>, vector<33x101xf32> -> vector<33x101xf32>
      %c2_84 = arith.constant 2 : index
      %c0_85 = arith.constant 0 : index
      %c0_86 = arith.constant 0 : index
      %122 = vector.load %arg6[%c2_84, %c0_85, %c0_86] : memref<7x101x99xf32, #tpu.memory_space<vmem>>, vector<1x101x99xf32>
      %123 = vector.shape_cast %122 : vector<1x101x99xf32> to vector<101x99xf32>
      %cst_87 = arith.constant dense<0.000000e+00> : vector<33x99xf32>
      %124 = tpu.matmul %121, %123, %cst_87 {dimension_numbers = #tpu.dot_dimension_numbers<[1], [0], [0], [1], [0, 0, 1, 1], [], []>} : vector<33x101xf32>, vector<101x99xf32>, vector<33x99xf32> -> vector<33x99xf32>
      %125 = arith.addf %118, %124 : vector<33x99xf32>
      %c3 = arith.constant 3 : index
      %c0_88 = arith.constant 0 : index
      %c0_89 = arith.constant 0 : index
      %126 = vector.load %arg5[%c3, %c0_88, %c0_89] : memref<7x33x101xf32, #tpu.memory_space<vmem>>, vector<1x33x101xf32>
      %127 = vector.shape_cast %126 : vector<1x33x101xf32> to vector<33x101xf32>
      %cst_90 = arith.constant dense<0.000000e+00> : vector<33x101xf32>
      %128 = tpu.matmul %127, %105, %cst_90 {dimension_numbers = #tpu.dot_dimension_numbers<[1], [0], [0], [1], [0, 0, 1, 1], [], []>} : vector<33x101xf32>, vector<101x101xf32>, vector<33x101xf32> -> vector<33x101xf32>
      %c3_91 = arith.constant 3 : index
      %c0_92 = arith.constant 0 : index
      %c0_93 = arith.constant 0 : index
      %129 = vector.load %arg6[%c3_91, %c0_92, %c0_93] : memref<7x101x99xf32, #tpu.memory_space<vmem>>, vector<1x101x99xf32>
      %130 = vector.shape_cast %129 : vector<1x101x99xf32> to vector<101x99xf32>
      %cst_94 = arith.constant dense<0.000000e+00> : vector<33x99xf32>
      %131 = tpu.matmul %128, %130, %cst_94 {dimension_numbers = #tpu.dot_dimension_numbers<[1], [0], [0], [1], [0, 0, 1, 1], [], []>} : vector<33x101xf32>, vector<101x99xf32>, vector<33x99xf32> -> vector<33x99xf32>
      %132 = arith.addf %125, %131 : vector<33x99xf32>
      %c4 = arith.constant 4 : index
      %c0_95 = arith.constant 0 : index
      %c0_96 = arith.constant 0 : index
      %133 = vector.load %arg5[%c4, %c0_95, %c0_96] : memref<7x33x101xf32, #tpu.memory_space<vmem>>, vector<1x33x101xf32>
      %134 = vector.shape_cast %133 : vector<1x33x101xf32> to vector<33x101xf32>
      %cst_97 = arith.constant dense<0.000000e+00> : vector<33x101xf32>
      %135 = tpu.matmul %134, %105, %cst_97 {dimension_numbers = #tpu.dot_dimension_numbers<[1], [0], [0], [1], [0, 0, 1, 1], [], []>} : vector<33x101xf32>, vector<101x101xf32>, vector<33x101xf32> -> vector<33x101xf32>
      %c4_98 = arith.constant 4 : index
      %c0_99 = arith.constant 0 : index
      %c0_100 = arith.constant 0 : index
      %136 = vector.load %arg6[%c4_98, %c0_99, %c0_100] : memref<7x101x99xf32, #tpu.memory_space<vmem>>, vector<1x101x99xf32>
      %137 = vector.shape_cast %136 : vector<1x101x99xf32> to vector<101x99xf32>
      %cst_101 = arith.constant dense<0.000000e+00> : vector<33x99xf32>
      %138 = tpu.matmul %135, %137, %cst_101 {dimension_numbers = #tpu.dot_dimension_numbers<[1], [0], [0], [1], [0, 0, 1, 1], [], []>} : vector<33x101xf32>, vector<101x99xf32>, vector<33x99xf32> -> vector<33x99xf32>
      %139 = arith.addf %132, %138 : vector<33x99xf32>
      %c5 = arith.constant 5 : index
      %c0_102 = arith.constant 0 : index
      %c0_103 = arith.constant 0 : index
      %140 = vector.load %arg5[%c5, %c0_102, %c0_103] : memref<7x33x101xf32, #tpu.memory_space<vmem>>, vector<1x33x101xf32>
      %141 = vector.shape_cast %140 : vector<1x33x101xf32> to vector<33x101xf32>
      %cst_104 = arith.constant dense<0.000000e+00> : vector<33x101xf32>
      %142 = tpu.matmul %141, %105, %cst_104 {dimension_numbers = #tpu.dot_dimension_numbers<[1], [0], [0], [1], [0, 0, 1, 1], [], []>} : vector<33x101xf32>, vector<101x101xf32>, vector<33x101xf32> -> vector<33x101xf32>
      %c5_105 = arith.constant 5 : index
      %c0_106 = arith.constant 0 : index
      %c0_107 = arith.constant 0 : index
      %143 = vector.load %arg6[%c5_105, %c0_106, %c0_107] : memref<7x101x99xf32, #tpu.memory_space<vmem>>, vector<1x101x99xf32>
      %144 = vector.shape_cast %143 : vector<1x101x99xf32> to vector<101x99xf32>
      %cst_108 = arith.constant dense<0.000000e+00> : vector<33x99xf32>
      %145 = tpu.matmul %142, %144, %cst_108 {dimension_numbers = #tpu.dot_dimension_numbers<[1], [0], [0], [1], [0, 0, 1, 1], [], []>} : vector<33x101xf32>, vector<101x99xf32>, vector<33x99xf32> -> vector<33x99xf32>
      %146 = arith.addf %139, %145 : vector<33x99xf32>
      %c6 = arith.constant 6 : index
      %c0_109 = arith.constant 0 : index
      %c0_110 = arith.constant 0 : index
      %147 = vector.load %arg5[%c6, %c0_109, %c0_110] : memref<7x33x101xf32, #tpu.memory_space<vmem>>, vector<1x33x101xf32>
      %148 = vector.shape_cast %147 : vector<1x33x101xf32> to vector<33x101xf32>
      %cst_111 = arith.constant dense<0.000000e+00> : vector<33x101xf32>
      %149 = tpu.matmul %148, %105, %cst_111 {dimension_numbers = #tpu.dot_dimension_numbers<[1], [0], [0], [1], [0, 0, 1, 1], [], []>} : vector<33x101xf32>, vector<101x101xf32>, vector<33x101xf32> -> vector<33x101xf32>
      %c6_112 = arith.constant 6 : index
      %c0_113 = arith.constant 0 : index
      %c0_114 = arith.constant 0 : index
      %150 = vector.load %arg6[%c6_112, %c0_113, %c0_114] : memref<7x101x99xf32, #tpu.memory_space<vmem>>, vector<1x101x99xf32>
      %151 = vector.shape_cast %150 : vector<1x101x99xf32> to vector<101x99xf32>
      %cst_115 = arith.constant dense<0.000000e+00> : vector<33x99xf32>
      %152 = tpu.matmul %149, %151, %cst_115 {dimension_numbers = #tpu.dot_dimension_numbers<[1], [0], [0], [1], [0, 0, 1, 1], [], []>} : vector<33x101xf32>, vector<101x99xf32>, vector<33x99xf32> -> vector<33x99xf32>
      %153 = arith.addf %146, %152 : vector<33x99xf32>
      %c0_116 = arith.constant 0 : index
      %c0_117 = arith.constant 0 : index
      %154 = vector.load %arg7[%c0_116, %c0_117] : memref<1x99xf32, #tpu.memory_space<vmem>>, vector<1x99xf32>
      %155 = vector.broadcast %154 : vector<1x99xf32> to vector<33x99xf32>
      %156 = arith.addf %153, %155 : vector<33x99xf32>
      %cst_118 = arith.constant 0.000000e+00 : f32
      %157 = vector.broadcast %cst_118 : f32 to vector<33x99xf32>
      %158 = arith.maximumf %156, %157 : vector<33x99xf32>
      %c0_119 = arith.constant 0 : index
      %c0_120 = arith.constant 0 : index
      %c0_121 = arith.constant 0 : index
      %159 = vector.load %arg8[%c0_119, %c0_120, %c0_121] : memref<5x11x33xf32, #tpu.memory_space<vmem>>, vector<1x11x33xf32>
      %160 = vector.shape_cast %159 : vector<1x11x33xf32> to vector<11x33xf32>
      %cst_122 = arith.constant dense<0.000000e+00> : vector<11x99xf32>
      %161 = tpu.matmul %160, %158, %cst_122 {dimension_numbers = #tpu.dot_dimension_numbers<[1], [0], [0], [1], [0, 0, 1, 1], [], []>} : vector<11x33xf32>, vector<33x99xf32>, vector<11x99xf32> -> vector<11x99xf32>
      %c0_123 = arith.constant 0 : index
      %c0_124 = arith.constant 0 : index
      %c0_125 = arith.constant 0 : index
      %162 = vector.load %arg9[%c0_123, %c0_124, %c0_125] : memref<5x99x33xf32, #tpu.memory_space<vmem>>, vector<1x99x33xf32>
      %163 = vector.shape_cast %162 : vector<1x99x33xf32> to vector<99x33xf32>
      %cst_126 = arith.constant dense<0.000000e+00> : vector<11x33xf32>
      %164 = tpu.matmul %161, %163, %cst_126 {dimension_numbers = #tpu.dot_dimension_numbers<[1], [0], [0], [1], [0, 0, 1, 1], [], []>} : vector<11x99xf32>, vector<99x33xf32>, vector<11x33xf32> -> vector<11x33xf32>
      %c1_127 = arith.constant 1 : index
      %c0_128 = arith.constant 0 : index
      %c0_129 = arith.constant 0 : index
      %165 = vector.load %arg8[%c1_127, %c0_128, %c0_129] : memref<5x11x33xf32, #tpu.memory_space<vmem>>, vector<1x11x33xf32>
      %166 = vector.shape_cast %165 : vector<1x11x33xf32> to vector<11x33xf32>
      %cst_130 = arith.constant dense<0.000000e+00> : vector<11x99xf32>
      %167 = tpu.matmul %166, %158, %cst_130 {dimension_numbers = #tpu.dot_dimension_numbers<[1], [0], [0], [1], [0, 0, 1, 1], [], []>} : vector<11x33xf32>, vector<33x99xf32>, vector<11x99xf32> -> vector<11x99xf32>
      %c1_131 = arith.constant 1 : index
      %c0_132 = arith.constant 0 : index
      %c0_133 = arith.constant 0 : index
      %168 = vector.load %arg9[%c1_131, %c0_132, %c0_133] : memref<5x99x33xf32, #tpu.memory_space<vmem>>, vector<1x99x33xf32>
      %169 = vector.shape_cast %168 : vector<1x99x33xf32> to vector<99x33xf32>
      %cst_134 = arith.constant dense<0.000000e+00> : vector<11x33xf32>
      %170 = tpu.matmul %167, %169, %cst_134 {dimension_numbers = #tpu.dot_dimension_numbers<[1], [0], [0], [1], [0, 0, 1, 1], [], []>} : vector<11x99xf32>, vector<99x33xf32>, vector<11x33xf32> -> vector<11x33xf32>
      %171 = arith.addf %164, %170 : vector<11x33xf32>
      %c2_135 = arith.constant 2 : index
      %c0_136 = arith.constant 0 : index
      %c0_137 = arith.constant 0 : index
      %172 = vector.load %arg8[%c2_135, %c0_136, %c0_137] : memref<5x11x33xf32, #tpu.memory_space<vmem>>, vector<1x11x33xf32>
      %173 = vector.shape_cast %172 : vector<1x11x33xf32> to vector<11x33xf32>
      %cst_138 = arith.constant dense<0.000000e+00> : vector<11x99xf32>
      %174 = tpu.matmul %173, %158, %cst_138 {dimension_numbers = #tpu.dot_dimension_numbers<[1], [0], [0], [1], [0, 0, 1, 1], [], []>} : vector<11x33xf32>, vector<33x99xf32>, vector<11x99xf32> -> vector<11x99xf32>
      %c2_139 = arith.constant 2 : index
      %c0_140 = arith.constant 0 : index
      %c0_141 = arith.constant 0 : index
      %175 = vector.load %arg9[%c2_139, %c0_140, %c0_141] : memref<5x99x33xf32, #tpu.memory_space<vmem>>, vector<1x99x33xf32>
      %176 = vector.shape_cast %175 : vector<1x99x33xf32> to vector<99x33xf32>
      %cst_142 = arith.constant dense<0.000000e+00> : vector<11x33xf32>
      %177 = tpu.matmul %174, %176, %cst_142 {dimension_numbers = #tpu.dot_dimension_numbers<[1], [0], [0], [1], [0, 0, 1, 1], [], []>} : vector<11x99xf32>, vector<99x33xf32>, vector<11x33xf32> -> vector<11x33xf32>
      %178 = arith.addf %171, %177 : vector<11x33xf32>
      %c3_143 = arith.constant 3 : index
      %c0_144 = arith.constant 0 : index
      %c0_145 = arith.constant 0 : index
      %179 = vector.load %arg8[%c3_143, %c0_144, %c0_145] : memref<5x11x33xf32, #tpu.memory_space<vmem>>, vector<1x11x33xf32>
      %180 = vector.shape_cast %179 : vector<1x11x33xf32> to vector<11x33xf32>
      %cst_146 = arith.constant dense<0.000000e+00> : vector<11x99xf32>
      %181 = tpu.matmul %180, %158, %cst_146 {dimension_numbers = #tpu.dot_dimension_numbers<[1], [0], [0], [1], [0, 0, 1, 1], [], []>} : vector<11x33xf32>, vector<33x99xf32>, vector<11x99xf32> -> vector<11x99xf32>
      %c3_147 = arith.constant 3 : index
      %c0_148 = arith.constant 0 : index
      %c0_149 = arith.constant 0 : index
      %182 = vector.load %arg9[%c3_147, %c0_148, %c0_149] : memref<5x99x33xf32, #tpu.memory_space<vmem>>, vector<1x99x33xf32>
      %183 = vector.shape_cast %182 : vector<1x99x33xf32> to vector<99x33xf32>
      %cst_150 = arith.constant dense<0.000000e+00> : vector<11x33xf32>
      %184 = tpu.matmul %181, %183, %cst_150 {dimension_numbers = #tpu.dot_dimension_numbers<[1], [0], [0], [1], [0, 0, 1, 1], [], []>} : vector<11x99xf32>, vector<99x33xf32>, vector<11x33xf32> -> vector<11x33xf32>
      %185 = arith.addf %178, %184 : vector<11x33xf32>
      %c4_151 = arith.constant 4 : index
      %c0_152 = arith.constant 0 : index
      %c0_153 = arith.constant 0 : index
      %186 = vector.load %arg8[%c4_151, %c0_152, %c0_153] : memref<5x11x33xf32, #tpu.memory_space<vmem>>, vector<1x11x33xf32>
      %187 = vector.shape_cast %186 : vector<1x11x33xf32> to vector<11x33xf32>
      %cst_154 = arith.constant dense<0.000000e+00> : vector<11x99xf32>
      %188 = tpu.matmul %187, %158, %cst_154 {dimension_numbers = #tpu.dot_dimension_numbers<[1], [0], [0], [1], [0, 0, 1, 1], [], []>} : vector<11x33xf32>, vector<33x99xf32>, vector<11x99xf32> -> vector<11x99xf32>
      %c4_155 = arith.constant 4 : index
      %c0_156 = arith.constant 0 : index
      %c0_157 = arith.constant 0 : index
      %189 = vector.load %arg9[%c4_155, %c0_156, %c0_157] : memref<5x99x33xf32, #tpu.memory_space<vmem>>, vector<1x99x33xf32>
      %190 = vector.shape_cast %189 : vector<1x99x33xf32> to vector<99x33xf32>
      %cst_158 = arith.constant dense<0.000000e+00> : vector<11x33xf32>
      %191 = tpu.matmul %188, %190, %cst_158 {dimension_numbers = #tpu.dot_dimension_numbers<[1], [0], [0], [1], [0, 0, 1, 1], [], []>} : vector<11x99xf32>, vector<99x33xf32>, vector<11x33xf32> -> vector<11x33xf32>
      %192 = arith.addf %185, %191 : vector<11x33xf32>
      %c0_159 = arith.constant 0 : index
      %c0_160 = arith.constant 0 : index
      %193 = vector.load %arg10[%c0_159, %c0_160] : memref<1x33xf32, #tpu.memory_space<vmem>>, vector<1x33xf32>
      %194 = vector.broadcast %193 : vector<1x33xf32> to vector<11x33xf32>
      %195 = arith.addf %192, %194 : vector<11x33xf32>
      %cst_161 = arith.constant 0.000000e+00 : f32
      %196 = vector.broadcast %cst_161 : f32 to vector<11x33xf32>
      %197 = arith.maximumf %195, %196 : vector<11x33xf32>
      %c0_162 = arith.constant 0 : index
      %c0_163 = arith.constant 0 : index
      %c0_164 = arith.constant 0 : index
      %198 = vector.load %arg11[%c0_162, %c0_163, %c0_164] : memref<3x9x11xf32, #tpu.memory_space<vmem>>, vector<1x9x11xf32>
      %199 = vector.shape_cast %198 : vector<1x9x11xf32> to vector<9x11xf32>
      %cst_165 = arith.constant dense<0.000000e+00> : vector<9x33xf32>
      %200 = tpu.matmul %199, %197, %cst_165 {dimension_numbers = #tpu.dot_dimension_numbers<[1], [0], [0], [1], [0, 0, 1, 1], [], []>} : vector<9x11xf32>, vector<11x33xf32>, vector<9x33xf32> -> vector<9x33xf32>
      %c0_166 = arith.constant 0 : index
      %c0_167 = arith.constant 0 : index
      %c0_168 = arith.constant 0 : index
      %201 = vector.load %arg12[%c0_166, %c0_167, %c0_168] : memref<3x33x9xf32, #tpu.memory_space<vmem>>, vector<1x33x9xf32>
      %202 = vector.shape_cast %201 : vector<1x33x9xf32> to vector<33x9xf32>
      %cst_169 = arith.constant dense<0.000000e+00> : vector<9x9xf32>
      %203 = tpu.matmul %200, %202, %cst_169 {dimension_numbers = #tpu.dot_dimension_numbers<[1], [0], [0], [1], [0, 0, 1, 1], [], []>} : vector<9x33xf32>, vector<33x9xf32>, vector<9x9xf32> -> vector<9x9xf32>
      %c1_170 = arith.constant 1 : index
      %c0_171 = arith.constant 0 : index
      %c0_172 = arith.constant 0 : index
      %204 = vector.load %arg11[%c1_170, %c0_171, %c0_172] : memref<3x9x11xf32, #tpu.memory_space<vmem>>, vector<1x9x11xf32>
      %205 = vector.shape_cast %204 : vector<1x9x11xf32> to vector<9x11xf32>
      %cst_173 = arith.constant dense<0.000000e+00> : vector<9x33xf32>
      %206 = tpu.matmul %205, %197, %cst_173 {dimension_numbers = #tpu.dot_dimension_numbers<[1], [0], [0], [1], [0, 0, 1, 1], [], []>} : vector<9x11xf32>, vector<11x33xf32>, vector<9x33xf32> -> vector<9x33xf32>
      %c1_174 = arith.constant 1 : index
      %c0_175 = arith.constant 0 : index
      %c0_176 = arith.constant 0 : index
      %207 = vector.load %arg12[%c1_174, %c0_175, %c0_176] : memref<3x33x9xf32, #tpu.memory_space<vmem>>, vector<1x33x9xf32>
      %208 = vector.shape_cast %207 : vector<1x33x9xf32> to vector<33x9xf32>
      %cst_177 = arith.constant dense<0.000000e+00> : vector<9x9xf32>
      %209 = tpu.matmul %206, %208, %cst_177 {dimension_numbers = #tpu.dot_dimension_numbers<[1], [0], [0], [1], [0, 0, 1, 1], [], []>} : vector<9x33xf32>, vector<33x9xf32>, vector<9x9xf32> -> vector<9x9xf32>
      %210 = arith.addf %203, %209 : vector<9x9xf32>
      %c2_178 = arith.constant 2 : index
      %c0_179 = arith.constant 0 : index
      %c0_180 = arith.constant 0 : index
      %211 = vector.load %arg11[%c2_178, %c0_179, %c0_180] : memref<3x9x11xf32, #tpu.memory_space<vmem>>, vector<1x9x11xf32>
      %212 = vector.shape_cast %211 : vector<1x9x11xf32> to vector<9x11xf32>
      %cst_181 = arith.constant dense<0.000000e+00> : vector<9x33xf32>
      %213 = tpu.matmul %212, %197, %cst_181 {dimension_numbers = #tpu.dot_dimension_numbers<[1], [0], [0], [1], [0, 0, 1, 1], [], []>} : vector<9x11xf32>, vector<11x33xf32>, vector<9x33xf32> -> vector<9x33xf32>
      %c2_182 = arith.constant 2 : index
      %c0_183 = arith.constant 0 : index
      %c0_184 = arith.constant 0 : index
      %214 = vector.load %arg12[%c2_182, %c0_183, %c0_184] : memref<3x33x9xf32, #tpu.memory_space<vmem>>, vector<1x33x9xf32>
      %215 = vector.shape_cast %214 : vector<1x33x9xf32> to vector<33x9xf32>
      %cst_185 = arith.constant dense<0.000000e+00> : vector<9x9xf32>
      %216 = tpu.matmul %213, %215, %cst_185 {dimension_numbers = #tpu.dot_dimension_numbers<[1], [0], [0], [1], [0, 0, 1, 1], [], []>} : vector<9x33xf32>, vector<33x9xf32>, vector<9x9xf32> -> vector<9x9xf32>
      %217 = arith.addf %210, %216 : vector<9x9xf32>
      %c0_186 = arith.constant 0 : index
      %c0_187 = arith.constant 0 : index
      %218 = vector.load %arg13[%c0_186, %c0_187] : memref<1x9xf32, #tpu.memory_space<vmem>>, vector<1x9xf32>
      %219 = vector.broadcast %218 : vector<1x9xf32> to vector<9x9xf32>
      %220 = arith.addf %217, %219 : vector<9x9xf32>
      %cst_188 = arith.constant 0.000000e+00 : f32
      %221 = vector.broadcast %cst_188 : f32 to vector<9x9xf32>
      %222 = arith.maximumf %220, %221 : vector<9x9xf32>
      %cst_189 = arith.constant 0.000000e+00 : f32
      %223 = vector.broadcast %cst_189 : f32 to vector<1x24xf32>
      %224 = vector.extract_strided_slice %222 {offsets = [0, 0], sizes = [1, 9], strides = [1, 1]} : vector<9x9xf32> to vector<1x9xf32>
      %c0_190 = arith.constant 0 : index
      %c0_191 = arith.constant 0 : index
      %c0_192 = arith.constant 0 : index
      %225 = vector.load %arg14[%c0_190, %c0_191, %c0_192] : memref<9x9x24xf32, #tpu.memory_space<vmem>>, vector<1x9x24xf32>
      %226 = vector.shape_cast %225 : vector<1x9x24xf32> to vector<9x24xf32>
      %cst_193 = arith.constant dense<0.000000e+00> : vector<1x24xf32>
      %227 = tpu.matmul %224, %226, %cst_193 {dimension_numbers = #tpu.dot_dimension_numbers<[1], [0], [0], [1], [0, 0, 1, 1], [], []>} : vector<1x9xf32>, vector<9x24xf32>, vector<1x24xf32> -> vector<1x24xf32>
      %228 = arith.addf %223, %227 : vector<1x24xf32>
      %229 = vector.extract_strided_slice %222 {offsets = [1, 0], sizes = [1, 9], strides = [1, 1]} : vector<9x9xf32> to vector<1x9xf32>
      %c1_194 = arith.constant 1 : index
      %c0_195 = arith.constant 0 : index
      %c0_196 = arith.constant 0 : index
      %230 = vector.load %arg14[%c1_194, %c0_195, %c0_196] : memref<9x9x24xf32, #tpu.memory_space<vmem>>, vector<1x9x24xf32>
      %231 = vector.shape_cast %230 : vector<1x9x24xf32> to vector<9x24xf32>
      %cst_197 = arith.constant dense<0.000000e+00> : vector<1x24xf32>
      %232 = tpu.matmul %229, %231, %cst_197 {dimension_numbers = #tpu.dot_dimension_numbers<[1], [0], [0], [1], [0, 0, 1, 1], [], []>} : vector<1x9xf32>, vector<9x24xf32>, vector<1x24xf32> -> vector<1x24xf32>
      %233 = arith.addf %228, %232 : vector<1x24xf32>
      %234 = vector.extract_strided_slice %222 {offsets = [2, 0], sizes = [1, 9], strides = [1, 1]} : vector<9x9xf32> to vector<1x9xf32>
      %c2_198 = arith.constant 2 : index
      %c0_199 = arith.constant 0 : index
      %c0_200 = arith.constant 0 : index
      %235 = vector.load %arg14[%c2_198, %c0_199, %c0_200] : memref<9x9x24xf32, #tpu.memory_space<vmem>>, vector<1x9x24xf32>
      %236 = vector.shape_cast %235 : vector<1x9x24xf32> to vector<9x24xf32>
      %cst_201 = arith.constant dense<0.000000e+00> : vector<1x24xf32>
      %237 = tpu.matmul %234, %236, %cst_201 {dimension_numbers = #tpu.dot_dimension_numbers<[1], [0], [0], [1], [0, 0, 1, 1], [], []>} : vector<1x9xf32>, vector<9x24xf32>, vector<1x24xf32> -> vector<1x24xf32>
      %238 = arith.addf %233, %237 : vector<1x24xf32>
      %239 = vector.extract_strided_slice %222 {offsets = [3, 0], sizes = [1, 9], strides = [1, 1]} : vector<9x9xf32> to vector<1x9xf32>
      %c3_202 = arith.constant 3 : index
      %c0_203 = arith.constant 0 : index
      %c0_204 = arith.constant 0 : index
      %240 = vector.load %arg14[%c3_202, %c0_203, %c0_204] : memref<9x9x24xf32, #tpu.memory_space<vmem>>, vector<1x9x24xf32>
      %241 = vector.shape_cast %240 : vector<1x9x24xf32> to vector<9x24xf32>
      %cst_205 = arith.constant dense<0.000000e+00> : vector<1x24xf32>
      %242 = tpu.matmul %239, %241, %cst_205 {dimension_numbers = #tpu.dot_dimension_numbers<[1], [0], [0], [1], [0, 0, 1, 1], [], []>} : vector<1x9xf32>, vector<9x24xf32>, vector<1x24xf32> -> vector<1x24xf32>
      %243 = arith.addf %238, %242 : vector<1x24xf32>
      %244 = vector.extract_strided_slice %222 {offsets = [4, 0], sizes = [1, 9], strides = [1, 1]} : vector<9x9xf32> to vector<1x9xf32>
      %c4_206 = arith.constant 4 : index
      %c0_207 = arith.constant 0 : index
      %c0_208 = arith.constant 0 : index
      %245 = vector.load %arg14[%c4_206, %c0_207, %c0_208] : memref<9x9x24xf32, #tpu.memory_space<vmem>>, vector<1x9x24xf32>
      %246 = vector.shape_cast %245 : vector<1x9x24xf32> to vector<9x24xf32>
      %cst_209 = arith.constant dense<0.000000e+00> : vector<1x24xf32>
      %247 = tpu.matmul %244, %246, %cst_209 {dimension_numbers = #tpu.dot_dimension_numbers<[1], [0], [0], [1], [0, 0, 1, 1], [], []>} : vector<1x9xf32>, vector<9x24xf32>, vector<1x24xf32> -> vector<1x24xf32>
      %248 = arith.addf %243, %247 : vector<1x24xf32>
      %249 = vector.extract_strided_slice %222 {offsets = [5, 0], sizes = [1, 9], strides = [1, 1]} : vector<9x9xf32> to vector<1x9xf32>
      %c5_210 = arith.constant 5 : index
      %c0_211 = arith.constant 0 : index
      %c0_212 = arith.constant 0 : index
      %250 = vector.load %arg14[%c5_210, %c0_211, %c0_212] : memref<9x9x24xf32, #tpu.memory_space<vmem>>, vector<1x9x24xf32>
      %251 = vector.shape_cast %250 : vector<1x9x24xf32> to vector<9x24xf32>
      %cst_213 = arith.constant dense<0.000000e+00> : vector<1x24xf32>
      %252 = tpu.matmul %249, %251, %cst_213 {dimension_numbers = #tpu.dot_dimension_numbers<[1], [0], [0], [1], [0, 0, 1, 1], [], []>} : vector<1x9xf32>, vector<9x24xf32>, vector<1x24xf32> -> vector<1x24xf32>
      %253 = arith.addf %248, %252 : vector<1x24xf32>
      %254 = vector.extract_strided_slice %222 {offsets = [6, 0], sizes = [1, 9], strides = [1, 1]} : vector<9x9xf32> to vector<1x9xf32>
      %c6_214 = arith.constant 6 : index
      %c0_215 = arith.constant 0 : index
      %c0_216 = arith.constant 0 : index
      %255 = vector.load %arg14[%c6_214, %c0_215, %c0_216] : memref<9x9x24xf32, #tpu.memory_space<vmem>>, vector<1x9x24xf32>
      %256 = vector.shape_cast %255 : vector<1x9x24xf32> to vector<9x24xf32>
      %cst_217 = arith.constant dense<0.000000e+00> : vector<1x24xf32>
      %257 = tpu.matmul %254, %256, %cst_217 {dimension_numbers = #tpu.dot_dimension_numbers<[1], [0], [0], [1], [0, 0, 1, 1], [], []>} : vector<1x9xf32>, vector<9x24xf32>, vector<1x24xf32> -> vector<1x24xf32>
      %258 = arith.addf %253, %257 : vector<1x24xf32>
      %259 = vector.extract_strided_slice %222 {offsets = [7, 0], sizes = [1, 9], strides = [1, 1]} : vector<9x9xf32> to vector<1x9xf32>
      %c7 = arith.constant 7 : index
      %c0_218 = arith.constant 0 : index
      %c0_219 = arith.constant 0 : index
      %260 = vector.load %arg14[%c7, %c0_218, %c0_219] : memref<9x9x24xf32, #tpu.memory_space<vmem>>, vector<1x9x24xf32>
      %261 = vector.shape_cast %260 : vector<1x9x24xf32> to vector<9x24xf32>
      %cst_220 = arith.constant dense<0.000000e+00> : vector<1x24xf32>
      %262 = tpu.matmul %259, %261, %cst_220 {dimension_numbers = #tpu.dot_dimension_numbers<[1], [0], [0], [1], [0, 0, 1, 1], [], []>} : vector<1x9xf32>, vector<9x24xf32>, vector<1x24xf32> -> vector<1x24xf32>
      %263 = arith.addf %258, %262 : vector<1x24xf32>
      %264 = vector.extract_strided_slice %222 {offsets = [8, 0], sizes = [1, 9], strides = [1, 1]} : vector<9x9xf32> to vector<1x9xf32>
      %c8 = arith.constant 8 : index
      %c0_221 = arith.constant 0 : index
      %c0_222 = arith.constant 0 : index
      %265 = vector.load %arg14[%c8, %c0_221, %c0_222] : memref<9x9x24xf32, #tpu.memory_space<vmem>>, vector<1x9x24xf32>
      %266 = vector.shape_cast %265 : vector<1x9x24xf32> to vector<9x24xf32>
      %cst_223 = arith.constant dense<0.000000e+00> : vector<1x24xf32>
      %267 = tpu.matmul %264, %266, %cst_223 {dimension_numbers = #tpu.dot_dimension_numbers<[1], [0], [0], [1], [0, 0, 1, 1], [], []>} : vector<1x9xf32>, vector<9x24xf32>, vector<1x24xf32> -> vector<1x24xf32>
      %268 = arith.addf %263, %267 : vector<1x24xf32>
      %269 = arith.index_cast %102 : i32 to index
      %c0_224 = arith.constant 0 : index
      %270 = vector.load %arg30[%269, %c0_224] : memref<2x24xf32, #tpu.memory_space<vmem>>, vector<1x24xf32>
      tpu.vector_store %arg30[%269, %c0_224], %268 {strides = array<i32>} : memref<2x24xf32, #tpu.memory_space<vmem>>, vector<1x24xf32>,
    }
    %c2_i32_0 = arith.constant 2 : i32
    %c0 = arith.constant 0 : index
    %c0_1 = arith.constant 0 : index
    %1 = vector.load %arg1[%c0, %c0_1] : memref<2x18xf32, #tpu.memory_space<vmem>>, vector<2x18xf32>
    %c0_2 = arith.constant 0 : index
    %c0_3 = arith.constant 0 : index
    %2 = vector.load %arg16[%c0_2, %c0_3] : memref<18x32xf32, #tpu.memory_space<vmem>>, vector<18x32xf32>
    %cst = arith.constant dense<0.000000e+00> : vector<2x32xf32>
    %3 = tpu.matmul %1, %2, %cst {dimension_numbers = #tpu.dot_dimension_numbers<[1], [0], [0], [1], [0, 0, 1, 1], [], []>} : vector<2x18xf32>, vector<18x32xf32>, vector<2x32xf32> -> vector<2x32xf32>
    %c0_4 = arith.constant 0 : index
    %c0_5 = arith.constant 0 : index
    %4 = vector.load %arg17[%c0_4, %c0_5] : memref<1x32xf32, #tpu.memory_space<vmem>>, vector<1x32xf32>
    %5 = vector.broadcast %4 : vector<1x32xf32> to vector<2x32xf32>
    %6 = arith.addf %3, %5 : vector<2x32xf32>
    %cst_6 = arith.constant 0.000000e+00 : f32
    %7 = vector.broadcast %cst_6 : f32 to vector<2x32xf32>
    %8 = arith.cmpf ogt, %6, %7 : vector<2x32xf32>
    %cst_7 = arith.constant 0.000000e+00 : f32
    %9 = vector.broadcast %cst_7 : f32 to vector<2x32xf32>
    %10 = arith.minimumf %6, %9 : vector<2x32xf32>
    %11 = math.exp %10 : vector<2x32xf32>
    %cst_8 = arith.constant 1.000000e+00 : f32
    %12 = vector.broadcast %cst_8 : f32 to vector<2x32xf32>
    %13 = arith.subf %11, %12 : vector<2x32xf32>
    %14 = arith.select %8, %6, %13 : vector<2x32xi1>, vector<2x32xf32>
    %c0_9 = arith.constant 0 : index
    %c0_10 = arith.constant 0 : index
    %15 = vector.load %arg30[%c0_9, %c0_10] : memref<2x24xf32, #tpu.memory_space<vmem>>, vector<2x24xf32>
    %c0_11 = arith.constant 0 : index
    %c0_12 = arith.constant 0 : index
    %16 = vector.load %arg15[%c0_11, %c0_12] : memref<1x24xf32, #tpu.memory_space<vmem>>, vector<1x24xf32>
    %17 = vector.broadcast %16 : vector<1x24xf32> to vector<2x24xf32>
    %18 = arith.addf %15, %17 : vector<2x24xf32>
    %cst_13 = arith.constant 0.000000e+00 : f32
    %19 = vector.broadcast %cst_13 : f32 to vector<2x24xf32>
    %20 = arith.cmpf ogt, %18, %19 : vector<2x24xf32>
    %cst_14 = arith.constant 0.000000e+00 : f32
    %21 = vector.broadcast %cst_14 : f32 to vector<2x24xf32>
    %22 = arith.minimumf %18, %21 : vector<2x24xf32>
    %23 = math.exp %22 : vector<2x24xf32>
    %cst_15 = arith.constant 1.000000e+00 : f32
    %24 = vector.broadcast %cst_15 : f32 to vector<2x24xf32>
    %25 = arith.subf %23, %24 : vector<2x24xf32>
    %26 = arith.select %20, %18, %25 : vector<2x24xi1>, vector<2x24xf32>
    %c0_16 = arith.constant 0 : index
    %c0_17 = arith.constant 0 : index
    %27 = vector.load %arg2[%c0_16, %c0_17] : memref<2x5xf32, #tpu.memory_space<vmem>>, vector<2x5xf32>
    %c0_18 = arith.constant 0 : index
    %c0_19 = arith.constant 0 : index
    %28 = vector.load %arg18[%c0_18, %c0_19] : memref<5x5xf32, #tpu.memory_space<vmem>>, vector<5x5xf32>
    %cst_20 = arith.constant dense<0.000000e+00> : vector<2x5xf32>
    %29 = tpu.matmul %27, %28, %cst_20 {dimension_numbers = #tpu.dot_dimension_numbers<[1], [0], [0], [1], [0, 0, 1, 1], [], []>} : vector<2x5xf32>, vector<5x5xf32>, vector<2x5xf32> -> vector<2x5xf32>
    %c0_21 = arith.constant 0 : index
    %c0_22 = arith.constant 0 : index
    %30 = vector.load %arg19[%c0_21, %c0_22] : memref<1x5xf32, #tpu.memory_space<vmem>>, vector<1x5xf32>
    %31 = vector.broadcast %30 : vector<1x5xf32> to vector<2x5xf32>
    %32 = arith.addf %29, %31 : vector<2x5xf32>
    %c0_23 = arith.constant 0 : index
    %c0_24 = arith.constant 0 : index
    %33 = vector.load %arg20[%c0_23, %c0_24] : memref<5x5xf32, #tpu.memory_space<vmem>>, vector<5x5xf32>
    %cst_25 = arith.constant dense<0.000000e+00> : vector<2x5xf32>
    %34 = tpu.matmul %32, %33, %cst_25 {dimension_numbers = #tpu.dot_dimension_numbers<[1], [0], [0], [1], [0, 0, 1, 1], [], []>} : vector<2x5xf32>, vector<5x5xf32>, vector<2x5xf32> -> vector<2x5xf32>
    %c0_26 = arith.constant 0 : index
    %c0_27 = arith.constant 0 : index
    %35 = vector.load %arg21[%c0_26, %c0_27] : memref<1x5xf32, #tpu.memory_space<vmem>>, vector<1x5xf32>
    %36 = vector.broadcast %35 : vector<1x5xf32> to vector<2x5xf32>
    %37 = arith.mulf %32, %36 : vector<2x5xf32>
    %cst_28 = arith.constant dense<0.000000e+00> : vector<2xf32>
    %38 = vector.multi_reduction <add>, %37, %cst_28 [1] : vector<2x5xf32> to vector<2xf32>
    %39 = vector.shape_cast %38 : vector<2xf32> to vector<2x1xf32>
    %c0_29 = arith.constant 0 : index
    %c0_30 = arith.constant 0 : index
    %c0_31 = arith.constant 0 : index
    %40 = vector.load %arg3[%c0_29, %c0_30, %c0_31] : memref<2x3x5xf32, #tpu.memory_space<vmem>>, vector<2x3x5xf32>
    %41 = vector.shape_cast %34 : vector<2x5xf32> to vector<2x1x5xf32>
    %42 = vector.broadcast %41 : vector<2x1x5xf32> to vector<2x3x5xf32>
    %43 = arith.mulf %40, %42 : vector<2x3x5xf32>
    %cst_32 = arith.constant dense<0.000000e+00> : vector<2x3xf32>
    %44 = vector.multi_reduction <add>, %43, %cst_32 [2] : vector<2x3x5xf32> to vector<2x3xf32>
    %45 = vector.broadcast %39 : vector<2x1xf32> to vector<2x3xf32>
    %46 = arith.addf %44, %45 : vector<2x3xf32>
    %cst_33 = arith.constant dense<0xFF800000> : vector<2xf32>
    %47 = vector.multi_reduction <maximumf>, %46, %cst_33 [1] : vector<2x3xf32> to vector<2xf32>
    %48 = vector.shape_cast %47 : vector<2xf32> to vector<2x1xf32>
    %49 = vector.broadcast %48 : vector<2x1xf32> to vector<2x3xf32>
    %50 = arith.subf %46, %49 : vector<2x3xf32>
    %51 = math.exp %50 : vector<2x3xf32>
    %cst_34 = arith.constant dense<0.000000e+00> : vector<2xf32>
    %52 = vector.multi_reduction <add>, %51, %cst_34 [1] : vector<2x3xf32> to vector<2xf32>
    %53 = vector.shape_cast %52 : vector<2xf32> to vector<2x1xf32>
    %54 = tpu.reciprocal %53 {approx = true} : vector<2x1xf32> -> vector<2x1xf32>
    %55 = arith.mulf %53, %54 : vector<2x1xf32>
    %cst_35 = arith.constant 2.000000e+00 : f32
    %56 = vector.broadcast %cst_35 : f32 to vector<2x1xf32>
    %57 = arith.subf %56, %55 : vector<2x1xf32>
    %58 = arith.mulf %54, %57 : vector<2x1xf32>
    %59 = vector.broadcast %58 : vector<2x1xf32> to vector<2x3xf32>
    %60 = arith.mulf %51, %59 : vector<2x3xf32>
    %c0_36 = arith.constant 0 : index
    %c0_37 = arith.constant 0 : index
    %61 = vector.load %arg29[%c0_36, %c0_37] : memref<2x3xf32, #tpu.memory_space<vmem>>, vector<2x3xf32>
    tpu.vector_store %arg29[%c0_36, %c0_37], %60 {strides = array<i32>} : memref<2x3xf32, #tpu.memory_space<vmem>>, vector<2x3xf32>,
    %c0_38 = arith.constant 0 : index
    %c0_39 = arith.constant 0 : index
    %62 = vector.load %arg22[%c0_38, %c0_39] : memref<32x48xf32, #tpu.memory_space<vmem>>, vector<32x48xf32>
    %cst_40 = arith.constant dense<0.000000e+00> : vector<2x48xf32>
    %63 = tpu.matmul %14, %62, %cst_40 {dimension_numbers = #tpu.dot_dimension_numbers<[1], [0], [0], [1], [0, 0, 1, 1], [], []>} : vector<2x32xf32>, vector<32x48xf32>, vector<2x48xf32> -> vector<2x48xf32>
    %c0_41 = arith.constant 0 : index
    %c0_42 = arith.constant 0 : index
    %64 = vector.load %arg23[%c0_41, %c0_42] : memref<24x48xf32, #tpu.memory_space<vmem>>, vector<24x48xf32>
    %cst_43 = arith.constant dense<0.000000e+00> : vector<2x48xf32>
    %65 = tpu.matmul %26, %64, %cst_43 {dimension_numbers = #tpu.dot_dimension_numbers<[1], [0], [0], [1], [0, 0, 1, 1], [], []>} : vector<2x24xf32>, vector<24x48xf32>, vector<2x48xf32> -> vector<2x48xf32>
    %66 = arith.addf %63, %65 : vector<2x48xf32>
    %c0_44 = arith.constant 0 : index
    %c0_45 = arith.constant 0 : index
    %67 = vector.load %arg24[%c0_44, %c0_45] : memref<3x48xf32, #tpu.memory_space<vmem>>, vector<3x48xf32>
    %cst_46 = arith.constant dense<0.000000e+00> : vector<2x48xf32>
    %68 = tpu.matmul %60, %67, %cst_46 {dimension_numbers = #tpu.dot_dimension_numbers<[1], [0], [0], [1], [0, 0, 1, 1], [], []>} : vector<2x3xf32>, vector<3x48xf32>, vector<2x48xf32> -> vector<2x48xf32>
    %69 = arith.addf %66, %68 : vector<2x48xf32>
    %c0_47 = arith.constant 0 : index
    %c0_48 = arith.constant 0 : index
    %70 = vector.load %arg25[%c0_47, %c0_48] : memref<1x48xf32, #tpu.memory_space<vmem>>, vector<1x48xf32>
    %71 = vector.broadcast %70 : vector<1x48xf32> to vector<2x48xf32>
    %72 = arith.addf %69, %71 : vector<2x48xf32>
    %cst_49 = arith.constant 0.000000e+00 : f32
    %73 = vector.broadcast %cst_49 : f32 to vector<2x48xf32>
    %74 = arith.cmpf ogt, %72, %73 : vector<2x48xf32>
    %cst_50 = arith.constant 0.000000e+00 : f32
    %75 = vector.broadcast %cst_50 : f32 to vector<2x48xf32>
    %76 = arith.minimumf %72, %75 : vector<2x48xf32>
    %77 = math.exp %76 : vector<2x48xf32>
    %cst_51 = arith.constant 1.000000e+00 : f32
    %78 = vector.broadcast %cst_51 : f32 to vector<2x48xf32>
    %79 = arith.subf %77, %78 : vector<2x48xf32>
    %80 = arith.select %74, %72, %79 : vector<2x48xi1>, vector<2x48xf32>
    %c0_52 = arith.constant 0 : index
    %c0_53 = arith.constant 0 : index
    %81 = vector.load %arg26[%c0_52, %c0_53] : memref<48x3xf32, #tpu.memory_space<vmem>>, vector<48x3xf32>
    %cst_54 = arith.constant dense<0.000000e+00> : vector<2x3xf32>
    %82 = tpu.matmul %80, %81, %cst_54 {dimension_numbers = #tpu.dot_dimension_numbers<[1], [0], [0], [1], [0, 0, 1, 1], [], []>} : vector<2x48xf32>, vector<48x3xf32>, vector<2x3xf32> -> vector<2x3xf32>
    %c0_55 = arith.constant 0 : index
    %c0_56 = arith.constant 0 : index
    %83 = vector.load %arg27[%c0_55, %c0_56] : memref<1x3xf32, #tpu.memory_space<vmem>>, vector<1x3xf32>
    %84 = vector.broadcast %83 : vector<1x3xf32> to vector<2x3xf32>
    %85 = arith.addf %82, %84 : vector<2x3xf32>
    %cst_57 = arith.constant dense<0xFF800000> : vector<2xf32>
    %86 = vector.multi_reduction <maximumf>, %85, %cst_57 [1] : vector<2x3xf32> to vector<2xf32>
    %87 = vector.shape_cast %86 : vector<2xf32> to vector<2x1xf32>
    %88 = vector.broadcast %87 : vector<2x1xf32> to vector<2x3xf32>
    %89 = arith.subf %85, %88 : vector<2x3xf32>
    %90 = math.exp %89 : vector<2x3xf32>
    %cst_58 = arith.constant dense<0.000000e+00> : vector<2xf32>
    %91 = vector.multi_reduction <add>, %90, %cst_58 [1] : vector<2x3xf32> to vector<2xf32>
    %92 = vector.shape_cast %91 : vector<2xf32> to vector<2x1xf32>
    %93 = tpu.reciprocal %92 {approx = true} : vector<2x1xf32> -> vector<2x1xf32>
    %94 = arith.mulf %92, %93 : vector<2x1xf32>
    %cst_59 = arith.constant 2.000000e+00 : f32
    %95 = vector.broadcast %cst_59 : f32 to vector<2x1xf32>
    %96 = arith.subf %95, %94 : vector<2x1xf32>
    %97 = arith.mulf %93, %96 : vector<2x1xf32>
    %98 = vector.broadcast %97 : vector<2x1xf32> to vector<2x3xf32>
    %99 = arith.mulf %90, %98 : vector<2x3xf32>
    %c0_60 = arith.constant 0 : index
    %c0_61 = arith.constant 0 : index
    %100 = vector.load %arg28[%c0_60, %c0_61] : memref<2x3xf32, #tpu.memory_space<vmem>>, vector<2x3xf32>
    tpu.vector_store %arg28[%c0_60, %c0_61], %99 {strides = array<i32>} : memref<2x3xf32, #tpu.memory_space<vmem>>, vector<2x3xf32>,
    return
  }
  func.func @transform_0(%arg0: i32) -> (i32, i32) {
    %c0_i32 = arith.constant 0 : i32
    %c0_i32_0 = arith.constant 0 : i32
    return %arg0, %c0_i32 : i32, i32
  }
  func.func @transform_1(%arg0: i32) -> (i32, i32) {
    %c0_i32 = arith.constant 0 : i32
    %c0_i32_0 = arith.constant 0 : i32
    return %arg0, %c0_i32 : i32, i32
  }
  func.func @transform_2(%arg0: i32) -> (i32, i32, i32) {
    %c0_i32 = arith.constant 0 : i32
    %c0_i32_0 = arith.constant 0 : i32
    %c0_i32_1 = arith.constant 0 : i32
    return %arg0, %c0_i32, %c0_i32_0 : i32, i32, i32
  }
  func.func @transform_3(%arg0: i32) -> (i32, i32, i32) {
    %c0_i32 = arith.constant 0 : i32
    %c0_i32_0 = arith.constant 0 : i32
    %c0_i32_1 = arith.constant 0 : i32
    return %arg0, %c0_i32, %c0_i32_0 : i32, i32, i32
  }
  func.func @transform_4(%arg0: i32) -> (i32, i32, i32) {
    %c0_i32 = arith.constant 0 : i32
    %c0_i32_0 = arith.constant 0 : i32
    %c0_i32_1 = arith.constant 0 : i32
    %c0_i32_2 = arith.constant 0 : i32
    return %c0_i32, %c0_i32_0, %c0_i32_1 : i32, i32, i32
  }
  func.func @transform_5(%arg0: i32) -> (i32, i32, i32) {
    %c0_i32 = arith.constant 0 : i32
    %c0_i32_0 = arith.constant 0 : i32
    %c0_i32_1 = arith.constant 0 : i32
    %c0_i32_2 = arith.constant 0 : i32
    return %c0_i32, %c0_i32_0, %c0_i32_1 : i32, i32, i32
  }
  func.func @transform_6(%arg0: i32) -> (i32, i32) {
    %c0_i32 = arith.constant 0 : i32
    %c0_i32_0 = arith.constant 0 : i32
    %c0_i32_1 = arith.constant 0 : i32
    return %c0_i32, %c0_i32_0 : i32, i32
  }
  func.func @transform_7(%arg0: i32) -> (i32, i32, i32) {
    %c0_i32 = arith.constant 0 : i32
    %c0_i32_0 = arith.constant 0 : i32
    %c0_i32_1 = arith.constant 0 : i32
    %c0_i32_2 = arith.constant 0 : i32
    return %c0_i32, %c0_i32_0, %c0_i32_1 : i32, i32, i32
  }
  func.func @transform_8(%arg0: i32) -> (i32, i32, i32) {
    %c0_i32 = arith.constant 0 : i32
    %c0_i32_0 = arith.constant 0 : i32
    %c0_i32_1 = arith.constant 0 : i32
    %c0_i32_2 = arith.constant 0 : i32
    return %c0_i32, %c0_i32_0, %c0_i32_1 : i32, i32, i32
  }
  func.func @transform_9(%arg0: i32) -> (i32, i32) {
    %c0_i32 = arith.constant 0 : i32
    %c0_i32_0 = arith.constant 0 : i32
    %c0_i32_1 = arith.constant 0 : i32
    return %c0_i32, %c0_i32_0 : i32, i32
  }
  func.func @transform_10(%arg0: i32) -> (i32, i32, i32) {
    %c0_i32 = arith.constant 0 : i32
    %c0_i32_0 = arith.constant 0 : i32
    %c0_i32_1 = arith.constant 0 : i32
    %c0_i32_2 = arith.constant 0 : i32
    return %c0_i32, %c0_i32_0, %c0_i32_1 : i32, i32, i32
  }
  func.func @transform_11(%arg0: i32) -> (i32, i32, i32) {
    %c0_i32 = arith.constant 0 : i32
    %c0_i32_0 = arith.constant 0 : i32
    %c0_i32_1 = arith.constant 0 : i32
    %c0_i32_2 = arith.constant 0 : i32
    return %c0_i32, %c0_i32_0, %c0_i32_1 : i32, i32, i32
  }
  func.func @transform_12(%arg0: i32) -> (i32, i32) {
    %c0_i32 = arith.constant 0 : i32
    %c0_i32_0 = arith.constant 0 : i32
    %c0_i32_1 = arith.constant 0 : i32
    return %c0_i32, %c0_i32_0 : i32, i32
  }
  func.func @transform_13(%arg0: i32) -> (i32, i32, i32) {
    %c0_i32 = arith.constant 0 : i32
    %c0_i32_0 = arith.constant 0 : i32
    %c0_i32_1 = arith.constant 0 : i32
    %c0_i32_2 = arith.constant 0 : i32
    return %c0_i32, %c0_i32_0, %c0_i32_1 : i32, i32, i32
  }
  func.func @transform_14(%arg0: i32) -> (i32, i32) {
    %c0_i32 = arith.constant 0 : i32
    %c0_i32_0 = arith.constant 0 : i32
    %c0_i32_1 = arith.constant 0 : i32
    return %c0_i32, %c0_i32_0 : i32, i32
  }
  func.func @transform_15(%arg0: i32) -> (i32, i32) {
    %c0_i32 = arith.constant 0 : i32
    %c0_i32_0 = arith.constant 0 : i32
    %c0_i32_1 = arith.constant 0 : i32
    return %c0_i32, %c0_i32_0 : i32, i32
  }
  func.func @transform_16(%arg0: i32) -> (i32, i32) {
    %c0_i32 = arith.constant 0 : i32
    %c0_i32_0 = arith.constant 0 : i32
    %c0_i32_1 = arith.constant 0 : i32
    return %c0_i32, %c0_i32_0 : i32, i32
  }
  func.func @transform_17(%arg0: i32) -> (i32, i32) {
    %c0_i32 = arith.constant 0 : i32
    %c0_i32_0 = arith.constant 0 : i32
    %c0_i32_1 = arith.constant 0 : i32
    return %c0_i32, %c0_i32_0 : i32, i32
  }
  func.func @transform_18(%arg0: i32) -> (i32, i32) {
    %c0_i32 = arith.constant 0 : i32
    %c0_i32_0 = arith.constant 0 : i32
    %c0_i32_1 = arith.constant 0 : i32
    return %c0_i32, %c0_i32_0 : i32, i32
  }
  func.func @transform_19(%arg0: i32) -> (i32, i32) {
    %c0_i32 = arith.constant 0 : i32
    %c0_i32_0 = arith.constant 0 : i32
    %c0_i32_1 = arith.constant 0 : i32
    return %c0_i32, %c0_i32_0 : i32, i32
  }
  func.func @transform_20(%arg0: i32) -> (i32, i32) {
    %c0_i32 = arith.constant 0 : i32
    %c0_i32_0 = arith.constant 0 : i32
    %c0_i32_1 = arith.constant 0 : i32
    return %c0_i32, %c0_i32_0 : i32, i32
  }
  func.func @transform_21(%arg0: i32) -> (i32, i32) {
    %c0_i32 = arith.constant 0 : i32
    %c0_i32_0 = arith.constant 0 : i32
    %c0_i32_1 = arith.constant 0 : i32
    return %c0_i32, %c0_i32_0 : i32, i32
  }
  func.func @transform_22(%arg0: i32) -> (i32, i32) {
    %c0_i32 = arith.constant 0 : i32
    %c0_i32_0 = arith.constant 0 : i32
    %c0_i32_1 = arith.constant 0 : i32
    return %c0_i32, %c0_i32_0 : i32, i32
  }
  func.func @transform_23(%arg0: i32) -> (i32, i32) {
    %c0_i32 = arith.constant 0 : i32
    %c0_i32_0 = arith.constant 0 : i32
    %c0_i32_1 = arith.constant 0 : i32
    return %c0_i32, %c0_i32_0 : i32, i32
  }
  func.func @transform_24(%arg0: i32) -> (i32, i32) {
    %c0_i32 = arith.constant 0 : i32
    %c0_i32_0 = arith.constant 0 : i32
    %c0_i32_1 = arith.constant 0 : i32
    return %c0_i32, %c0_i32_0 : i32, i32
  }
  func.func @transform_25(%arg0: i32) -> (i32, i32) {
    %c0_i32 = arith.constant 0 : i32
    %c0_i32_0 = arith.constant 0 : i32
    %c0_i32_1 = arith.constant 0 : i32
    return %c0_i32, %c0_i32_0 : i32, i32
  }
  func.func @transform_26(%arg0: i32) -> (i32, i32) {
    %c0_i32 = arith.constant 0 : i32
    %c0_i32_0 = arith.constant 0 : i32
    %c0_i32_1 = arith.constant 0 : i32
    return %c0_i32, %c0_i32_0 : i32, i32
  }
  func.func @transform_27(%arg0: i32) -> (i32, i32) {
    %c0_i32 = arith.constant 0 : i32
    %c0_i32_0 = arith.constant 0 : i32
    return %arg0, %c0_i32 : i32, i32
  }
  func.func @transform_28(%arg0: i32) -> (i32, i32) {
    %c0_i32 = arith.constant 0 : i32
    %c0_i32_0 = arith.constant 0 : i32
    return %arg0, %c0_i32 : i32, i32
  }
}

</mosaic_0001>

<llo_original>
// kernel: dqn_forward.1
$region0: #{dqn_forward.1}
  #allocation0 [shape = 'u32[]', space=smem, size = 0x4, offset = 0x4, fixed_abs, tag = 'smem constant byte address 0x4 - core index']
  #allocation1 [shape = 'u32[144,128]{1,0:T(1,128)}', space=vmem, size = 0x12000, scoped, tag = 'internal scratch']
  #allocation2 [shape = 'f32[2,24]{1,0:T(2,128)}', space=vmem, size = 0x400, scoped, tag = 'scratch operand']
  %s0 = inlined_call_operand.vmem [shape: f32[2,18], index: 0, kind: input, shape index: {}]
  %s1 = inlined_call_operand.vmem [shape: f32[2,5], index: 1, kind: input, shape index: {}]
  %s2 = inlined_call_operand.vmem [shape: f32[2,3,5], index: 2, kind: input, shape index: {}]
  %s3 = inlined_call_operand.vmem [shape: f32[2,101,101], index: 3, kind: input, shape index: {}]
  %s4 = inlined_call_operand.vmem [shape: f32[7,33,101], index: 4, kind: input, shape index: {}]
  %s5 = inlined_call_operand.vmem [shape: f32[7,101,99], index: 5, kind: input, shape index: {}]
  %s6 = inlined_call_operand.vmem [shape: f32[1,99], index: 6, kind: input, shape index: {}]
  %s7 = inlined_call_operand.vmem [shape: f32[5,11,33], index: 7, kind: input, shape index: {}]
  %s8 = inlined_call_operand.vmem [shape: f32[5,99,33], index: 8, kind: input, shape index: {}]
  %s9 = inlined_call_operand.vmem [shape: f32[1,33], index: 9, kind: input, shape index: {}]
  %s10 = inlined_call_operand.vmem [shape: f32[3,9,11], index: 10, kind: input, shape index: {}]
  %s11 = inlined_call_operand.vmem [shape: f32[3,33,9], index: 11, kind: input, shape index: {}]
  %s12 = inlined_call_operand.vmem [shape: f32[1,9], index: 12, kind: input, shape index: {}]
  %s13 = inlined_call_operand.vmem [shape: f32[9,9,24], index: 13, kind: input, shape index: {}]
  %s14 = inlined_call_operand.vmem [shape: f32[1,24], index: 14, kind: input, shape index: {}]
  %s15 = inlined_call_operand.vmem [shape: f32[18,32], index: 15, kind: input, shape index: {}]
  %s16 = inlined_call_operand.vmem [shape: f32[1,32], index: 16, kind: input, shape index: {}]
  %s17 = inlined_call_operand.vmem [shape: f32[5,5], index: 17, kind: input, shape index: {}]
  %s18 = inlined_call_operand.vmem [shape: f32[1,5], index: 18, kind: input, shape index: {}]
  %s19 = inlined_call_operand.vmem [shape: f32[5,5], index: 19, kind: input, shape index: {}]
  %s20 = inlined_call_operand.vmem [shape: f32[1,5], index: 20, kind: input, shape index: {}]
  %s21 = inlined_call_operand.vmem [shape: f32[32,48], index: 21, kind: input, shape index: {}]
  %s22 = inlined_call_operand.vmem [shape: f32[24,48], index: 22, kind: input, shape index: {}]
  %s23 = inlined_call_operand.vmem [shape: f32[3,48], index: 23, kind: input, shape index: {}]
  %s24 = inlined_call_operand.vmem [shape: f32[1,48], index: 24, kind: input, shape index: {}]
  %s25 = inlined_call_operand.vmem [shape: f32[48,3], index: 25, kind: input, shape index: {}]
  %s26 = inlined_call_operand.vmem [shape: f32[1,3], index: 26, kind: input, shape index: {}]
  %s27 = inlined_call_operand.hbm [shape: f32[2,3], index: 27, kind: output, shape index: {0}]
  %s28 = inlined_call_operand.hbm [shape: f32[2,3], index: 28, kind: output, shape index: {1}]
  %29 = xla_tuple %s27, %s28
  %s30 = sld [smem:[#allocation0]]
  $region133: #{dqn_forward.1} parent=0
    _
  %s32 = ssub.s32 1, %s30
  %s33 = scalar_select 0, %s32, %s30
  $region1: #{dqn_forward.1} parent=0
    #allocation3 [shape = 'u8[1024]{0}', space=vmem, size = 0x400, scoped, tag = 'output window, operand 0, single buffered']
    #allocation4 [shape = 's32[1]{0}', space=sflag, size = 0x4, scoped, tag = 'scoped memory for dqn_forward.1']
    #allocation5 [shape = 'u8[1024]{0}', space=vmem, size = 0x400, scoped, tag = 'output window, operand 1, single buffered']
    #allocation6 [shape = 's32[1]{0}', space=sflag, size = 0x4, scoped, tag = 'scoped memory for dqn_forward.1']
    %34 = vsyncpa [#allocation4], 0
    %35 = vsyncpa [#allocation6], 0
    // Predicated region
    $region2: #{dqn_forward.1} parent=1 // pred_check
      _
    $region3: #{dqn_forward.1} parent=1 // pred_check_branch
      %37 = sbr.rel (0) target = $region5
    $region4: #{dqn_forward.1} parent=1 // pred_region
      _
    $region5: #{dqn_forward.1} parent=1 // pred_fallthru
      _
    // Predicated region
    $region6: #{dqn_forward.1} parent=1 // pred_check
      _
    $region7: #{dqn_forward.1} parent=1 // pred_check_branch
      %39 = sbr.rel (0) target = $region9
    $region8: #{dqn_forward.1} parent=1 // pred_region
      _
    $region9: #{dqn_forward.1} parent=1 // pred_fallthru
      _
    // Predicated region
    $region10: #{dqn_forward.1} parent=1 // pred_check
      _
    $region11: #{dqn_forward.1} parent=1 // pred_check_branch
      %41 = sbr.rel (0) target = $region13
    $region12: #{dqn_forward.1} parent=1 // pred_region
      _
    $region13: #{dqn_forward.1} parent=1 // pred_fallthru
      _
    // Predicated region
    $region14: #{dqn_forward.1} parent=1 // pred_check
      _
    $region15: #{dqn_forward.1} parent=1 // pred_check_branch
      %43 = sbr.rel (0) target = $region17
    $region16: #{dqn_forward.1} parent=1 // pred_region
      _
    $region17: #{dqn_forward.1} parent=1 // pred_fallthru
      _
    // Predicated region
    $region18: #{dqn_forward.1} parent=1 // pred_check
      _
    $region19: #{dqn_forward.1} parent=1 // pred_check_branch
      %45 = sbr.rel (0) target = $region21
    $region20: #{dqn_forward.1} parent=1 // pred_region
      _
    $region21: #{dqn_forward.1} parent=1 // pred_fallthru
      _
    // Predicated region
    $region22: #{dqn_forward.1} parent=1 // pred_check
      _
    $region23: #{dqn_forward.1} parent=1 // pred_check_branch
      %47 = sbr.rel (0) target = $region25
    $region24: #{dqn_forward.1} parent=1 // pred_region
      _
    $region25: #{dqn_forward.1} parent=1 // pred_fallthru
      _
    // Predicated region
    $region26: #{dqn_forward.1} parent=1 // pred_check
      _
    $region27: #{dqn_forward.1} parent=1 // pred_check_branch
      %49 = sbr.rel (0) target = $region29
    $region28: #{dqn_forward.1} parent=1 // pred_region
      _
    $region29: #{dqn_forward.1} parent=1 // pred_fallthru
      _
    // Predicated region
    $region30: #{dqn_forward.1} parent=1 // pred_check
      _
    $region31: #{dqn_forward.1} parent=1 // pred_check_branch
      %51 = sbr.rel (0) target = $region33
    $region32: #{dqn_forward.1} parent=1 // pred_region
      _
    $region33: #{dqn_forward.1} parent=1 // pred_fallthru
      _
    // Predicated region
    $region34: #{dqn_forward.1} parent=1 // pred_check
      _
    $region35: #{dqn_forward.1} parent=1 // pred_check_branch
      %53 = sbr.rel (0) target = $region37
    $region36: #{dqn_forward.1} parent=1 // pred_region
      _
    $region37: #{dqn_forward.1} parent=1 // pred_fallthru
      _
    // Predicated region
    $region38: #{dqn_forward.1} parent=1 // pred_check
      _
    $region39: #{dqn_forward.1} parent=1 // pred_check_branch
      %55 = sbr.rel (0) target = $region41
    $region40: #{dqn_forward.1} parent=1 // pred_region
      _
    $region41: #{dqn_forward.1} parent=1 // pred_fallthru
      _
    // Predicated region
    $region42: #{dqn_forward.1} parent=1 // pred_check
      _
    $region43: #{dqn_forward.1} parent=1 // pred_check_branch
      %57 = sbr.rel (0) target = $region45
    $region44: #{dqn_forward.1} parent=1 // pred_region
      _
    $region45: #{dqn_forward.1} parent=1 // pred_fallthru
      _
    // Predicated region
    $region46: #{dqn_forward.1} parent=1 // pred_check
      _
    $region47: #{dqn_forward.1} parent=1 // pred_check_branch
      %59 = sbr.rel (0) target = $region49
    $region48: #{dqn_forward.1} parent=1 // pred_region
      _
    $region49: #{dqn_forward.1} parent=1 // pred_fallthru
      _
    // Predicated region
    $region50: #{dqn_forward.1} parent=1 // pred_check
      _
    $region51: #{dqn_forward.1} parent=1 // pred_check_branch
      %61 = sbr.rel (0) target = $region53
    $region52: #{dqn_forward.1} parent=1 // pred_region
      _
    $region53: #{dqn_forward.1} parent=1 // pred_fallthru
      _
    // Predicated region
    $region54: #{dqn_forward.1} parent=1 // pred_check
      _
    $region55: #{dqn_forward.1} parent=1 // pred_check_branch
      %63 = sbr.rel (0) target = $region57
    $region56: #{dqn_forward.1} parent=1 // pred_region
      _
    $region57: #{dqn_forward.1} parent=1 // pred_fallthru
      _
    // Predicated region
    $region58: #{dqn_forward.1} parent=1 // pred_check
      _
    $region59: #{dqn_forward.1} parent=1 // pred_check_branch
      %65 = sbr.rel (0) target = $region61
    $region60: #{dqn_forward.1} parent=1 // pred_region
      _
    $region61: #{dqn_forward.1} parent=1 // pred_fallthru
      _
    // Predicated region
    $region62: #{dqn_forward.1} parent=1 // pred_check
      _
    $region63: #{dqn_forward.1} parent=1 // pred_check_branch
      %67 = sbr.rel (0) target = $region65
    $region64: #{dqn_forward.1} parent=1 // pred_region
      _
    $region65: #{dqn_forward.1} parent=1 // pred_fallthru
      _
    // Predicated region
    $region66: #{dqn_forward.1} parent=1 // pred_check
      _
    $region67: #{dqn_forward.1} parent=1 // pred_check_branch
      %69 = sbr.rel (0) target = $region69
    $region68: #{dqn_forward.1} parent=1 // pred_region
      _
    $region69: #{dqn_forward.1} parent=1 // pred_fallthru
      _
    // Predicated region
    $region70: #{dqn_forward.1} parent=1 // pred_check
      _
    $region71: #{dqn_forward.1} parent=1 // pred_check_branch
      %71 = sbr.rel (0) target = $region73
    $region72: #{dqn_forward.1} parent=1 // pred_region
      _
    $region73: #{dqn_forward.1} parent=1 // pred_fallthru
      _
    // Predicated region
    $region74: #{dqn_forward.1} parent=1 // pred_check
      _
    $region75: #{dqn_forward.1} parent=1 // pred_check_branch
      %73 = sbr.rel (0) target = $region77
    $region76: #{dqn_forward.1} parent=1 // pred_region
      _
    $region77: #{dqn_forward.1} parent=1 // pred_fallthru
      _
    // Predicated region
    $region78: #{dqn_forward.1} parent=1 // pred_check
      _
    $region79: #{dqn_forward.1} parent=1 // pred_check_branch
      %75 = sbr.rel (0) target = $region81
    $region80: #{dqn_forward.1} parent=1 // pred_region
      _
    $region81: #{dqn_forward.1} parent=1 // pred_fallthru
      _
    // Predicated region
    $region82: #{dqn_forward.1} parent=1 // pred_check
      _
    $region83: #{dqn_forward.1} parent=1 // pred_check_branch
      %77 = sbr.rel (0) target = $region85
    $region84: #{dqn_forward.1} parent=1 // pred_region
      _
    $region85: #{dqn_forward.1} parent=1 // pred_fallthru
      _
    // Predicated region
    $region86: #{dqn_forward.1} parent=1 // pred_check
      _
    $region87: #{dqn_forward.1} parent=1 // pred_check_branch
      %79 = sbr.rel (0) target = $region89
    $region88: #{dqn_forward.1} parent=1 // pred_region
      _
    $region89: #{dqn_forward.1} parent=1 // pred_fallthru
      _
    // Predicated region
    $region90: #{dqn_forward.1} parent=1 // pred_check
      _
    $region91: #{dqn_forward.1} parent=1 // pred_check_branch
      %81 = sbr.rel (0) target = $region93
    $region92: #{dqn_forward.1} parent=1 // pred_region
      _
    $region93: #{dqn_forward.1} parent=1 // pred_fallthru
      _
    // Predicated region
    $region94: #{dqn_forward.1} parent=1 // pred_check
      _
    $region95: #{dqn_forward.1} parent=1 // pred_check_branch
      %83 = sbr.rel (0) target = $region97
    $region96: #{dqn_forward.1} parent=1 // pred_region
      _
    $region97: #{dqn_forward.1} parent=1 // pred_fallthru
      _
    // Predicated region
    $region98: #{dqn_forward.1} parent=1 // pred_check
      _
    $region99: #{dqn_forward.1} parent=1 // pred_check_branch
      %85 = sbr.rel (0) target = $region101
    $region100: #{dqn_forward.1} parent=1 // pred_region
      _
    $region101: #{dqn_forward.1} parent=1 // pred_fallthru
      _
    // Predicated region
    $region102: #{dqn_forward.1} parent=1 // pred_check
      _
    $region103: #{dqn_forward.1} parent=1 // pred_check_branch
      %87 = sbr.rel (0) target = $region105
    $region104: #{dqn_forward.1} parent=1 // pred_region
      _
    $region105: #{dqn_forward.1} parent=1 // pred_fallthru
      _
    // Predicated region
    $region106: #{dqn_forward.1} parent=1 // pred_check
      _
    $region107: #{dqn_forward.1} parent=1 // pred_check_branch
      %89 = sbr.rel (0) target = $region109
    $region108: #{dqn_forward.1} parent=1 // pred_region
      _
    $region109: #{dqn_forward.1} parent=1 // pred_fallthru
      _
    loop: start=0, step=1, limit=2
    $region110: #{dqn_forward.1} parent=1 // loop_pre_header
      _
    $region111: #{dqn_forward.1} parent=1 // loop_header
      %s91 = sphi 0, %s95
      %p92 = scmp.ge.s32.totalorder %s91, 2
    $region112: #{dqn_forward.1} parent=1 // loop_header_branch
      %94 = sbr.rel (%p92) target = $region116
    $region113: #{dqn_forward.1} parent=1 // loop_body
      %s96 = smul.u32 %s91, 104
      %s97 = scalar_lea.vmem %s3, %s96
      %v98 = vld [vmem:[%s97] sm:$0xff]
      %v99 = vld [vmem:[%s97 + $0x8] sm:$0xff]
      %v100 = vld [vmem:[%s97 + $0x10] sm:$0xff]
      %v101 = vld [vmem:[%s97 + $0x18] sm:$0xff]
      %v102 = vld [vmem:[%s97 + $0x20] sm:$0xff]
      %v103 = vld [vmem:[%s97 + $0x28] sm:$0xff]
      %v104 = vld [vmem:[%s97 + $0x30] sm:$0xff]
      %v105 = vld [vmem:[%s97 + $0x38] sm:$0xff]
      %v106 = vld [vmem:[%s97 + $0x40] sm:$0xff]
      %v107 = vld [vmem:[%s97 + $0x48] sm:$0xff]
      %v108 = vld [vmem:[%s97 + $0x50] sm:$0xff]
      %v109 = vld [vmem:[%s97 + $0x58] sm:$0xff]
      %v110 = vld [vmem:[%s97 + $0x60] sm:$0x1f]
      %v111 = vld [vmem:[%s4] sm:$0xff]
      %v112 = vld [vmem:[%s4 + $0x8] sm:$0xff]
      %v113 = vld [vmem:[%s4 + $0x10] sm:$0xff]
      %v114 = vld [vmem:[%s4 + $0x18] sm:$0xff]
      %v115 = vld [vmem:[%s4 + $0x20] sm:$0x1]
      %vm116 = vcmask 826368
      %v118 = vsel %vm116, %v111, 0
      %v121 = vsel %vm116, %v112, 0
      %v124 = vsel %vm116, %v113, 0
      %v127 = vsel %vm116, %v114, 0
      %v130 = vsel %vm116, %v115, 0
      %vm132 = vcmask 1044480
      %v134 = vsel %vm132, %v110, 0
      %136 = vmatprep.subr.mxu0 0.0
      %137 = vmatpush1.msra.mxu0 0.0
      %138 = vmatprep.subr.mxu0 0.0
      %139 = vmatpush1.msra.mxu0 0.0
      %140 = vmatprep.subr.mxu0 0.0
      %141 = vmatpush1.msra.mxu0 0.0
      %142 = vmatprep.subr.mxu0 0.0
      %143 = vmatpush1.msra.mxu0 %v134
      %144 = vmatprep.subr.mxu0 0.0
      %145 = vmatpush1.msra.mxu0 %v109
      %146 = vmatprep.subr.mxu0 0.0
      %147 = vmatpush1.msra.mxu0 %v108
      %148 = vmatprep.subr.mxu0 0.0
      %149 = vmatpush1.msra.mxu0 %v107
      %150 = vmatprep.subr.mxu0 0.0
      %151 = vmatpush1.msra.mxu0 %v106
      %152 = vmatprep.subr.mxu0 0.0
      %153 = vmatpush1.msra.mxu0 %v105
      %154 = vmatprep.subr.mxu0 0.0
      %155 = vmatpush1.msra.mxu0 %v104
      %156 = vmatprep.subr.mxu0 0.0
      %157 = vmatpush1.msra.mxu0 %v103
      %158 = vmatprep.subr.mxu0 0.0
      %159 = vmatpush1.msra.mxu0 %v102
      %160 = vmatprep.subr.mxu0 0.0
      %161 = vmatpush1.msra.mxu0 %v101
      %162 = vmatprep.subr.mxu0 0.0
      %163 = vmatpush1.msra.mxu0 %v100
      %164 = vmatprep.subr.mxu0 0.0
      %165 = vmatpush1.msra.mxu0 %v99
      %166 = vmatprep.subr.mxu0 0.0
      %167 = vmatpush1.msra.mxu0 %v98
      %168 = vmatprep.subr.mxu0 0.0
      %169 = vmatpush2.msra.mxu0 0.0
      %170 = vmatprep.subr.mxu0 0.0
      %171 = vmatpush2.msra.mxu0 0.0
      %172 = vmatprep.subr.mxu0 0.0
      %173 = vmatpush2.msra.mxu0 0.0
      %174 = vmatprep.subr.mxu0 0.0
      %175 = vmatpush2.msra.mxu0 0.0
      %176 = vmatprep.subr.mxu0 0.0
      %177 = vmatpush2.msra.mxu0 0.0
      %178 = vmatprep.subr.mxu0 0.0
      %179 = vmatpush2.msra.mxu0 0.0
      %180 = vmatprep.subr.mxu0 0.0
      %181 = vmatpush2.msra.mxu0 0.0
      %182 = vmatprep.subr.mxu0 0.0
      %183 = vmatpush2.msra.mxu0 0.0
      %184 = vmatprep.subr.mxu0 0.0
      %185 = vmatpush2.msra.mxu0 0.0
      %186 = vmatprep.subr.mxu0 0.0
      %187 = vmatpush2.msra.mxu0 0.0
      %188 = vmatprep.subr.mxu0 0.0
      %189 = vmatpush2.msra.mxu0 0.0
      %190 = vmatprep.subr.mxu0 0.0
      %191 = vmatpush2.msra.mxu0 0.0
      %192 = vmatprep.subr.mxu0 0.0
      %193 = vmatpush2.msra.mxu0 0.0
      %194 = vmatprep.subr.mxu0 0.0
      %195 = vmatpush2.msra.mxu0 0.0
      %196 = vmatprep.subr.mxu0 0.0
      %197 = vmatpush2.msra.mxu0 0.0
      %198 = vmatprep.subr.mxu0 0.0
      %199 = vmatpush2.msra.mxu0 0.0
      %200 = vmatprep.mubr.f32.mxu0 0.0
      %201 = vmatmul.mubr.f32.gmra.mxu0 %v118
      %v202 = vpop.f32.mrf.mxu0
      %v203 = vadd.f32 0.0, %v202
      %v204 = vpop.f32.mrf.mxu0
      %205 = vmatprep.mubr.f32.mxu0 0.0
      %206 = vmatmul.mubr.f32.gmra.mxu0 %v121
      %v207 = vpop.f32.mrf.mxu0
      %v208 = vadd.f32 0.0, %v207
      %v209 = vpop.f32.mrf.mxu0
      %210 = vmatprep.mubr.f32.mxu0 0.0
      %211 = vmatmul.mubr.f32.gmra.mxu0 %v124
      %v212 = vpop.f32.mrf.mxu0
      %v213 = vadd.f32 0.0, %v212
      %v214 = vpop.f32.mrf.mxu0
      %215 = vmatprep.mubr.f32.mxu0 0.0
      %216 = vmatmul.mubr.f32.gmra.mxu0 %v127
      %v217 = vpop.f32.mrf.mxu0
      %v218 = vadd.f32 0.0, %v217
      %v219 = vpop.f32.mrf.mxu0
      %220 = vmatprep.mubr.f32.mxu0 0.0
      %221 = vmatmul.mubr.f32.gmra.mxu0 %v130
      %v222 = vpop.f32.mrf.mxu0
      %v223 = vadd.f32 0.0, %v222
      %v224 = vpop.f32.mrf.mxu0
      %225 = vdwg.mxu0
      %v226 = vld [vmem:[%s5] sm:$0xff]
      %v227 = vld [vmem:[%s5 + $0x8] sm:$0xff]
      %v228 = vld [vmem:[%s5 + $0x10] sm:$0xff]
      %v229 = vld [vmem:[%s5 + $0x18] sm:$0xff]
      %v230 = vld [vmem:[%s5 + $0x20] sm:$0xff]
      %v231 = vld [vmem:[%s5 + $0x28] sm:$0xff]
      %v232 = vld [vmem:[%s5 + $0x30] sm:$0xff]
      %v233 = vld [vmem:[%s5 + $0x38] sm:$0xff]
      %v234 = vld [vmem:[%s5 + $0x40] sm:$0xff]
      %v235 = vld [vmem:[%s5 + $0x48] sm:$0xff]
      %v236 = vld [vmem:[%s5 + $0x50] sm:$0xff]
      %v237 = vld [vmem:[%s5 + $0x58] sm:$0xff]
      %v238 = vld [vmem:[%s5 + $0x60] sm:$0x1f]
      %s239 = scalar_lea.vmem %s4, 40
      %v240 = vld [vmem:[%s239] sm:$0xff]
      %v241 = vld [vmem:[%s239 + $0x8] sm:$0xff]
      %v242 = vld [vmem:[%s239 + $0x10] sm:$0xff]
      %v243 = vld [vmem:[%s239 + $0x18] sm:$0xff]
      %v244 = vld [vmem:[%s239 + $0x20] sm:$0x1]
      %v246 = vsel %vm116, %v240, 0
      %v249 = vsel %vm116, %v241, 0
      %v252 = vsel %vm116, %v242, 0
      %v255 = vsel %vm116, %v243, 0
      %v258 = vsel %vm116, %v244, 0
      %260 = vmatprep.subr.mxu0 0.0
      %261 = vmatpush1.msra.mxu0 0.0
      %262 = vmatprep.subr.mxu0 0.0
      %263 = vmatpush1.msra.mxu0 0.0
      %264 = vmatprep.subr.mxu0 0.0
      %265 = vmatpush1.msra.mxu0 0.0
      %266 = vmatprep.subr.mxu0 0.0
      %267 = vmatpush1.msra.mxu0 %v134
      %268 = vmatprep.subr.mxu0 0.0
      %269 = vmatpush1.msra.mxu0 %v109
      %270 = vmatprep.subr.mxu0 0.0
      %271 = vmatpush1.msra.mxu0 %v108
      %272 = vmatprep.subr.mxu0 0.0
      %273 = vmatpush1.msra.mxu0 %v107
      %274 = vmatprep.subr.mxu0 0.0
      %275 = vmatpush1.msra.mxu0 %v106
      %276 = vmatprep.subr.mxu0 0.0
      %277 = vmatpush1.msra.mxu0 %v105
      %278 = vmatprep.subr.mxu0 0.0
      %279 = vmatpush1.msra.mxu0 %v104
      %280 = vmatprep.subr.mxu0 0.0
      %281 = vmatpush1.msra.mxu0 %v103
      %282 = vmatprep.subr.mxu0 0.0
      %283 = vmatpush1.msra.mxu0 %v102
      %284 = vmatprep.subr.mxu0 0.0
      %285 = vmatpush1.msra.mxu0 %v101
      %286 = vmatprep.subr.mxu0 0.0
      %287 = vmatpush1.msra.mxu0 %v100
      %288 = vmatprep.subr.mxu0 0.0
      %289 = vmatpush1.msra.mxu0 %v99
      %290 = vmatprep.subr.mxu0 0.0
      %291 = vmatpush1.msra.mxu0 %v98
      %292 = vmatprep.subr.mxu0 0.0
      %293 = vmatpush2.msra.mxu0 0.0
      %294 = vmatprep.subr.mxu0 0.0
      %295 = vmatpush2.msra.mxu0 0.0
      %296 = vmatprep.subr.mxu0 0.0
      %297 = vmatpush2.msra.mxu0 0.0
      %298 = vmatprep.subr.mxu0 0.0
      %299 = vmatpush2.msra.mxu0 0.0
      %300 = vmatprep.subr.mxu0 0.0
      %301 = vmatpush2.msra.mxu0 0.0
      %302 = vmatprep.subr.mxu0 0.0
      %303 = vmatpush2.msra.mxu0 0.0
      %304 = vmatprep.subr.mxu0 0.0
      %305 = vmatpush2.msra.mxu0 0.0
      %306 = vmatprep.subr.mxu0 0.0
      %307 = vmatpush2.msra.mxu0 0.0
      %308 = vmatprep.subr.mxu0 0.0
      %309 = vmatpush2.msra.mxu0 0.0
      %310 = vmatprep.subr.mxu0 0.0
      %311 = vmatpush2.msra.mxu0 0.0
      %312 = vmatprep.subr.mxu0 0.0
      %313 = vmatpush2.msra.mxu0 0.0
      %314 = vmatprep.subr.mxu0 0.0
      %315 = vmatpush2.msra.mxu0 0.0
      %316 = vmatprep.subr.mxu0 0.0
      %317 = vmatpush2.msra.mxu0 0.0
      %318 = vmatprep.subr.mxu0 0.0
      %319 = vmatpush2.msra.mxu0 0.0
      %320 = vmatprep.subr.mxu0 0.0
      %321 = vmatpush2.msra.mxu0 0.0
      %322 = vmatprep.subr.mxu0 0.0
      %323 = vmatpush2.msra.mxu0 0.0
      %324 = vmatprep.mubr.f32.mxu0 0.0
      %325 = vmatmul.mubr.f32.gmra.mxu0 %v246
      %v326 = vpop.f32.mrf.mxu0
      %v327 = vadd.f32 0.0, %v326
      %v328 = vpop.f32.mrf.mxu0
      %329 = vmatprep.mubr.f32.mxu0 0.0
      %330 = vmatmul.mubr.f32.gmra.mxu0 %v249
      %v331 = vpop.f32.mrf.mxu0
      %v332 = vadd.f32 0.0, %v331
      %v333 = vpop.f32.mrf.mxu0
      %334 = vmatprep.mubr.f32.mxu0 0.0
      %335 = vmatmul.mubr.f32.gmra.mxu0 %v252
      %v336 = vpop.f32.mrf.mxu0
      %v337 = vadd.f32 0.0, %v336
      %v338 = vpop.f32.mrf.mxu0
      %339 = vmatprep.mubr.f32.mxu0 0.0
      %340 = vmatmul.mubr.f32.gmra.mxu0 %v255
      %v341 = vpop.f32.mrf.mxu0
      %v342 = vadd.f32 0.0, %v341
      %v343 = vpop.f32.mrf.mxu0
      %344 = vmatprep.mubr.f32.mxu0 0.0
      %345 = vmatmul.mubr.f32.gmra.mxu0 %v258
      %v346 = vpop.f32.mrf.mxu0
      %v347 = vadd.f32 0.0, %v346
      %v348 = vpop.f32.mrf.mxu0
      %349 = vdwg.mxu0
      %s350 = scalar_lea.vmem %s5, 104
      %v351 = vld [vmem:[%s350] sm:$0xff]
      %v352 = vld [vmem:[%s350 + $0x8] sm:$0xff]
      %v353 = vld [vmem:[%s350 + $0x10] sm:$0xff]
      %v354 = vld [vmem:[%s350 + $0x18] sm:$0xff]
      %v355 = vld [vmem:[%s350 + $0x20] sm:$0xff]
      %v356 = vld [vmem:[%s350 + $0x28] sm:$0xff]
      %v357 = vld [vmem:[%s350 + $0x30] sm:$0xff]
      %v358 = vld [vmem:[%s350 + $0x38] sm:$0xff]
      %v359 = vld [vmem:[%s350 + $0x40] sm:$0xff]
      %v360 = vld [vmem:[%s350 + $0x48] sm:$0xff]
      %v361 = vld [vmem:[%s350 + $0x50] sm:$0xff]
      %v362 = vld [vmem:[%s350 + $0x58] sm:$0xff]
      %v363 = vld [vmem:[%s350 + $0x60] sm:$0x1f]
      %v365 = vsel %vm116, %v327, 0
      %v368 = vsel %vm116, %v332, 0
      %v371 = vsel %vm116, %v337, 0
      %v374 = vsel %vm116, %v342, 0
      %v377 = vsel %vm116, %v347, 0
      %v380 = vsel %vm132, %v363, 0
      %382 = vmatprep.subr.mxu0 0.0
      %383 = vmatpush1.msra.mxu0 0.0
      %384 = vmatprep.subr.mxu0 0.0
      %385 = vmatpush1.msra.mxu0 0.0
      %386 = vmatprep.subr.mxu0 0.0
      %387 = vmatpush1.msra.mxu0 0.0
      %388 = vmatprep.subr.mxu0 0.0
      %389 = vmatpush1.msra.mxu0 %v380
      %390 = vmatprep.subr.mxu0 0.0
      %391 = vmatpush1.msra.mxu0 %v362
      %392 = vmatprep.subr.mxu0 0.0
      %393 = vmatpush1.msra.mxu0 %v361
      %394 = vmatprep.subr.mxu0 0.0
      %395 = vmatpush1.msra.mxu0 %v360
      %396 = vmatprep.subr.mxu0 0.0
      %397 = vmatpush1.msra.mxu0 %v359
      %398 = vmatprep.subr.mxu0 0.0
      %399 = vmatpush1.msra.mxu0 %v358
      %400 = vmatprep.subr.mxu0 0.0
      %401 = vmatpush1.msra.mxu0 %v357
      %402 = vmatprep.subr.mxu0 0.0
      %403 = vmatpush1.msra.mxu0 %v356
      %404 = vmatprep.subr.mxu0 0.0
      %405 = vmatpush1.msra.mxu0 %v355
      %406 = vmatprep.subr.mxu0 0.0
      %407 = vmatpush1.msra.mxu0 %v354
      %408 = vmatprep.subr.mxu0 0.0
      %409 = vmatpush1.msra.mxu0 %v353
      %410 = vmatprep.subr.mxu0 0.0
      %411 = vmatpush1.msra.mxu0 %v352
      %412 = vmatprep.subr.mxu0 0.0
      %413 = vmatpush1.msra.mxu0 %v351
      %414 = vmatprep.subr.mxu0 0.0
      %415 = vmatpush2.msra.mxu0 0.0
      %416 = vmatprep.subr.mxu0 0.0
      %417 = vmatpush2.msra.mxu0 0.0
      %418 = vmatprep.subr.mxu0 0.0
      %419 = vmatpush2.msra.mxu0 0.0
      %420 = vmatprep.subr.mxu0 0.0
      %421 = vmatpush2.msra.mxu0 0.0
      %422 = vmatprep.subr.mxu0 0.0
      %423 = vmatpush2.msra.mxu0 0.0
      %424 = vmatprep.subr.mxu0 0.0
      %425 = vmatpush2.msra.mxu0 0.0
      %426 = vmatprep.subr.mxu0 0.0
      %427 = vmatpush2.msra.mxu0 0.0
      %428 = vmatprep.subr.mxu0 0.0
      %429 = vmatpush2.msra.mxu0 0.0
      %430 = vmatprep.subr.mxu0 0.0
      %431 = vmatpush2.msra.mxu0 0.0
      %432 = vmatprep.subr.mxu0 0.0
      %433 = vmatpush2.msra.mxu0 0.0
      %434 = vmatprep.subr.mxu0 0.0
      %435 = vmatpush2.msra.mxu0 0.0
      %436 = vmatprep.subr.mxu0 0.0
      %437 = vmatpush2.msra.mxu0 0.0
      %438 = vmatprep.subr.mxu0 0.0
      %439 = vmatpush2.msra.mxu0 0.0
      %440 = vmatprep.subr.mxu0 0.0
      %441 = vmatpush2.msra.mxu0 0.0
      %442 = vmatprep.subr.mxu0 0.0
      %443 = vmatpush2.msra.mxu0 0.0
      %444 = vmatprep.subr.mxu0 0.0
      %445 = vmatpush2.msra.mxu0 0.0
      %446 = vmatprep.mubr.f32.mxu0 0.0
      %447 = vmatmul.mubr.f32.gmra.mxu0 %v365
      %v448 = vpop.f32.mrf.mxu0
      %v449 = vadd.f32 0.0, %v448
      %v450 = vpop.f32.mrf.mxu0
      %451 = vmatprep.mubr.f32.mxu0 0.0
      %452 = vmatmul.mubr.f32.gmra.mxu0 %v368
      %v453 = vpop.f32.mrf.mxu0
      %v454 = vadd.f32 0.0, %v453
      %v455 = vpop.f32.mrf.mxu0
      %456 = vmatprep.mubr.f32.mxu0 0.0
      %457 = vmatmul.mubr.f32.gmra.mxu0 %v371
      %v458 = vpop.f32.mrf.mxu0
      %v459 = vadd.f32 0.0, %v458
      %v460 = vpop.f32.mrf.mxu0
      %461 = vmatprep.mubr.f32.mxu0 0.0
      %462 = vmatmul.mubr.f32.gmra.mxu0 %v374
      %v463 = vpop.f32.mrf.mxu0
      %v464 = vadd.f32 0.0, %v463
      %v465 = vpop.f32.mrf.mxu0
      %466 = vmatprep.mubr.f32.mxu0 0.0
      %467 = vmatmul.mubr.f32.gmra.mxu0 %v377
      %v468 = vpop.f32.mrf.mxu0
      %v469 = vadd.f32 0.0, %v468
      %v470 = vpop.f32.mrf.mxu0
      %471 = vdwg.mxu0
      %v473 = vsel %vm116, %v203, 0
      %v476 = vsel %vm116, %v208, 0
      %v479 = vsel %vm116, %v213, 0
      %v482 = vsel %vm116, %v218, 0
      %v485 = vsel %vm116, %v223, 0
      %v488 = vsel %vm132, %v238, 0
      %490 = vmatprep.subr.mxu0 0.0
      %491 = vmatpush1.msra.mxu0 0.0
      %492 = vmatprep.subr.mxu0 0.0
      %493 = vmatpush1.msra.mxu0 0.0
      %494 = vmatprep.subr.mxu0 0.0
      %495 = vmatpush1.msra.mxu0 0.0
      %496 = vmatprep.subr.mxu0 0.0
      %497 = vmatpush1.msra.mxu0 %v488
      %498 = vmatprep.subr.mxu0 0.0
      %499 = vmatpush1.msra.mxu0 %v237
      %500 = vmatprep.subr.mxu0 0.0
      %501 = vmatpush1.msra.mxu0 %v236
      %502 = vmatprep.subr.mxu0 0.0
      %503 = vmatpush1.msra.mxu0 %v235
      %504 = vmatprep.subr.mxu0 0.0
      %505 = vmatpush1.msra.mxu0 %v234
      %506 = vmatprep.subr.mxu0 0.0
      %507 = vmatpush1.msra.mxu0 %v233
      %508 = vmatprep.subr.mxu0 0.0
      %509 = vmatpush1.msra.mxu0 %v232
      %510 = vmatprep.subr.mxu0 0.0
      %511 = vmatpush1.msra.mxu0 %v231
      %512 = vmatprep.subr.mxu0 0.0
      %513 = vmatpush1.msra.mxu0 %v230
      %514 = vmatprep.subr.mxu0 0.0
      %515 = vmatpush1.msra.mxu0 %v229
      %516 = vmatprep.subr.mxu0 0.0
      %517 = vmatpush1.msra.mxu0 %v228
      %518 = vmatprep.subr.mxu0 0.0
      %519 = vmatpush1.msra.mxu0 %v227
      %520 = vmatprep.subr.mxu0 0.0
      %521 = vmatpush1.msra.mxu0 %v226
      %522 = vmatprep.subr.mxu0 0.0
      %523 = vmatpush2.msra.mxu0 0.0
      %524 = vmatprep.subr.mxu0 0.0
      %525 = vmatpush2.msra.mxu0 0.0
      %526 = vmatprep.subr.mxu0 0.0
      %527 = vmatpush2.msra.mxu0 0.0
      %528 = vmatprep.subr.mxu0 0.0
      %529 = vmatpush2.msra.mxu0 0.0
      %530 = vmatprep.subr.mxu0 0.0
      %531 = vmatpush2.msra.mxu0 0.0
      %532 = vmatprep.subr.mxu0 0.0
      %533 = vmatpush2.msra.mxu0 0.0
      %534 = vmatprep.subr.mxu0 0.0
      %535 = vmatpush2.msra.mxu0 0.0
      %536 = vmatprep.subr.mxu0 0.0
      %537 = vmatpush2.msra.mxu0 0.0
      %538 = vmatprep.subr.mxu0 0.0
      %539 = vmatpush2.msra.mxu0 0.0
      %540 = vmatprep.subr.mxu0 0.0
      %541 = vmatpush2.msra.mxu0 0.0
      %542 = vmatprep.subr.mxu0 0.0
      %543 = vmatpush2.msra.mxu0 0.0
      %544 = vmatprep.subr.mxu0 0.0
      %545 = vmatpush2.msra.mxu0 0.0
      %546 = vmatprep.subr.mxu0 0.0
      %547 = vmatpush2.msra.mxu0 0.0
      %548 = vmatprep.subr.mxu0 0.0
      %549 = vmatpush2.msra.mxu0 0.0
      %550 = vmatprep.subr.mxu0 0.0
      %551 = vmatpush2.msra.mxu0 0.0
      %552 = vmatprep.subr.mxu0 0.0
      %553 = vmatpush2.msra.mxu0 0.0
      %554 = vmatprep.mubr.f32.mxu0 0.0
      %555 = vmatmul.mubr.f32.gmra.mxu0 %v473
      %v556 = vpop.f32.mrf.mxu0
      %v557 = vadd.f32 %v449, %v556
      %v558 = vpop.f32.mrf.mxu0
      %559 = vmatprep.mubr.f32.mxu0 0.0
      %560 = vmatmul.mubr.f32.gmra.mxu0 %v476
      %v561 = vpop.f32.mrf.mxu0
      %v562 = vadd.f32 %v454, %v561
      %v563 = vpop.f32.mrf.mxu0
      %564 = vmatprep.mubr.f32.mxu0 0.0
      %565 = vmatmul.mubr.f32.gmra.mxu0 %v479
      %v566 = vpop.f32.mrf.mxu0
      %v567 = vadd.f32 %v459, %v566
      %v568 = vpop.f32.mrf.mxu0
      %569 = vmatprep.mubr.f32.mxu0 0.0
      %570 = vmatmul.mubr.f32.gmra.mxu0 %v482
      %v571 = vpop.f32.mrf.mxu0
      %v572 = vadd.f32 %v464, %v571
      %v573 = vpop.f32.mrf.mxu0
      %574 = vmatprep.mubr.f32.mxu0 0.0
      %575 = vmatmul.mubr.f32.gmra.mxu0 %v485
      %v576 = vpop.f32.mrf.mxu0
      %v577 = vadd.f32 %v469, %v576
      %v578 = vpop.f32.mrf.mxu0
      %579 = vdwg.mxu0
      %s580 = scalar_lea.vmem %s4, 80
      %v581 = vld [vmem:[%s580] sm:$0xff]
      %v582 = vld [vmem:[%s580 + $0x8] sm:$0xff]
      %v583 = vld [vmem:[%s580 + $0x10] sm:$0xff]
      %v584 = vld [vmem:[%s580 + $0x18] sm:$0xff]
      %v585 = vld [vmem:[%s580 + $0x20] sm:$0x1]
      %v587 = vsel %vm116, %v581, 0
      %v590 = vsel %vm116, %v582, 0
      %v593 = vsel %vm116, %v583, 0
      %v596 = vsel %vm116, %v584, 0
      %v599 = vsel %vm116, %v585, 0
      %601 = vmatprep.subr.mxu0 0.0
      %602 = vmatpush1.msra.mxu0 0.0
      %603 = vmatprep.subr.mxu0 0.0
      %604 = vmatpush1.msra.mxu0 0.0
      %605 = vmatprep.subr.mxu0 0.0
      %606 = vmatpush1.msra.mxu0 0.0
      %607 = vmatprep.subr.mxu0 0.0
      %608 = vmatpush1.msra.mxu0 %v134
      %609 = vmatprep.subr.mxu0 0.0
      %610 = vmatpush1.msra.mxu0 %v109
      %611 = vmatprep.subr.mxu0 0.0
      %612 = vmatpush1.msra.mxu0 %v108
      %613 = vmatprep.subr.mxu0 0.0
      %614 = vmatpush1.msra.mxu0 %v107
      %615 = vmatprep.subr.mxu0 0.0
      %616 = vmatpush1.msra.mxu0 %v106
      %617 = vmatprep.subr.mxu0 0.0
      %618 = vmatpush1.msra.mxu0 %v105
      %619 = vmatprep.subr.mxu0 0.0
      %620 = vmatpush1.msra.mxu0 %v104
      %621 = vmatprep.subr.mxu0 0.0
      %622 = vmatpush1.msra.mxu0 %v103
      %623 = vmatprep.subr.mxu0 0.0
      %624 = vmatpush1.msra.mxu0 %v102
      %625 = vmatprep.subr.mxu0 0.0
      %626 = vmatpush1.msra.mxu0 %v101
      %627 = vmatprep.subr.mxu0 0.0
      %628 = vmatpush1.msra.mxu0 %v100
      %629 = vmatprep.subr.mxu0 0.0
      %630 = vmatpush1.msra.mxu0 %v99
      %631 = vmatprep.subr.mxu0 0.0
      %632 = vmatpush1.msra.mxu0 %v98
      %633 = vmatprep.subr.mxu0 0.0
      %634 = vmatpush2.msra.mxu0 0.0
      %635 = vmatprep.subr.mxu0 0.0
      %636 = vmatpush2.msra.mxu0 0.0
      %637 = vmatprep.subr.mxu0 0.0
      %638 = vmatpush2.msra.mxu0 0.0
      %639 = vmatprep.subr.mxu0 0.0
      %640 = vmatpush2.msra.mxu0 0.0
      %641 = vmatprep.subr.mxu0 0.0
      %642 = vmatpush2.msra.mxu0 0.0
      %643 = vmatprep.subr.mxu0 0.0
      %644 = vmatpush2.msra.mxu0 0.0
      %645 = vmatprep.subr.mxu0 0.0
      %646 = vmatpush2.msra.mxu0 0.0
      %647 = vmatprep.subr.mxu0 0.0
      %648 = vmatpush2.msra.mxu0 0.0
      %649 = vmatprep.subr.mxu0 0.0
      %650 = vmatpush2.msra.mxu0 0.0
      %651 = vmatprep.subr.mxu0 0.0
      %652 = vmatpush2.msra.mxu0 0.0
      %653 = vmatprep.subr.mxu0 0.0
      %654 = vmatpush2.msra.mxu0 0.0
      %655 = vmatprep.subr.mxu0 0.0
      %656 = vmatpush2.msra.mxu0 0.0
      %657 = vmatprep.subr.mxu0 0.0
      %658 = vmatpush2.msra.mxu0 0.0
      %659 = vmatprep.subr.mxu0 0.0
      %660 = vmatpush2.msra.mxu0 0.0
      %661 = vmatprep.subr.mxu0 0.0
      %662 = vmatpush2.msra.mxu0 0.0
      %663 = vmatprep.subr.mxu0 0.0
      %664 = vmatpush2.msra.mxu0 0.0
      %665 = vmatprep.mubr.f32.mxu0 0.0
      %666 = vmatmul.mubr.f32.gmra.mxu0 %v587
      %v667 = vpop.f32.mrf.mxu0
      %v668 = vadd.f32 0.0, %v667
      %v669 = vpop.f32.mrf.mxu0
      %670 = vmatprep.mubr.f32.mxu0 0.0
      %671 = vmatmul.mubr.f32.gmra.mxu0 %v590
      %v672 = vpop.f32.mrf.mxu0
      %v673 = vadd.f32 0.0, %v672
      %v674 = vpop.f32.mrf.mxu0
      %675 = vmatprep.mubr.f32.mxu0 0.0
      %676 = vmatmul.mubr.f32.gmra.mxu0 %v593
      %v677 = vpop.f32.mrf.mxu0
      %v678 = vadd.f32 0.0, %v677
      %v679 = vpop.f32.mrf.mxu0
      %680 = vmatprep.mubr.f32.mxu0 0.0
      %681 = vmatmul.mubr.f32.gmra.mxu0 %v596
      %v682 = vpop.f32.mrf.mxu0
      %v683 = vadd.f32 0.0, %v682
      %v684 = vpop.f32.mrf.mxu0
      %685 = vmatprep.mubr.f32.mxu0 0.0
      %686 = vmatmul.mubr.f32.gmra.mxu0 %v599
      %v687 = vpop.f32.mrf.mxu0
      %v688 = vadd.f32 0.0, %v687
      %v689 = vpop.f32.mrf.mxu0
      %690 = vdwg.mxu0
      %s691 = scalar_lea.vmem %s5, 208
      %v692 = vld [vmem:[%s691] sm:$0xff]
      %v693 = vld [vmem:[%s691 + $0x8] sm:$0xff]
      %v694 = vld [vmem:[%s691 + $0x10] sm:$0xff]
      %v695 = vld [vmem:[%s691 + $0x18] sm:$0xff]
      %v696 = vld [vmem:[%s691 + $0x20] sm:$0xff]
      %v697 = vld [vmem:[%s691 + $0x28] sm:$0xff]
      %v698 = vld [vmem:[%s691 + $0x30] sm:$0xff]
      %v699 = vld [vmem:[%s691 + $0x38] sm:$0xff]
      %v700 = vld [vmem:[%s691 + $0x40] sm:$0xff]
      %v701 = vld [vmem:[%s691 + $0x48] sm:$0xff]
      %v702 = vld [vmem:[%s691 + $0x50] sm:$0xff]
      %v703 = vld [vmem:[%s691 + $0x58] sm:$0xff]
      %v704 = vld [vmem:[%s691 + $0x60] sm:$0x1f]
      %v706 = vsel %vm116, %v668, 0
      %v709 = vsel %vm116, %v673, 0
      %v712 = vsel %vm116, %v678, 0
      %v715 = vsel %vm116, %v683, 0
      %v718 = vsel %vm116, %v688, 0
      %v721 = vsel %vm132, %v704, 0
      %723 = vmatprep.subr.mxu0 0.0
      %724 = vmatpush1.msra.mxu0 0.0
      %725 = vmatprep.subr.mxu0 0.0
      %726 = vmatpush1.msra.mxu0 0.0
      %727 = vmatprep.subr.mxu0 0.0
      %728 = vmatpush1.msra.mxu0 0.0
      %729 = vmatprep.subr.mxu0 0.0
      %730 = vmatpush1.msra.mxu0 %v721
      %731 = vmatprep.subr.mxu0 0.0
      %732 = vmatpush1.msra.mxu0 %v703
      %733 = vmatprep.subr.mxu0 0.0
      %734 = vmatpush1.msra.mxu0 %v702
      %735 = vmatprep.subr.mxu0 0.0
      %736 = vmatpush1.msra.mxu0 %v701
      %737 = vmatprep.subr.mxu0 0.0
      %738 = vmatpush1.msra.mxu0 %v700
      %739 = vmatprep.subr.mxu0 0.0
      %740 = vmatpush1.msra.mxu0 %v699
      %741 = vmatprep.subr.mxu0 0.0
      %742 = vmatpush1.msra.mxu0 %v698
      %743 = vmatprep.subr.mxu0 0.0
      %744 = vmatpush1.msra.mxu0 %v697
      %745 = vmatprep.subr.mxu0 0.0
      %746 = vmatpush1.msra.mxu0 %v696
      %747 = vmatprep.subr.mxu0 0.0
      %748 = vmatpush1.msra.mxu0 %v695
      %749 = vmatprep.subr.mxu0 0.0
      %750 = vmatpush1.msra.mxu0 %v694
      %751 = vmatprep.subr.mxu0 0.0
      %752 = vmatpush1.msra.mxu0 %v693
      %753 = vmatprep.subr.mxu0 0.0
      %754 = vmatpush1.msra.mxu0 %v692
      %755 = vmatprep.subr.mxu0 0.0
      %756 = vmatpush2.msra.mxu0 0.0
      %757 = vmatprep.subr.mxu0 0.0
      %758 = vmatpush2.msra.mxu0 0.0
      %759 = vmatprep.subr.mxu0 0.0
      %760 = vmatpush2.msra.mxu0 0.0
      %761 = vmatprep.subr.mxu0 0.0
      %762 = vmatpush2.msra.mxu0 0.0
      %763 = vmatprep.subr.mxu0 0.0
      %764 = vmatpush2.msra.mxu0 0.0
      %765 = vmatprep.subr.mxu0 0.0
      %766 = vmatpush2.msra.mxu0 0.0
      %767 = vmatprep.subr.mxu0 0.0
      %768 = vmatpush2.msra.mxu0 0.0
      %769 = vmatprep.subr.mxu0 0.0
      %770 = vmatpush2.msra.mxu0 0.0
      %771 = vmatprep.subr.mxu0 0.0
      %772 = vmatpush2.msra.mxu0 0.0
      %773 = vmatprep.subr.mxu0 0.0
      %774 = vmatpush2.msra.mxu0 0.0
      %775 = vmatprep.subr.mxu0 0.0
      %776 = vmatpush2.msra.mxu0 0.0
      %777 = vmatprep.subr.mxu0 0.0
      %778 = vmatpush2.msra.mxu0 0.0
      %779 = vmatprep.subr.mxu0 0.0
      %780 = vmatpush2.msra.mxu0 0.0
      %781 = vmatprep.subr.mxu0 0.0
      %782 = vmatpush2.msra.mxu0 0.0
      %783 = vmatprep.subr.mxu0 0.0
      %784 = vmatpush2.msra.mxu0 0.0
      %785 = vmatprep.subr.mxu0 0.0
      %786 = vmatpush2.msra.mxu0 0.0
      %787 = vmatprep.mubr.f32.mxu0 0.0
      %788 = vmatmul.mubr.f32.gmra.mxu0 %v706
      %v789 = vpop.f32.mrf.mxu0
      %v790 = vadd.f32 0.0, %v789
      %v791 = vpop.f32.mrf.mxu0
      %792 = vmatprep.mubr.f32.mxu0 0.0
      %793 = vmatmul.mubr.f32.gmra.mxu0 %v709
      %v794 = vpop.f32.mrf.mxu0
      %v795 = vadd.f32 0.0, %v794
      %v796 = vpop.f32.mrf.mxu0
      %797 = vmatprep.mubr.f32.mxu0 0.0
      %798 = vmatmul.mubr.f32.gmra.mxu0 %v712
      %v799 = vpop.f32.mrf.mxu0
      %v800 = vadd.f32 0.0, %v799
      %v801 = vpop.f32.mrf.mxu0
      %802 = vmatprep.mubr.f32.mxu0 0.0
      %803 = vmatmul.mubr.f32.gmra.mxu0 %v715
      %v804 = vpop.f32.mrf.mxu0
      %v805 = vadd.f32 0.0, %v804
      %v806 = vpop.f32.mrf.mxu0
      %807 = vmatprep.mubr.f32.mxu0 0.0
      %808 = vmatmul.mubr.f32.gmra.mxu0 %v718
      %v809 = vpop.f32.mrf.mxu0
      %v810 = vadd.f32 0.0, %v809
      %v811 = vpop.f32.mrf.mxu0
      %812 = vdwg.mxu0
      %v813 = vadd.f32 %v557, %v790
      %v814 = vadd.f32 %v562, %v795
      %v815 = vadd.f32 %v567, %v800
      %v816 = vadd.f32 %v572, %v805
      %v817 = vadd.f32 %v577, %v810
      %s818 = scalar_lea.vmem %s4, 120
      %v819 = vld [vmem:[%s818] sm:$0xff]
      %v820 = vld [vmem:[%s818 + $0x8] sm:$0xff]
      %v821 = vld [vmem:[%s818 + $0x10] sm:$0xff]
      %v822 = vld [vmem:[%s818 + $0x18] sm:$0xff]
      %v823 = vld [vmem:[%s818 + $0x20] sm:$0x1]
      %v825 = vsel %vm116, %v819, 0
      %v828 = vsel %vm116, %v820, 0
      %v831 = vsel %vm116, %v821, 0
      %v834 = vsel %vm116, %v822, 0
      %v837 = vsel %vm116, %v823, 0
      %839 = vmatprep.subr.mxu0 0.0
      %840 = vmatpush1.msra.mxu0 0.0
      %841 = vmatprep.subr.mxu0 0.0
      %842 = vmatpush1.msra.mxu0 0.0
      %843 = vmatprep.subr.mxu0 0.0
      %844 = vmatpush1.msra.mxu0 0.0
      %845 = vmatprep.subr.mxu0 0.0
      %846 = vmatpush1.msra.mxu0 %v134
      %847 = vmatprep.subr.mxu0 0.0
      %848 = vmatpush1.msra.mxu0 %v109
      %849 = vmatprep.subr.mxu0 0.0
      %850 = vmatpush1.msra.mxu0 %v108
      %851 = vmatprep.subr.mxu0 0.0
      %852 = vmatpush1.msra.mxu0 %v107
      %853 = vmatprep.subr.mxu0 0.0
      %854 = vmatpush1.msra.mxu0 %v106
      %855 = vmatprep.subr.mxu0 0.0
      %856 = vmatpush1.msra.mxu0 %v105
      %857 = vmatprep.subr.mxu0 0.0
      %858 = vmatpush1.msra.mxu0 %v104
      %859 = vmatprep.subr.mxu0 0.0
      %860 = vmatpush1.msra.mxu0 %v103
      %861 = vmatprep.subr.mxu0 0.0
      %862 = vmatpush1.msra.mxu0 %v102
      %863 = vmatprep.subr.mxu0 0.0
      %864 = vmatpush1.msra.mxu0 %v101
      %865 = vmatprep.subr.mxu0 0.0
      %866 = vmatpush1.msra.mxu0 %v100
      %867 = vmatprep.subr.mxu0 0.0
      %868 = vmatpush1.msra.mxu0 %v99
      %869 = vmatprep.subr.mxu0 0.0
      %870 = vmatpush1.msra.mxu0 %v98
      %871 = vmatprep.subr.mxu0 0.0
      %872 = vmatpush2.msra.mxu0 0.0
      %873 = vmatprep.subr.mxu0 0.0
      %874 = vmatpush2.msra.mxu0 0.0
      %875 = vmatprep.subr.mxu0 0.0
      %876 = vmatpush2.msra.mxu0 0.0
      %877 = vmatprep.subr.mxu0 0.0
      %878 = vmatpush2.msra.mxu0 0.0
      %879 = vmatprep.subr.mxu0 0.0
      %880 = vmatpush2.msra.mxu0 0.0
      %881 = vmatprep.subr.mxu0 0.0
      %882 = vmatpush2.msra.mxu0 0.0
      %883 = vmatprep.subr.mxu0 0.0
      %884 = vmatpush2.msra.mxu0 0.0
      %885 = vmatprep.subr.mxu0 0.0
      %886 = vmatpush2.msra.mxu0 0.0
      %887 = vmatprep.subr.mxu0 0.0
      %888 = vmatpush2.msra.mxu0 0.0
      %889 = vmatprep.subr.mxu0 0.0
      %890 = vmatpush2.msra.mxu0 0.0
      %891 = vmatprep.subr.mxu0 0.0
      %892 = vmatpush2.msra.mxu0 0.0
      %893 = vmatprep.subr.mxu0 0.0
      %894 = vmatpush2.msra.mxu0 0.0
      %895 = vmatprep.subr.mxu0 0.0
      %896 = vmatpush2.msra.mxu0 0.0
      %897 = vmatprep.subr.mxu0 0.0
      %898 = vmatpush2.msra.mxu0 0.0
      %899 = vmatprep.subr.mxu0 0.0
      %900 = vmatpush2.msra.mxu0 0.0
      %901 = vmatprep.subr.mxu0 0.0
      %902 = vmatpush2.msra.mxu0 0.0
      %903 = vmatprep.mubr.f32.mxu0 0.0
      %904 = vmatmul.mubr.f32.gmra.mxu0 %v825
      %v905 = vpop.f32.mrf.mxu0
      %v906 = vadd.f32 0.0, %v905
      %v907 = vpop.f32.mrf.mxu0
      %908 = vmatprep.mubr.f32.mxu0 0.0
      %909 = vmatmul.mubr.f32.gmra.mxu0 %v828
      %v910 = vpop.f32.mrf.mxu0
      %v911 = vadd.f32 0.0, %v910
      %v912 = vpop.f32.mrf.mxu0
      %913 = vmatprep.mubr.f32.mxu0 0.0
      %914 = vmatmul.mubr.f32.gmra.mxu0 %v831
      %v915 = vpop.f32.mrf.mxu0
      %v916 = vadd.f32 0.0, %v915
      %v917 = vpop.f32.mrf.mxu0
      %918 = vmatprep.mubr.f32.mxu0 0.0
      %919 = vmatmul.mubr.f32.gmra.mxu0 %v834
      %v920 = vpop.f32.mrf.mxu0
      %v921 = vadd.f32 0.0, %v920
      %v922 = vpop.f32.mrf.mxu0
      %923 = vmatprep.mubr.f32.mxu0 0.0
      %924 = vmatmul.mubr.f32.gmra.mxu0 %v837
      %v925 = vpop.f32.mrf.mxu0
      %v926 = vadd.f32 0.0, %v925
      %v927 = vpop.f32.mrf.mxu0
      %928 = vdwg.mxu0
      %s929 = scalar_lea.vmem %s5, 312
      %v930 = vld [vmem:[%s929] sm:$0xff]
      %v931 = vld [vmem:[%s929 + $0x8] sm:$0xff]
      %v932 = vld [vmem:[%s929 + $0x10] sm:$0xff]
      %v933 = vld [vmem:[%s929 + $0x18] sm:$0xff]
      %v934 = vld [vmem:[%s929 + $0x20] sm:$0xff]
      %v935 = vld [vmem:[%s929 + $0x28] sm:$0xff]
      %v936 = vld [vmem:[%s929 + $0x30] sm:$0xff]
      %v937 = vld [vmem:[%s929 + $0x38] sm:$0xff]
      %v938 = vld [vmem:[%s929 + $0x40] sm:$0xff]
      %v939 = vld [vmem:[%s929 + $0x48] sm:$0xff]
      %v940 = vld [vmem:[%s929 + $0x50] sm:$0xff]
      %v941 = vld [vmem:[%s929 + $0x58] sm:$0xff]
      %v942 = vld [vmem:[%s929 + $0x60] sm:$0x1f]
      %v944 = vsel %vm116, %v906, 0
      %v947 = vsel %vm116, %v911, 0
      %v950 = vsel %vm116, %v916, 0
      %v953 = vsel %vm116, %v921, 0
      %v956 = vsel %vm116, %v926, 0
      %v959 = vsel %vm132, %v942, 0
      %961 = vmatprep.subr.mxu0 0.0
      %962 = vmatpush1.msra.mxu0 0.0
      %963 = vmatprep.subr.mxu0 0.0
      %964 = vmatpush1.msra.mxu0 0.0
      %965 = vmatprep.subr.mxu0 0.0
      %966 = vmatpush1.msra.mxu0 0.0
      %967 = vmatprep.subr.mxu0 0.0
      %968 = vmatpush1.msra.mxu0 %v959
      %969 = vmatprep.subr.mxu0 0.0
      %970 = vmatpush1.msra.mxu0 %v941
      %971 = vmatprep.subr.mxu0 0.0
      %972 = vmatpush1.msra.mxu0 %v940
      %973 = vmatprep.subr.mxu0 0.0
      %974 = vmatpush1.msra.mxu0 %v939
      %975 = vmatprep.subr.mxu0 0.0
      %976 = vmatpush1.msra.mxu0 %v938
      %977 = vmatprep.subr.mxu0 0.0
      %978 = vmatpush1.msra.mxu0 %v937
      %979 = vmatprep.subr.mxu0 0.0
      %980 = vmatpush1.msra.mxu0 %v936
      %981 = vmatprep.subr.mxu0 0.0
      %982 = vmatpush1.msra.mxu0 %v935
      %983 = vmatprep.subr.mxu0 0.0
      %984 = vmatpush1.msra.mxu0 %v934
      %985 = vmatprep.subr.mxu0 0.0
      %986 = vmatpush1.msra.mxu0 %v933
      %987 = vmatprep.subr.mxu0 0.0
      %988 = vmatpush1.msra.mxu0 %v932
      %989 = vmatprep.subr.mxu0 0.0
      %990 = vmatpush1.msra.mxu0 %v931
      %991 = vmatprep.subr.mxu0 0.0
      %992 = vmatpush1.msra.mxu0 %v930
      %993 = vmatprep.subr.mxu0 0.0
      %994 = vmatpush2.msra.mxu0 0.0
      %995 = vmatprep.subr.mxu0 0.0
      %996 = vmatpush2.msra.mxu0 0.0
      %997 = vmatprep.subr.mxu0 0.0
      %998 = vmatpush2.msra.mxu0 0.0
      %999 = vmatprep.subr.mxu0 0.0
      %1000 = vmatpush2.msra.mxu0 0.0
      %1001 = vmatprep.subr.mxu0 0.0
      %1002 = vmatpush2.msra.mxu0 0.0
      %1003 = vmatprep.subr.mxu0 0.0
      %1004 = vmatpush2.msra.mxu0 0.0
      %1005 = vmatprep.subr.mxu0 0.0
      %1006 = vmatpush2.msra.mxu0 0.0
      %1007 = vmatprep.subr.mxu0 0.0
      %1008 = vmatpush2.msra.mxu0 0.0
      %1009 = vmatprep.subr.mxu0 0.0
      %1010 = vmatpush2.msra.mxu0 0.0
      %1011 = vmatprep.subr.mxu0 0.0
      %1012 = vmatpush2.msra.mxu0 0.0
      %1013 = vmatprep.subr.mxu0 0.0
      %1014 = vmatpush2.msra.mxu0 0.0
      %1015 = vmatprep.subr.mxu0 0.0
      %1016 = vmatpush2.msra.mxu0 0.0
      %1017 = vmatprep.subr.mxu0 0.0
      %1018 = vmatpush2.msra.mxu0 0.0
      %1019 = vmatprep.subr.mxu0 0.0
      %1020 = vmatpush2.msra.mxu0 0.0
      %1021 = vmatprep.subr.mxu0 0.0
      %1022 = vmatpush2.msra.mxu0 0.0
      %1023 = vmatprep.subr.mxu0 0.0
      %1024 = vmatpush2.msra.mxu0 0.0
      %1025 = vmatprep.mubr.f32.mxu0 0.0
      %1026 = vmatmul.mubr.f32.gmra.mxu0 %v944
      %v1027 = vpop.f32.mrf.mxu0
      %v1028 = vadd.f32 0.0, %v1027
      %v1029 = vpop.f32.mrf.mxu0
      %1030 = vmatprep.mubr.f32.mxu0 0.0
      %1031 = vmatmul.mubr.f32.gmra.mxu0 %v947
      %v1032 = vpop.f32.mrf.mxu0
      %v1033 = vadd.f32 0.0, %v1032
      %v1034 = vpop.f32.mrf.mxu0
      %1035 = vmatprep.mubr.f32.mxu0 0.0
      %1036 = vmatmul.mubr.f32.gmra.mxu0 %v950
      %v1037 = vpop.f32.mrf.mxu0
      %v1038 = vadd.f32 0.0, %v1037
      %v1039 = vpop.f32.mrf.mxu0
      %1040 = vmatprep.mubr.f32.mxu0 0.0
      %1041 = vmatmul.mubr.f32.gmra.mxu0 %v953
      %v1042 = vpop.f32.mrf.mxu0
      %v1043 = vadd.f32 0.0, %v1042
      %v1044 = vpop.f32.mrf.mxu0
      %1045 = vmatprep.mubr.f32.mxu0 0.0
      %1046 = vmatmul.mubr.f32.gmra.mxu0 %v956
      %v1047 = vpop.f32.mrf.mxu0
      %v1048 = vadd.f32 0.0, %v1047
      %v1049 = vpop.f32.mrf.mxu0
      %1050 = vdwg.mxu0
      %v1051 = vadd.f32 %v813, %v1028
      %v1052 = vadd.f32 %v814, %v1033
      %v1053 = vadd.f32 %v815, %v1038
      %v1054 = vadd.f32 %v816, %v1043
      %v1055 = vadd.f32 %v817, %v1048
      %s1056 = scalar_lea.vmem %s4, 160
      %v1057 = vld [vmem:[%s1056] sm:$0xff]
      %v1058 = vld [vmem:[%s1056 + $0x8] sm:$0xff]
      %v1059 = vld [vmem:[%s1056 + $0x10] sm:$0xff]
      %v1060 = vld [vmem:[%s1056 + $0x18] sm:$0xff]
      %v1061 = vld [vmem:[%s1056 + $0x20] sm:$0x1]
      %v1063 = vsel %vm116, %v1057, 0
      %v1066 = vsel %vm116, %v1058, 0
      %v1069 = vsel %vm116, %v1059, 0
      %v1072 = vsel %vm116, %v1060, 0
      %v1075 = vsel %vm116, %v1061, 0
      %1077 = vmatprep.subr.mxu0 0.0
      %1078 = vmatpush1.msra.mxu0 0.0
      %1079 = vmatprep.subr.mxu0 0.0
      %1080 = vmatpush1.msra.mxu0 0.0
      %1081 = vmatprep.subr.mxu0 0.0
      %1082 = vmatpush1.msra.mxu0 0.0
      %1083 = vmatprep.subr.mxu0 0.0
      %1084 = vmatpush1.msra.mxu0 %v134
      %1085 = vmatprep.subr.mxu0 0.0
      %1086 = vmatpush1.msra.mxu0 %v109
      %1087 = vmatprep.subr.mxu0 0.0
      %1088 = vmatpush1.msra.mxu0 %v108
      %1089 = vmatprep.subr.mxu0 0.0
      %1090 = vmatpush1.msra.mxu0 %v107
      %1091 = vmatprep.subr.mxu0 0.0
      %1092 = vmatpush1.msra.mxu0 %v106
      %1093 = vmatprep.subr.mxu0 0.0
      %1094 = vmatpush1.msra.mxu0 %v105
      %1095 = vmatprep.subr.mxu0 0.0
      %1096 = vmatpush1.msra.mxu0 %v104
      %1097 = vmatprep.subr.mxu0 0.0
      %1098 = vmatpush1.msra.mxu0 %v103
      %1099 = vmatprep.subr.mxu0 0.0
      %1100 = vmatpush1.msra.mxu0 %v102
      %1101 = vmatprep.subr.mxu0 0.0
      %1102 = vmatpush1.msra.mxu0 %v101
      %1103 = vmatprep.subr.mxu0 0.0
      %1104 = vmatpush1.msra.mxu0 %v100
      %1105 = vmatprep.subr.mxu0 0.0
      %1106 = vmatpush1.msra.mxu0 %v99
      %1107 = vmatprep.subr.mxu0 0.0
      %1108 = vmatpush1.msra.mxu0 %v98
      %1109 = vmatprep.subr.mxu0 0.0
      %1110 = vmatpush2.msra.mxu0 0.0
      %1111 = vmatprep.subr.mxu0 0.0
      %1112 = vmatpush2.msra.mxu0 0.0
      %1113 = vmatprep.subr.mxu0 0.0
      %1114 = vmatpush2.msra.mxu0 0.0
      %1115 = vmatprep.subr.mxu0 0.0
      %1116 = vmatpush2.msra.mxu0 0.0
      %1117 = vmatprep.subr.mxu0 0.0
      %1118 = vmatpush2.msra.mxu0 0.0
      %1119 = vmatprep.subr.mxu0 0.0
      %1120 = vmatpush2.msra.mxu0 0.0
      %1121 = vmatprep.subr.mxu0 0.0
      %1122 = vmatpush2.msra.mxu0 0.0
      %1123 = vmatprep.subr.mxu0 0.0
      %1124 = vmatpush2.msra.mxu0 0.0
      %1125 = vmatprep.subr.mxu0 0.0
      %1126 = vmatpush2.msra.mxu0 0.0
      %1127 = vmatprep.subr.mxu0 0.0
      %1128 = vmatpush2.msra.mxu0 0.0
      %1129 = vmatprep.subr.mxu0 0.0
      %1130 = vmatpush2.msra.mxu0 0.0
      %1131 = vmatprep.subr.mxu0 0.0
      %1132 = vmatpush2.msra.mxu0 0.0
      %1133 = vmatprep.subr.mxu0 0.0
      %1134 = vmatpush2.msra.mxu0 0.0
      %1135 = vmatprep.subr.mxu0 0.0
      %1136 = vmatpush2.msra.mxu0 0.0
      %1137 = vmatprep.subr.mxu0 0.0
      %1138 = vmatpush2.msra.mxu0 0.0
      %1139 = vmatprep.subr.mxu0 0.0
      %1140 = vmatpush2.msra.mxu0 0.0
      %1141 = vmatprep.mubr.f32.mxu0 0.0
      %1142 = vmatmul.mubr.f32.gmra.mxu0 %v1063
      %v1143 = vpop.f32.mrf.mxu0
      %v1144 = vadd.f32 0.0, %v1143
      %v1145 = vpop.f32.mrf.mxu0
      %1146 = vmatprep.mubr.f32.mxu0 0.0
      %1147 = vmatmul.mubr.f32.gmra.mxu0 %v1066
      %v1148 = vpop.f32.mrf.mxu0
      %v1149 = vadd.f32 0.0, %v1148
      %v1150 = vpop.f32.mrf.mxu0
      %1151 = vmatprep.mubr.f32.mxu0 0.0
      %1152 = vmatmul.mubr.f32.gmra.mxu0 %v1069
      %v1153 = vpop.f32.mrf.mxu0
      %v1154 = vadd.f32 0.0, %v1153
      %v1155 = vpop.f32.mrf.mxu0
      %1156 = vmatprep.mubr.f32.mxu0 0.0
      %1157 = vmatmul.mubr.f32.gmra.mxu0 %v1072
      %v1158 = vpop.f32.mrf.mxu0
      %v1159 = vadd.f32 0.0, %v1158
      %v1160 = vpop.f32.mrf.mxu0
      %1161 = vmatprep.mubr.f32.mxu0 0.0
      %1162 = vmatmul.mubr.f32.gmra.mxu0 %v1075
      %v1163 = vpop.f32.mrf.mxu0
      %v1164 = vadd.f32 0.0, %v1163
      %v1165 = vpop.f32.mrf.mxu0
      %1166 = vdwg.mxu0
      %s1167 = scalar_lea.vmem %s5, 416
      %v1168 = vld [vmem:[%s1167] sm:$0xff]
      %v1169 = vld [vmem:[%s1167 + $0x8] sm:$0xff]
      %v1170 = vld [vmem:[%s1167 + $0x10] sm:$0xff]
      %v1171 = vld [vmem:[%s1167 + $0x18] sm:$0xff]
      %v1172 = vld [vmem:[%s1167 + $0x20] sm:$0xff]
      %v1173 = vld [vmem:[%s1167 + $0x28] sm:$0xff]
      %v1174 = vld [vmem:[%s1167 + $0x30] sm:$0xff]
      %v1175 = vld [vmem:[%s1167 + $0x38] sm:$0xff]
      %v1176 = vld [vmem:[%s1167 + $0x40] sm:$0xff]
      %v1177 = vld [vmem:[%s1167 + $0x48] sm:$0xff]
      %v1178 = vld [vmem:[%s1167 + $0x50] sm:$0xff]
      %v1179 = vld [vmem:[%s1167 + $0x58] sm:$0xff]
      %v1180 = vld [vmem:[%s1167 + $0x60] sm:$0x1f]
      %v1182 = vsel %vm116, %v1144, 0
      %v1185 = vsel %vm116, %v1149, 0
      %v1188 = vsel %vm116, %v1154, 0
      %v1191 = vsel %vm116, %v1159, 0
      %v1194 = vsel %vm116, %v1164, 0
      %v1197 = vsel %vm132, %v1180, 0
      %1199 = vmatprep.subr.mxu0 0.0
      %1200 = vmatpush1.msra.mxu0 0.0
      %1201 = vmatprep.subr.mxu0 0.0
      %1202 = vmatpush1.msra.mxu0 0.0
      %1203 = vmatprep.subr.mxu0 0.0
      %1204 = vmatpush1.msra.mxu0 0.0
      %1205 = vmatprep.subr.mxu0 0.0
      %1206 = vmatpush1.msra.mxu0 %v1197
      %1207 = vmatprep.subr.mxu0 0.0
      %1208 = vmatpush1.msra.mxu0 %v1179
      %1209 = vmatprep.subr.mxu0 0.0
      %1210 = vmatpush1.msra.mxu0 %v1178
      %1211 = vmatprep.subr.mxu0 0.0
      %1212 = vmatpush1.msra.mxu0 %v1177
      %1213 = vmatprep.subr.mxu0 0.0
      %1214 = vmatpush1.msra.mxu0 %v1176
      %1215 = vmatprep.subr.mxu0 0.0
      %1216 = vmatpush1.msra.mxu0 %v1175
      %1217 = vmatprep.subr.mxu0 0.0
      %1218 = vmatpush1.msra.mxu0 %v1174
      %1219 = vmatprep.subr.mxu0 0.0
      %1220 = vmatpush1.msra.mxu0 %v1173
      %1221 = vmatprep.subr.mxu0 0.0
      %1222 = vmatpush1.msra.mxu0 %v1172
      %1223 = vmatprep.subr.mxu0 0.0
      %1224 = vmatpush1.msra.mxu0 %v1171
      %1225 = vmatprep.subr.mxu0 0.0
      %1226 = vmatpush1.msra.mxu0 %v1170
      %1227 = vmatprep.subr.mxu0 0.0
      %1228 = vmatpush1.msra.mxu0 %v1169
      %1229 = vmatprep.subr.mxu0 0.0
      %1230 = vmatpush1.msra.mxu0 %v1168
      %1231 = vmatprep.subr.mxu0 0.0
      %1232 = vmatpush2.msra.mxu0 0.0
      %1233 = vmatprep.subr.mxu0 0.0
      %1234 = vmatpush2.msra.mxu0 0.0
      %1235 = vmatprep.subr.mxu0 0.0
      %1236 = vmatpush2.msra.mxu0 0.0
      %1237 = vmatprep.subr.mxu0 0.0
      %1238 = vmatpush2.msra.mxu0 0.0
      %1239 = vmatprep.subr.mxu0 0.0
      %1240 = vmatpush2.msra.mxu0 0.0
      %1241 = vmatprep.subr.mxu0 0.0
      %1242 = vmatpush2.msra.mxu0 0.0
      %1243 = vmatprep.subr.mxu0 0.0
      %1244 = vmatpush2.msra.mxu0 0.0
      %1245 = vmatprep.subr.mxu0 0.0
      %1246 = vmatpush2.msra.mxu0 0.0
      %1247 = vmatprep.subr.mxu0 0.0
      %1248 = vmatpush2.msra.mxu0 0.0
      %1249 = vmatprep.subr.mxu0 0.0
      %1250 = vmatpush2.msra.mxu0 0.0
      %1251 = vmatprep.subr.mxu0 0.0
      %1252 = vmatpush2.msra.mxu0 0.0
      %1253 = vmatprep.subr.mxu0 0.0
      %1254 = vmatpush2.msra.mxu0 0.0
      %1255 = vmatprep.subr.mxu0 0.0
      %1256 = vmatpush2.msra.mxu0 0.0
      %1257 = vmatprep.subr.mxu0 0.0
      %1258 = vmatpush2.msra.mxu0 0.0
      %1259 = vmatprep.subr.mxu0 0.0
      %1260 = vmatpush2.msra.mxu0 0.0
      %1261 = vmatprep.subr.mxu0 0.0
      %1262 = vmatpush2.msra.mxu0 0.0
      %1263 = vmatprep.mubr.f32.mxu0 0.0
      %1264 = vmatmul.mubr.f32.gmra.mxu0 %v1182
      %v1265 = vpop.f32.mrf.mxu0
      %v1266 = vadd.f32 0.0, %v1265
      %v1267 = vpop.f32.mrf.mxu0
      %1268 = vmatprep.mubr.f32.mxu0 0.0
      %1269 = vmatmul.mubr.f32.gmra.mxu0 %v1185
      %v1270 = vpop.f32.mrf.mxu0
      %v1271 = vadd.f32 0.0, %v1270
      %v1272 = vpop.f32.mrf.mxu0
      %1273 = vmatprep.mubr.f32.mxu0 0.0
      %1274 = vmatmul.mubr.f32.gmra.mxu0 %v1188
      %v1275 = vpop.f32.mrf.mxu0
      %v1276 = vadd.f32 0.0, %v1275
      %v1277 = vpop.f32.mrf.mxu0
      %1278 = vmatprep.mubr.f32.mxu0 0.0
      %1279 = vmatmul.mubr.f32.gmra.mxu0 %v1191
      %v1280 = vpop.f32.mrf.mxu0
      %v1281 = vadd.f32 0.0, %v1280
      %v1282 = vpop.f32.mrf.mxu0
      %1283 = vmatprep.mubr.f32.mxu0 0.0
      %1284 = vmatmul.mubr.f32.gmra.mxu0 %v1194
      %v1285 = vpop.f32.mrf.mxu0
      %v1286 = vadd.f32 0.0, %v1285
      %v1287 = vpop.f32.mrf.mxu0
      %1288 = vdwg.mxu0
      %v1289 = vadd.f32 %v1051, %v1266
      %v1290 = vadd.f32 %v1052, %v1271
      %v1291 = vadd.f32 %v1053, %v1276
      %v1292 = vadd.f32 %v1054, %v1281
      %v1293 = vadd.f32 %v1055, %v1286
      %s1294 = scalar_lea.vmem %s4, 200
      %v1295 = vld [vmem:[%s1294] sm:$0xff]
      %v1296 = vld [vmem:[%s1294 + $0x8] sm:$0xff]
      %v1297 = vld [vmem:[%s1294 + $0x10] sm:$0xff]
      %v1298 = vld [vmem:[%s1294 + $0x18] sm:$0xff]
      %v1299 = vld [vmem:[%s1294 + $0x20] sm:$0x1]
      %v1301 = vsel %vm116, %v1295, 0
      %v1304 = vsel %vm116, %v1296, 0
      %v1307 = vsel %vm116, %v1297, 0
      %v1310 = vsel %vm116, %v1298, 0
      %v1313 = vsel %vm116, %v1299, 0
      %1315 = vmatprep.subr.mxu0 0.0
      %1316 = vmatpush1.msra.mxu0 0.0
      %1317 = vmatprep.subr.mxu0 0.0
      %1318 = vmatpush1.msra.mxu0 0.0
      %1319 = vmatprep.subr.mxu0 0.0
      %1320 = vmatpush1.msra.mxu0 0.0
      %1321 = vmatprep.subr.mxu0 0.0
      %1322 = vmatpush1.msra.mxu0 %v134
      %1323 = vmatprep.subr.mxu0 0.0
      %1324 = vmatpush1.msra.mxu0 %v109
      %1325 = vmatprep.subr.mxu0 0.0
      %1326 = vmatpush1.msra.mxu0 %v108
      %1327 = vmatprep.subr.mxu0 0.0
      %1328 = vmatpush1.msra.mxu0 %v107
      %1329 = vmatprep.subr.mxu0 0.0
      %1330 = vmatpush1.msra.mxu0 %v106
      %1331 = vmatprep.subr.mxu0 0.0
      %1332 = vmatpush1.msra.mxu0 %v105
      %1333 = vmatprep.subr.mxu0 0.0
      %1334 = vmatpush1.msra.mxu0 %v104
      %1335 = vmatprep.subr.mxu0 0.0
      %1336 = vmatpush1.msra.mxu0 %v103
      %1337 = vmatprep.subr.mxu0 0.0
      %1338 = vmatpush1.msra.mxu0 %v102
      %1339 = vmatprep.subr.mxu0 0.0
      %1340 = vmatpush1.msra.mxu0 %v101
      %1341 = vmatprep.subr.mxu0 0.0
      %1342 = vmatpush1.msra.mxu0 %v100
      %1343 = vmatprep.subr.mxu0 0.0
      %1344 = vmatpush1.msra.mxu0 %v99
      %1345 = vmatprep.subr.mxu0 0.0
      %1346 = vmatpush1.msra.mxu0 %v98
      %1347 = vmatprep.subr.mxu0 0.0
      %1348 = vmatpush2.msra.mxu0 0.0
      %1349 = vmatprep.subr.mxu0 0.0
      %1350 = vmatpush2.msra.mxu0 0.0
      %1351 = vmatprep.subr.mxu0 0.0
      %1352 = vmatpush2.msra.mxu0 0.0
      %1353 = vmatprep.subr.mxu0 0.0
      %1354 = vmatpush2.msra.mxu0 0.0
      %1355 = vmatprep.subr.mxu0 0.0
      %1356 = vmatpush2.msra.mxu0 0.0
      %1357 = vmatprep.subr.mxu0 0.0
      %1358 = vmatpush2.msra.mxu0 0.0
      %1359 = vmatprep.subr.mxu0 0.0
      %1360 = vmatpush2.msra.mxu0 0.0
      %1361 = vmatprep.subr.mxu0 0.0
      %1362 = vmatpush2.msra.mxu0 0.0
      %1363 = vmatprep.subr.mxu0 0.0
      %1364 = vmatpush2.msra.mxu0 0.0
      %1365 = vmatprep.subr.mxu0 0.0
      %1366 = vmatpush2.msra.mxu0 0.0
      %1367 = vmatprep.subr.mxu0 0.0
      %1368 = vmatpush2.msra.mxu0 0.0
      %1369 = vmatprep.subr.mxu0 0.0
      %1370 = vmatpush2.msra.mxu0 0.0
      %1371 = vmatprep.subr.mxu0 0.0
      %1372 = vmatpush2.msra.mxu0 0.0
      %1373 = vmatprep.subr.mxu0 0.0
      %1374 = vmatpush2.msra.mxu0 0.0
      %1375 = vmatprep.subr.mxu0 0.0
      %1376 = vmatpush2.msra.mxu0 0.0
      %1377 = vmatprep.subr.mxu0 0.0
      %1378 = vmatpush2.msra.mxu0 0.0
      %1379 = vmatprep.mubr.f32.mxu0 0.0
      %1380 = vmatmul.mubr.f32.gmra.mxu0 %v1301
      %v1381 = vpop.f32.mrf.mxu0
      %v1382 = vadd.f32 0.0, %v1381
      %v1383 = vpop.f32.mrf.mxu0
      %1384 = vmatprep.mubr.f32.mxu0 0.0
      %1385 = vmatmul.mubr.f32.gmra.mxu0 %v1304
      %v1386 = vpop.f32.mrf.mxu0
      %v1387 = vadd.f32 0.0, %v1386
      %v1388 = vpop.f32.mrf.mxu0
      %1389 = vmatprep.mubr.f32.mxu0 0.0
      %1390 = vmatmul.mubr.f32.gmra.mxu0 %v1307
      %v1391 = vpop.f32.mrf.mxu0
      %v1392 = vadd.f32 0.0, %v1391
      %v1393 = vpop.f32.mrf.mxu0
      %1394 = vmatprep.mubr.f32.mxu0 0.0
      %1395 = vmatmul.mubr.f32.gmra.mxu0 %v1310
      %v1396 = vpop.f32.mrf.mxu0
      %v1397 = vadd.f32 0.0, %v1396
      %v1398 = vpop.f32.mrf.mxu0
      %1399 = vmatprep.mubr.f32.mxu0 0.0
      %1400 = vmatmul.mubr.f32.gmra.mxu0 %v1313
      %v1401 = vpop.f32.mrf.mxu0
      %v1402 = vadd.f32 0.0, %v1401
      %v1403 = vpop.f32.mrf.mxu0
      %1404 = vdwg.mxu0
      %s1405 = scalar_lea.vmem %s5, 520
      %v1406 = vld [vmem:[%s1405] sm:$0xff]
      %v1407 = vld [vmem:[%s1405 + $0x8] sm:$0xff]
      %v1408 = vld [vmem:[%s1405 + $0x10] sm:$0xff]
      %v1409 = vld [vmem:[%s1405 + $0x18] sm:$0xff]
      %v1410 = vld [vmem:[%s1405 + $0x20] sm:$0xff]
      %v1411 = vld [vmem:[%s1405 + $0x28] sm:$0xff]
      %v1412 = vld [vmem:[%s1405 + $0x30] sm:$0xff]
      %v1413 = vld [vmem:[%s1405 + $0x38] sm:$0xff]
      %v1414 = vld [vmem:[%s1405 + $0x40] sm:$0xff]
      %v1415 = vld [vmem:[%s1405 + $0x48] sm:$0xff]
      %v1416 = vld [vmem:[%s1405 + $0x50] sm:$0xff]
      %v1417 = vld [vmem:[%s1405 + $0x58] sm:$0xff]
      %v1418 = vld [vmem:[%s1405 + $0x60] sm:$0x1f]
      %v1420 = vsel %vm116, %v1382, 0
      %v1423 = vsel %vm116, %v1387, 0
      %v1426 = vsel %vm116, %v1392, 0
      %v1429 = vsel %vm116, %v1397, 0
      %v1432 = vsel %vm116, %v1402, 0
      %v1435 = vsel %vm132, %v1418, 0
      %1437 = vmatprep.subr.mxu0 0.0
      %1438 = vmatpush1.msra.mxu0 0.0
      %1439 = vmatprep.subr.mxu0 0.0
      %1440 = vmatpush1.msra.mxu0 0.0
      %1441 = vmatprep.subr.mxu0 0.0
      %1442 = vmatpush1.msra.mxu0 0.0
      %1443 = vmatprep.subr.mxu0 0.0
      %1444 = vmatpush1.msra.mxu0 %v1435
      %1445 = vmatprep.subr.mxu0 0.0
      %1446 = vmatpush1.msra.mxu0 %v1417
      %1447 = vmatprep.subr.mxu0 0.0
      %1448 = vmatpush1.msra.mxu0 %v1416
      %1449 = vmatprep.subr.mxu0 0.0
      %1450 = vmatpush1.msra.mxu0 %v1415
      %1451 = vmatprep.subr.mxu0 0.0
      %1452 = vmatpush1.msra.mxu0 %v1414
      %1453 = vmatprep.subr.mxu0 0.0
      %1454 = vmatpush1.msra.mxu0 %v1413
      %1455 = vmatprep.subr.mxu0 0.0
      %1456 = vmatpush1.msra.mxu0 %v1412
      %1457 = vmatprep.subr.mxu0 0.0
      %1458 = vmatpush1.msra.mxu0 %v1411
      %1459 = vmatprep.subr.mxu0 0.0
      %1460 = vmatpush1.msra.mxu0 %v1410
      %1461 = vmatprep.subr.mxu0 0.0
      %1462 = vmatpush1.msra.mxu0 %v1409
      %1463 = vmatprep.subr.mxu0 0.0
      %1464 = vmatpush1.msra.mxu0 %v1408
      %1465 = vmatprep.subr.mxu0 0.0
      %1466 = vmatpush1.msra.mxu0 %v1407
      %1467 = vmatprep.subr.mxu0 0.0
      %1468 = vmatpush1.msra.mxu0 %v1406
      %1469 = vmatprep.subr.mxu0 0.0
      %1470 = vmatpush2.msra.mxu0 0.0
      %1471 = vmatprep.subr.mxu0 0.0
      %1472 = vmatpush2.msra.mxu0 0.0
      %1473 = vmatprep.subr.mxu0 0.0
      %1474 = vmatpush2.msra.mxu0 0.0
      %1475 = vmatprep.subr.mxu0 0.0
      %1476 = vmatpush2.msra.mxu0 0.0
      %1477 = vmatprep.subr.mxu0 0.0
      %1478 = vmatpush2.msra.mxu0 0.0
      %1479 = vmatprep.subr.mxu0 0.0
      %1480 = vmatpush2.msra.mxu0 0.0
      %1481 = vmatprep.subr.mxu0 0.0
      %1482 = vmatpush2.msra.mxu0 0.0
      %1483 = vmatprep.subr.mxu0 0.0
      %1484 = vmatpush2.msra.mxu0 0.0
      %1485 = vmatprep.subr.mxu0 0.0
      %1486 = vmatpush2.msra.mxu0 0.0
      %1487 = vmatprep.subr.mxu0 0.0
      %1488 = vmatpush2.msra.mxu0 0.0
      %1489 = vmatprep.subr.mxu0 0.0
      %1490 = vmatpush2.msra.mxu0 0.0
      %1491 = vmatprep.subr.mxu0 0.0
      %1492 = vmatpush2.msra.mxu0 0.0
      %1493 = vmatprep.subr.mxu0 0.0
      %1494 = vmatpush2.msra.mxu0 0.0
      %1495 = vmatprep.subr.mxu0 0.0
      %1496 = vmatpush2.msra.mxu0 0.0
      %1497 = vmatprep.subr.mxu0 0.0
      %1498 = vmatpush2.msra.mxu0 0.0
      %1499 = vmatprep.subr.mxu0 0.0
      %1500 = vmatpush2.msra.mxu0 0.0
      %1501 = vmatprep.mubr.f32.mxu0 0.0
      %1502 = vmatmul.mubr.f32.gmra.mxu0 %v1420
      %v1503 = vpop.f32.mrf.mxu0
      %v1504 = vadd.f32 0.0, %v1503
      %v1505 = vpop.f32.mrf.mxu0
      %1506 = vmatprep.mubr.f32.mxu0 0.0
      %1507 = vmatmul.mubr.f32.gmra.mxu0 %v1423
      %v1508 = vpop.f32.mrf.mxu0
      %v1509 = vadd.f32 0.0, %v1508
      %v1510 = vpop.f32.mrf.mxu0
      %1511 = vmatprep.mubr.f32.mxu0 0.0
      %1512 = vmatmul.mubr.f32.gmra.mxu0 %v1426
      %v1513 = vpop.f32.mrf.mxu0
      %v1514 = vadd.f32 0.0, %v1513
      %v1515 = vpop.f32.mrf.mxu0
      %1516 = vmatprep.mubr.f32.mxu0 0.0
      %1517 = vmatmul.mubr.f32.gmra.mxu0 %v1429
      %v1518 = vpop.f32.mrf.mxu0
      %v1519 = vadd.f32 0.0, %v1518
      %v1520 = vpop.f32.mrf.mxu0
      %1521 = vmatprep.mubr.f32.mxu0 0.0
      %1522 = vmatmul.mubr.f32.gmra.mxu0 %v1432
      %v1523 = vpop.f32.mrf.mxu0
      %v1524 = vadd.f32 0.0, %v1523
      %v1525 = vpop.f32.mrf.mxu0
      %1526 = vdwg.mxu0
      %v1527 = vadd.f32 %v1289, %v1504
      %v1528 = vadd.f32 %v1290, %v1509
      %v1529 = vadd.f32 %v1291, %v1514
      %v1530 = vadd.f32 %v1292, %v1519
      %v1531 = vadd.f32 %v1293, %v1524
      %s1532 = scalar_lea.vmem %s4, 240
      %v1533 = vld [vmem:[%s1532] sm:$0xff]
      %v1534 = vld [vmem:[%s1532 + $0x8] sm:$0xff]
      %v1535 = vld [vmem:[%s1532 + $0x10] sm:$0xff]
      %v1536 = vld [vmem:[%s1532 + $0x18] sm:$0xff]
      %v1537 = vld [vmem:[%s1532 + $0x20] sm:$0x1]
      %v1539 = vsel %vm116, %v1533, 0
      %v1542 = vsel %vm116, %v1534, 0
      %v1545 = vsel %vm116, %v1535, 0
      %v1548 = vsel %vm116, %v1536, 0
      %v1551 = vsel %vm116, %v1537, 0
      %1553 = vmatprep.subr.mxu0 0.0
      %1554 = vmatpush1.msra.mxu0 0.0
      %1555 = vmatprep.subr.mxu0 0.0
      %1556 = vmatpush1.msra.mxu0 0.0
      %1557 = vmatprep.subr.mxu0 0.0
      %1558 = vmatpush1.msra.mxu0 0.0
      %1559 = vmatprep.subr.mxu0 0.0
      %1560 = vmatpush1.msra.mxu0 %v134
      %1561 = vmatprep.subr.mxu0 0.0
      %1562 = vmatpush1.msra.mxu0 %v109
      %1563 = vmatprep.subr.mxu0 0.0
      %1564 = vmatpush1.msra.mxu0 %v108
      %1565 = vmatprep.subr.mxu0 0.0
      %1566 = vmatpush1.msra.mxu0 %v107
      %1567 = vmatprep.subr.mxu0 0.0
      %1568 = vmatpush1.msra.mxu0 %v106
      %1569 = vmatprep.subr.mxu0 0.0
      %1570 = vmatpush1.msra.mxu0 %v105
      %1571 = vmatprep.subr.mxu0 0.0
      %1572 = vmatpush1.msra.mxu0 %v104
      %1573 = vmatprep.subr.mxu0 0.0
      %1574 = vmatpush1.msra.mxu0 %v103
      %1575 = vmatprep.subr.mxu0 0.0
      %1576 = vmatpush1.msra.mxu0 %v102
      %1577 = vmatprep.subr.mxu0 0.0
      %1578 = vmatpush1.msra.mxu0 %v101
      %1579 = vmatprep.subr.mxu0 0.0
      %1580 = vmatpush1.msra.mxu0 %v100
      %1581 = vmatprep.subr.mxu0 0.0
      %1582 = vmatpush1.msra.mxu0 %v99
      %1583 = vmatprep.subr.mxu0 0.0
      %1584 = vmatpush1.msra.mxu0 %v98
      %1585 = vmatprep.subr.mxu0 0.0
      %1586 = vmatpush2.msra.mxu0 0.0
      %1587 = vmatprep.subr.mxu0 0.0
      %1588 = vmatpush2.msra.mxu0 0.0
      %1589 = vmatprep.subr.mxu0 0.0
      %1590 = vmatpush2.msra.mxu0 0.0
      %1591 = vmatprep.subr.mxu0 0.0
      %1592 = vmatpush2.msra.mxu0 0.0
      %1593 = vmatprep.subr.mxu0 0.0
      %1594 = vmatpush2.msra.mxu0 0.0
      %1595 = vmatprep.subr.mxu0 0.0
      %1596 = vmatpush2.msra.mxu0 0.0
      %1597 = vmatprep.subr.mxu0 0.0
      %1598 = vmatpush2.msra.mxu0 0.0
      %1599 = vmatprep.subr.mxu0 0.0
      %1600 = vmatpush2.msra.mxu0 0.0
      %1601 = vmatprep.subr.mxu0 0.0
      %1602 = vmatpush2.msra.mxu0 0.0
      %1603 = vmatprep.subr.mxu0 0.0
      %1604 = vmatpush2.msra.mxu0 0.0
      %1605 = vmatprep.subr.mxu0 0.0
      %1606 = vmatpush2.msra.mxu0 0.0
      %1607 = vmatprep.subr.mxu0 0.0
      %1608 = vmatpush2.msra.mxu0 0.0
      %1609 = vmatprep.subr.mxu0 0.0
      %1610 = vmatpush2.msra.mxu0 0.0
      %1611 = vmatprep.subr.mxu0 0.0
      %1612 = vmatpush2.msra.mxu0 0.0
      %1613 = vmatprep.subr.mxu0 0.0
      %1614 = vmatpush2.msra.mxu0 0.0
      %1615 = vmatprep.subr.mxu0 0.0
      %1616 = vmatpush2.msra.mxu0 0.0
      %1617 = vmatprep.mubr.f32.mxu0 0.0
      %1618 = vmatmul.mubr.f32.gmra.mxu0 %v1539
      %v1619 = vpop.f32.mrf.mxu0
      %v1620 = vadd.f32 0.0, %v1619
      %v1621 = vpop.f32.mrf.mxu0
      %1622 = vmatprep.mubr.f32.mxu0 0.0
      %1623 = vmatmul.mubr.f32.gmra.mxu0 %v1542
      %v1624 = vpop.f32.mrf.mxu0
      %v1625 = vadd.f32 0.0, %v1624
      %v1626 = vpop.f32.mrf.mxu0
      %1627 = vmatprep.mubr.f32.mxu0 0.0
      %1628 = vmatmul.mubr.f32.gmra.mxu0 %v1545
      %v1629 = vpop.f32.mrf.mxu0
      %v1630 = vadd.f32 0.0, %v1629
      %v1631 = vpop.f32.mrf.mxu0
      %1632 = vmatprep.mubr.f32.mxu0 0.0
      %1633 = vmatmul.mubr.f32.gmra.mxu0 %v1548
      %v1634 = vpop.f32.mrf.mxu0
      %v1635 = vadd.f32 0.0, %v1634
      %v1636 = vpop.f32.mrf.mxu0
      %1637 = vmatprep.mubr.f32.mxu0 0.0
      %1638 = vmatmul.mubr.f32.gmra.mxu0 %v1551
      %v1639 = vpop.f32.mrf.mxu0
      %v1640 = vadd.f32 0.0, %v1639
      %v1641 = vpop.f32.mrf.mxu0
      %1642 = vdwg.mxu0
      %s1643 = scalar_lea.vmem %s5, 624
      %v1644 = vld [vmem:[%s1643] sm:$0xff]
      %v1645 = vld [vmem:[%s1643 + $0x8] sm:$0xff]
      %v1646 = vld [vmem:[%s1643 + $0x10] sm:$0xff]
      %v1647 = vld [vmem:[%s1643 + $0x18] sm:$0xff]
      %v1648 = vld [vmem:[%s1643 + $0x20] sm:$0xff]
      %v1649 = vld [vmem:[%s1643 + $0x28] sm:$0xff]
      %v1650 = vld [vmem:[%s1643 + $0x30] sm:$0xff]
      %v1651 = vld [vmem:[%s1643 + $0x38] sm:$0xff]
      %v1652 = vld [vmem:[%s1643 + $0x40] sm:$0xff]
      %v1653 = vld [vmem:[%s1643 + $0x48] sm:$0xff]
      %v1654 = vld [vmem:[%s1643 + $0x50] sm:$0xff]
      %v1655 = vld [vmem:[%s1643 + $0x58] sm:$0xff]
      %v1656 = vld [vmem:[%s1643 + $0x60] sm:$0x1f]
      %v1658 = vsel %vm116, %v1620, 0
      %v1661 = vsel %vm116, %v1625, 0
      %v1664 = vsel %vm116, %v1630, 0
      %v1667 = vsel %vm116, %v1635, 0
      %v1670 = vsel %vm116, %v1640, 0
      %v1673 = vsel %vm132, %v1656, 0
      %1675 = vmatprep.subr.mxu0 0.0
      %1676 = vmatpush1.msra.mxu0 0.0
      %1677 = vmatprep.subr.mxu0 0.0
      %1678 = vmatpush1.msra.mxu0 0.0
      %1679 = vmatprep.subr.mxu0 0.0
      %1680 = vmatpush1.msra.mxu0 0.0
      %1681 = vmatprep.subr.mxu0 0.0
      %1682 = vmatpush1.msra.mxu0 %v1673
      %1683 = vmatprep.subr.mxu0 0.0
      %1684 = vmatpush1.msra.mxu0 %v1655
      %1685 = vmatprep.subr.mxu0 0.0
      %1686 = vmatpush1.msra.mxu0 %v1654
      %1687 = vmatprep.subr.mxu0 0.0
      %1688 = vmatpush1.msra.mxu0 %v1653
      %1689 = vmatprep.subr.mxu0 0.0
      %1690 = vmatpush1.msra.mxu0 %v1652
      %1691 = vmatprep.subr.mxu0 0.0
      %1692 = vmatpush1.msra.mxu0 %v1651
      %1693 = vmatprep.subr.mxu0 0.0
      %1694 = vmatpush1.msra.mxu0 %v1650
      %1695 = vmatprep.subr.mxu0 0.0
      %1696 = vmatpush1.msra.mxu0 %v1649
      %1697 = vmatprep.subr.mxu0 0.0
      %1698 = vmatpush1.msra.mxu0 %v1648
      %1699 = vmatprep.subr.mxu0 0.0
      %1700 = vmatpush1.msra.mxu0 %v1647
      %1701 = vmatprep.subr.mxu0 0.0
      %1702 = vmatpush1.msra.mxu0 %v1646
      %1703 = vmatprep.subr.mxu0 0.0
      %1704 = vmatpush1.msra.mxu0 %v1645
      %1705 = vmatprep.subr.mxu0 0.0
      %1706 = vmatpush1.msra.mxu0 %v1644
      %1707 = vmatprep.subr.mxu0 0.0
      %1708 = vmatpush2.msra.mxu0 0.0
      %1709 = vmatprep.subr.mxu0 0.0
      %1710 = vmatpush2.msra.mxu0 0.0
      %1711 = vmatprep.subr.mxu0 0.0
      %1712 = vmatpush2.msra.mxu0 0.0
      %1713 = vmatprep.subr.mxu0 0.0
      %1714 = vmatpush2.msra.mxu0 0.0
      %1715 = vmatprep.subr.mxu0 0.0
      %1716 = vmatpush2.msra.mxu0 0.0
      %1717 = vmatprep.subr.mxu0 0.0
      %1718 = vmatpush2.msra.mxu0 0.0
      %1719 = vmatprep.subr.mxu0 0.0
      %1720 = vmatpush2.msra.mxu0 0.0
      %1721 = vmatprep.subr.mxu0 0.0
      %1722 = vmatpush2.msra.mxu0 0.0
      %1723 = vmatprep.subr.mxu0 0.0
      %1724 = vmatpush2.msra.mxu0 0.0
      %1725 = vmatprep.subr.mxu0 0.0
      %1726 = vmatpush2.msra.mxu0 0.0
      %1727 = vmatprep.subr.mxu0 0.0
      %1728 = vmatpush2.msra.mxu0 0.0
      %1729 = vmatprep.subr.mxu0 0.0
      %1730 = vmatpush2.msra.mxu0 0.0
      %1731 = vmatprep.subr.mxu0 0.0
      %1732 = vmatpush2.msra.mxu0 0.0
      %1733 = vmatprep.subr.mxu0 0.0
      %1734 = vmatpush2.msra.mxu0 0.0
      %1735 = vmatprep.subr.mxu0 0.0
      %1736 = vmatpush2.msra.mxu0 0.0
      %1737 = vmatprep.subr.mxu0 0.0
      %1738 = vmatpush2.msra.mxu0 0.0
      %1739 = vmatprep.mubr.f32.mxu0 0.0
      %1740 = vmatmul.mubr.f32.gmra.mxu0 %v1658
      %v1741 = vpop.f32.mrf.mxu0
      %v1742 = vadd.f32 0.0, %v1741
      %v1743 = vpop.f32.mrf.mxu0
      %1744 = vmatprep.mubr.f32.mxu0 0.0
      %1745 = vmatmul.mubr.f32.gmra.mxu0 %v1661
      %v1746 = vpop.f32.mrf.mxu0
      %v1747 = vadd.f32 0.0, %v1746
      %v1748 = vpop.f32.mrf.mxu0
      %1749 = vmatprep.mubr.f32.mxu0 0.0
      %1750 = vmatmul.mubr.f32.gmra.mxu0 %v1664
      %v1751 = vpop.f32.mrf.mxu0
      %v1752 = vadd.f32 0.0, %v1751
      %v1753 = vpop.f32.mrf.mxu0
      %1754 = vmatprep.mubr.f32.mxu0 0.0
      %1755 = vmatmul.mubr.f32.gmra.mxu0 %v1667
      %v1756 = vpop.f32.mrf.mxu0
      %v1757 = vadd.f32 0.0, %v1756
      %v1758 = vpop.f32.mrf.mxu0
      %1759 = vmatprep.mubr.f32.mxu0 0.0
      %1760 = vmatmul.mubr.f32.gmra.mxu0 %v1670
      %v1761 = vpop.f32.mrf.mxu0
      %v1762 = vadd.f32 0.0, %v1761
      %v1763 = vpop.f32.mrf.mxu0
      %1764 = vdwg.mxu0
      %v1765 = vadd.f32 %v1527, %v1742
      %v1766 = vadd.f32 %v1528, %v1747
      %v1767 = vadd.f32 %v1529, %v1752
      %v1768 = vadd.f32 %v1530, %v1757
      %v1769 = vadd.f32 %v1531, %v1762
      %v1770 = vld [vmem:[%s6] sm:$0x1]
      %v1772 = vlaneseq
      %v1773 = vshrl.u32 %v1772, 7
      %v1774 = vsub.s32 0, %v1773
      %v1775 = vrot.slane %v1770, %v1774
      %v1777 = vadd.f32 %v1765, %v1775
      %v1778 = vadd.f32 %v1766, %v1775
      %v1779 = vadd.f32 %v1767, %v1775
      %v1780 = vadd.f32 %v1768, %v1775
      %v1781 = vadd.f32 %v1769, %v1775
      %v1782 = vmax.f32 %v1777, 0.0
      %v1783 = vmax.f32 %v1778, 0.0
      %v1784 = vmax.f32 %v1779, 0.0
      %v1785 = vmax.f32 %v1780, 0.0
      %v1786 = vmax.f32 %v1781, 0.0
      %v1787 = vld [vmem:[%s7] sm:$0xff]
      %v1788 = vld [vmem:[%s7 + $0x8] sm:$0x7]
      %vm1789 = vcmask 269312
      %v1791 = vsel %vm1789, %v1787, 0
      %v1794 = vsel %vm1789, %v1788, 0
      %vm1796 = vcmask 1040384
      %v1798 = vsel %vm1796, %v1786, 0
      %1800 = vmatprep.subr.mxu0 0.0
      %1801 = vmatpush1.msra.mxu0 0.0
      %1802 = vmatprep.subr.mxu0 0.0
      %1803 = vmatpush1.msra.mxu0 0.0
      %1804 = vmatprep.subr.mxu0 0.0
      %1805 = vmatpush1.msra.mxu0 0.0
      %1806 = vmatprep.subr.mxu0 0.0
      %1807 = vmatpush1.msra.mxu0 0.0
      %1808 = vmatprep.subr.mxu0 0.0
      %1809 = vmatpush1.msra.mxu0 0.0
      %1810 = vmatprep.subr.mxu0 0.0
      %1811 = vmatpush1.msra.mxu0 0.0
      %1812 = vmatprep.subr.mxu0 0.0
      %1813 = vmatpush1.msra.mxu0 0.0
      %1814 = vmatprep.subr.mxu0 0.0
      %1815 = vmatpush1.msra.mxu0 0.0
      %1816 = vmatprep.subr.mxu0 0.0
      %1817 = vmatpush1.msra.mxu0 0.0
      %1818 = vmatprep.subr.mxu0 0.0
      %1819 = vmatpush1.msra.mxu0 0.0
      %1820 = vmatprep.subr.mxu0 0.0
      %1821 = vmatpush1.msra.mxu0 0.0
      %1822 = vmatprep.subr.mxu0 0.0
      %1823 = vmatpush1.msra.mxu0 %v1798
      %1824 = vmatprep.subr.mxu0 0.0
      %1825 = vmatpush1.msra.mxu0 %v1785
      %1826 = vmatprep.subr.mxu0 0.0
      %1827 = vmatpush1.msra.mxu0 %v1784
      %1828 = vmatprep.subr.mxu0 0.0
      %1829 = vmatpush1.msra.mxu0 %v1783
      %1830 = vmatprep.subr.mxu0 0.0
      %1831 = vmatpush1.msra.mxu0 %v1782
      %1832 = vmatprep.subr.mxu0 0.0
      %1833 = vmatpush2.msra.mxu0 0.0
      %1834 = vmatprep.subr.mxu0 0.0
      %1835 = vmatpush2.msra.mxu0 0.0
      %1836 = vmatprep.subr.mxu0 0.0
      %1837 = vmatpush2.msra.mxu0 0.0
      %1838 = vmatprep.subr.mxu0 0.0
      %1839 = vmatpush2.msra.mxu0 0.0
      %1840 = vmatprep.subr.mxu0 0.0
      %1841 = vmatpush2.msra.mxu0 0.0
      %1842 = vmatprep.subr.mxu0 0.0
      %1843 = vmatpush2.msra.mxu0 0.0
      %1844 = vmatprep.subr.mxu0 0.0
      %1845 = vmatpush2.msra.mxu0 0.0
      %1846 = vmatprep.subr.mxu0 0.0
      %1847 = vmatpush2.msra.mxu0 0.0
      %1848 = vmatprep.subr.mxu0 0.0
      %1849 = vmatpush2.msra.mxu0 0.0
      %1850 = vmatprep.subr.mxu0 0.0
      %1851 = vmatpush2.msra.mxu0 0.0
      %1852 = vmatprep.subr.mxu0 0.0
      %1853 = vmatpush2.msra.mxu0 0.0
      %1854 = vmatprep.subr.mxu0 0.0
      %1855 = vmatpush2.msra.mxu0 0.0
      %1856 = vmatprep.subr.mxu0 0.0
      %1857 = vmatpush2.msra.mxu0 0.0
      %1858 = vmatprep.subr.mxu0 0.0
      %1859 = vmatpush2.msra.mxu0 0.0
      %1860 = vmatprep.subr.mxu0 0.0
      %1861 = vmatpush2.msra.mxu0 0.0
      %1862 = vmatprep.subr.mxu0 0.0
      %1863 = vmatpush2.msra.mxu0 0.0
      %1864 = vmatprep.mubr.f32.mxu0 0.0
      %1865 = vmatmul.mubr.f32.gmra.mxu0 %v1791
      %v1866 = vpop.f32.mrf.mxu0
      %v1867 = vadd.f32 0.0, %v1866
      %v1868 = vpop.f32.mrf.mxu0
      %1869 = vmatprep.mubr.f32.mxu0 0.0
      %1870 = vmatmul.mubr.f32.gmra.mxu0 %v1794
      %v1871 = vpop.f32.mrf.mxu0
      %v1872 = vadd.f32 0.0, %v1871
      %v1873 = vpop.f32.mrf.mxu0
      %1874 = vdwg.mxu0
      %v1875 = vld [vmem:[%s8] sm:$0xff]
      %v1876 = vld [vmem:[%s8 + $0x8] sm:$0xff]
      %v1877 = vld [vmem:[%s8 + $0x10] sm:$0xff]
      %v1878 = vld [vmem:[%s8 + $0x18] sm:$0xff]
      %v1879 = vld [vmem:[%s8 + $0x20] sm:$0xff]
      %v1880 = vld [vmem:[%s8 + $0x28] sm:$0xff]
      %v1881 = vld [vmem:[%s8 + $0x30] sm:$0xff]
      %v1882 = vld [vmem:[%s8 + $0x38] sm:$0xff]
      %v1883 = vld [vmem:[%s8 + $0x40] sm:$0xff]
      %v1884 = vld [vmem:[%s8 + $0x48] sm:$0xff]
      %v1885 = vld [vmem:[%s8 + $0x50] sm:$0xff]
      %v1886 = vld [vmem:[%s8 + $0x58] sm:$0xff]
      %v1887 = vld [vmem:[%s8 + $0x60] sm:$0x7]
      %s1888 = scalar_lea.vmem %s7, 16
      %v1889 = vld [vmem:[%s1888] sm:$0xff]
      %v1890 = vld [vmem:[%s1888 + $0x8] sm:$0x7]
      %v1892 = vsel %vm1789, %v1889, 0
      %v1895 = vsel %vm1789, %v1890, 0
      %1897 = vmatprep.subr.mxu0 0.0
      %1898 = vmatpush1.msra.mxu0 0.0
      %1899 = vmatprep.subr.mxu0 0.0
      %1900 = vmatpush1.msra.mxu0 0.0
      %1901 = vmatprep.subr.mxu0 0.0
      %1902 = vmatpush1.msra.mxu0 0.0
      %1903 = vmatprep.subr.mxu0 0.0
      %1904 = vmatpush1.msra.mxu0 0.0
      %1905 = vmatprep.subr.mxu0 0.0
      %1906 = vmatpush1.msra.mxu0 0.0
      %1907 = vmatprep.subr.mxu0 0.0
      %1908 = vmatpush1.msra.mxu0 0.0
      %1909 = vmatprep.subr.mxu0 0.0
      %1910 = vmatpush1.msra.mxu0 0.0
      %1911 = vmatprep.subr.mxu0 0.0
      %1912 = vmatpush1.msra.mxu0 0.0
      %1913 = vmatprep.subr.mxu0 0.0
      %1914 = vmatpush1.msra.mxu0 0.0
      %1915 = vmatprep.subr.mxu0 0.0
      %1916 = vmatpush1.msra.mxu0 0.0
      %1917 = vmatprep.subr.mxu0 0.0
      %1918 = vmatpush1.msra.mxu0 0.0
      %1919 = vmatprep.subr.mxu0 0.0
      %1920 = vmatpush1.msra.mxu0 %v1798
      %1921 = vmatprep.subr.mxu0 0.0
      %1922 = vmatpush1.msra.mxu0 %v1785
      %1923 = vmatprep.subr.mxu0 0.0
      %1924 = vmatpush1.msra.mxu0 %v1784
      %1925 = vmatprep.subr.mxu0 0.0
      %1926 = vmatpush1.msra.mxu0 %v1783
      %1927 = vmatprep.subr.mxu0 0.0
      %1928 = vmatpush1.msra.mxu0 %v1782
      %1929 = vmatprep.subr.mxu0 0.0
      %1930 = vmatpush2.msra.mxu0 0.0
      %1931 = vmatprep.subr.mxu0 0.0
      %1932 = vmatpush2.msra.mxu0 0.0
      %1933 = vmatprep.subr.mxu0 0.0
      %1934 = vmatpush2.msra.mxu0 0.0
      %1935 = vmatprep.subr.mxu0 0.0
      %1936 = vmatpush2.msra.mxu0 0.0
      %1937 = vmatprep.subr.mxu0 0.0
      %1938 = vmatpush2.msra.mxu0 0.0
      %1939 = vmatprep.subr.mxu0 0.0
      %1940 = vmatpush2.msra.mxu0 0.0
      %1941 = vmatprep.subr.mxu0 0.0
      %1942 = vmatpush2.msra.mxu0 0.0
      %1943 = vmatprep.subr.mxu0 0.0
      %1944 = vmatpush2.msra.mxu0 0.0
      %1945 = vmatprep.subr.mxu0 0.0
      %1946 = vmatpush2.msra.mxu0 0.0
      %1947 = vmatprep.subr.mxu0 0.0
      %1948 = vmatpush2.msra.mxu0 0.0
      %1949 = vmatprep.subr.mxu0 0.0
      %1950 = vmatpush2.msra.mxu0 0.0
      %1951 = vmatprep.subr.mxu0 0.0
      %1952 = vmatpush2.msra.mxu0 0.0
      %1953 = vmatprep.subr.mxu0 0.0
      %1954 = vmatpush2.msra.mxu0 0.0
      %1955 = vmatprep.subr.mxu0 0.0
      %1956 = vmatpush2.msra.mxu0 0.0
      %1957 = vmatprep.subr.mxu0 0.0
      %1958 = vmatpush2.msra.mxu0 0.0
      %1959 = vmatprep.subr.mxu0 0.0
      %1960 = vmatpush2.msra.mxu0 0.0
      %1961 = vmatprep.mubr.f32.mxu0 0.0
      %1962 = vmatmul.mubr.f32.gmra.mxu0 %v1892
      %v1963 = vpop.f32.mrf.mxu0
      %v1964 = vadd.f32 0.0, %v1963
      %v1965 = vpop.f32.mrf.mxu0
      %1966 = vmatprep.mubr.f32.mxu0 0.0
      %1967 = vmatmul.mubr.f32.gmra.mxu0 %v1895
      %v1968 = vpop.f32.mrf.mxu0
      %v1969 = vadd.f32 0.0, %v1968
      %v1970 = vpop.f32.mrf.mxu0
      %1971 = vdwg.mxu0
      %s1972 = scalar_lea.vmem %s8, 104
      %v1973 = vld [vmem:[%s1972] sm:$0xff]
      %v1974 = vld [vmem:[%s1972 + $0x8] sm:$0xff]
      %v1975 = vld [vmem:[%s1972 + $0x10] sm:$0xff]
      %v1976 = vld [vmem:[%s1972 + $0x18] sm:$0xff]
      %v1977 = vld [vmem:[%s1972 + $0x20] sm:$0xff]
      %v1978 = vld [vmem:[%s1972 + $0x28] sm:$0xff]
      %v1979 = vld [vmem:[%s1972 + $0x30] sm:$0xff]
      %v1980 = vld [vmem:[%s1972 + $0x38] sm:$0xff]
      %v1981 = vld [vmem:[%s1972 + $0x40] sm:$0xff]
      %v1982 = vld [vmem:[%s1972 + $0x48] sm:$0xff]
      %v1983 = vld [vmem:[%s1972 + $0x50] sm:$0xff]
      %v1984 = vld [vmem:[%s1972 + $0x58] sm:$0xff]
      %v1985 = vld [vmem:[%s1972 + $0x60] sm:$0x7]
      %vm1986 = vcmask 809984
      %v1988 = vsel %vm1986, %v1964, 0
      %v1991 = vsel %vm1986, %v1969, 0
      %vm1993 = vcmask 1042432
      %v1995 = vsel %vm1993, %v1985, 0
      %1997 = vmatprep.subr.mxu0 0.0
      %1998 = vmatpush1.msra.mxu0 0.0
      %1999 = vmatprep.subr.mxu0 0.0
      %2000 = vmatpush1.msra.mxu0 0.0
      %2001 = vmatprep.subr.mxu0 0.0
      %2002 = vmatpush1.msra.mxu0 0.0
      %2003 = vmatprep.subr.mxu0 0.0
      %2004 = vmatpush1.msra.mxu0 %v1995
      %2005 = vmatprep.subr.mxu0 0.0
      %2006 = vmatpush1.msra.mxu0 %v1984
      %2007 = vmatprep.subr.mxu0 0.0
      %2008 = vmatpush1.msra.mxu0 %v1983
      %2009 = vmatprep.subr.mxu0 0.0
      %2010 = vmatpush1.msra.mxu0 %v1982
      %2011 = vmatprep.subr.mxu0 0.0
      %2012 = vmatpush1.msra.mxu0 %v1981
      %2013 = vmatprep.subr.mxu0 0.0
      %2014 = vmatpush1.msra.mxu0 %v1980
      %2015 = vmatprep.subr.mxu0 0.0
      %2016 = vmatpush1.msra.mxu0 %v1979
      %2017 = vmatprep.subr.mxu0 0.0
      %2018 = vmatpush1.msra.mxu0 %v1978
      %2019 = vmatprep.subr.mxu0 0.0
      %2020 = vmatpush1.msra.mxu0 %v1977
      %2021 = vmatprep.subr.mxu0 0.0
      %2022 = vmatpush1.msra.mxu0 %v1976
      %2023 = vmatprep.subr.mxu0 0.0
      %2024 = vmatpush1.msra.mxu0 %v1975
      %2025 = vmatprep.subr.mxu0 0.0
      %2026 = vmatpush1.msra.mxu0 %v1974
      %2027 = vmatprep.subr.mxu0 0.0
      %2028 = vmatpush1.msra.mxu0 %v1973
      %2029 = vmatprep.subr.mxu0 0.0
      %2030 = vmatpush2.msra.mxu0 0.0
      %2031 = vmatprep.subr.mxu0 0.0
      %2032 = vmatpush2.msra.mxu0 0.0
      %2033 = vmatprep.subr.mxu0 0.0
      %2034 = vmatpush2.msra.mxu0 0.0
      %2035 = vmatprep.subr.mxu0 0.0
      %2036 = vmatpush2.msra.mxu0 0.0
      %2037 = vmatprep.subr.mxu0 0.0
      %2038 = vmatpush2.msra.mxu0 0.0
      %2039 = vmatprep.subr.mxu0 0.0
      %2040 = vmatpush2.msra.mxu0 0.0
      %2041 = vmatprep.subr.mxu0 0.0
      %2042 = vmatpush2.msra.mxu0 0.0
      %2043 = vmatprep.subr.mxu0 0.0
      %2044 = vmatpush2.msra.mxu0 0.0
      %2045 = vmatprep.subr.mxu0 0.0
      %2046 = vmatpush2.msra.mxu0 0.0
      %2047 = vmatprep.subr.mxu0 0.0
      %2048 = vmatpush2.msra.mxu0 0.0
      %2049 = vmatprep.subr.mxu0 0.0
      %2050 = vmatpush2.msra.mxu0 0.0
      %2051 = vmatprep.subr.mxu0 0.0
      %2052 = vmatpush2.msra.mxu0 0.0
      %2053 = vmatprep.subr.mxu0 0.0
      %2054 = vmatpush2.msra.mxu0 0.0
      %2055 = vmatprep.subr.mxu0 0.0
      %2056 = vmatpush2.msra.mxu0 0.0
      %2057 = vmatprep.subr.mxu0 0.0
      %2058 = vmatpush2.msra.mxu0 0.0
      %2059 = vmatprep.subr.mxu0 0.0
      %2060 = vmatpush2.msra.mxu0 0.0
      %2061 = vmatprep.mubr.f32.mxu0 0.0
      %2062 = vmatmul.mubr.f32.gmra.mxu0 %v1988
      %v2063 = vpop.f32.mrf.mxu0
      %v2064 = vadd.f32 0.0, %v2063
      %v2065 = vpop.f32.mrf.mxu0
      %2066 = vmatprep.mubr.f32.mxu0 0.0
      %2067 = vmatmul.mubr.f32.gmra.mxu0 %v1991
      %v2068 = vpop.f32.mrf.mxu0
      %v2069 = vadd.f32 0.0, %v2068
      %v2070 = vpop.f32.mrf.mxu0
      %2071 = vdwg.mxu0
      %v2073 = vsel %vm1986, %v1867, 0
      %v2076 = vsel %vm1986, %v1872, 0
      %v2079 = vsel %vm1993, %v1887, 0
      %2081 = vmatprep.subr.mxu0 0.0
      %2082 = vmatpush1.msra.mxu0 0.0
      %2083 = vmatprep.subr.mxu0 0.0
      %2084 = vmatpush1.msra.mxu0 0.0
      %2085 = vmatprep.subr.mxu0 0.0
      %2086 = vmatpush1.msra.mxu0 0.0
      %2087 = vmatprep.subr.mxu0 0.0
      %2088 = vmatpush1.msra.mxu0 %v2079
      %2089 = vmatprep.subr.mxu0 0.0
      %2090 = vmatpush1.msra.mxu0 %v1886
      %2091 = vmatprep.subr.mxu0 0.0
      %2092 = vmatpush1.msra.mxu0 %v1885
      %2093 = vmatprep.subr.mxu0 0.0
      %2094 = vmatpush1.msra.mxu0 %v1884
      %2095 = vmatprep.subr.mxu0 0.0
      %2096 = vmatpush1.msra.mxu0 %v1883
      %2097 = vmatprep.subr.mxu0 0.0
      %2098 = vmatpush1.msra.mxu0 %v1882
      %2099 = vmatprep.subr.mxu0 0.0
      %2100 = vmatpush1.msra.mxu0 %v1881
      %2101 = vmatprep.subr.mxu0 0.0
      %2102 = vmatpush1.msra.mxu0 %v1880
      %2103 = vmatprep.subr.mxu0 0.0
      %2104 = vmatpush1.msra.mxu0 %v1879
      %2105 = vmatprep.subr.mxu0 0.0
      %2106 = vmatpush1.msra.mxu0 %v1878
      %2107 = vmatprep.subr.mxu0 0.0
      %2108 = vmatpush1.msra.mxu0 %v1877
      %2109 = vmatprep.subr.mxu0 0.0
      %2110 = vmatpush1.msra.mxu0 %v1876
      %2111 = vmatprep.subr.mxu0 0.0
      %2112 = vmatpush1.msra.mxu0 %v1875
      %2113 = vmatprep.subr.mxu0 0.0
      %2114 = vmatpush2.msra.mxu0 0.0
      %2115 = vmatprep.subr.mxu0 0.0
      %2116 = vmatpush2.msra.mxu0 0.0
      %2117 = vmatprep.subr.mxu0 0.0
      %2118 = vmatpush2.msra.mxu0 0.0
      %2119 = vmatprep.subr.mxu0 0.0
      %2120 = vmatpush2.msra.mxu0 0.0
      %2121 = vmatprep.subr.mxu0 0.0
      %2122 = vmatpush2.msra.mxu0 0.0
      %2123 = vmatprep.subr.mxu0 0.0
      %2124 = vmatpush2.msra.mxu0 0.0
      %2125 = vmatprep.subr.mxu0 0.0
      %2126 = vmatpush2.msra.mxu0 0.0
      %2127 = vmatprep.subr.mxu0 0.0
      %2128 = vmatpush2.msra.mxu0 0.0
      %2129 = vmatprep.subr.mxu0 0.0
      %2130 = vmatpush2.msra.mxu0 0.0
      %2131 = vmatprep.subr.mxu0 0.0
      %2132 = vmatpush2.msra.mxu0 0.0
      %2133 = vmatprep.subr.mxu0 0.0
      %2134 = vmatpush2.msra.mxu0 0.0
      %2135 = vmatprep.subr.mxu0 0.0
      %2136 = vmatpush2.msra.mxu0 0.0
      %2137 = vmatprep.subr.mxu0 0.0
      %2138 = vmatpush2.msra.mxu0 0.0
      %2139 = vmatprep.subr.mxu0 0.0
      %2140 = vmatpush2.msra.mxu0 0.0
      %2141 = vmatprep.subr.mxu0 0.0
      %2142 = vmatpush2.msra.mxu0 0.0
      %2143 = vmatprep.subr.mxu0 0.0
      %2144 = vmatpush2.msra.mxu0 0.0
      %2145 = vmatprep.mubr.f32.mxu0 0.0
      %2146 = vmatmul.mubr.f32.gmra.mxu0 %v2073
      %v2147 = vpop.f32.mrf.mxu0
      %v2148 = vadd.f32 %v2064, %v2147
      %v2149 = vpop.f32.mrf.mxu0
      %2150 = vmatprep.mubr.f32.mxu0 0.0
      %2151 = vmatmul.mubr.f32.gmra.mxu0 %v2076
      %v2152 = vpop.f32.mrf.mxu0
      %v2153 = vadd.f32 %v2069, %v2152
      %v2154 = vpop.f32.mrf.mxu0
      %2155 = vdwg.mxu0
      %s2156 = scalar_lea.vmem %s7, 32
      %v2157 = vld [vmem:[%s2156] sm:$0xff]
      %v2158 = vld [vmem:[%s2156 + $0x8] sm:$0x7]
      %v2160 = vsel %vm1789, %v2157, 0
      %v2163 = vsel %vm1789, %v2158, 0
      %2165 = vmatprep.subr.mxu0 0.0
      %2166 = vmatpush1.msra.mxu0 0.0
      %2167 = vmatprep.subr.mxu0 0.0
      %2168 = vmatpush1.msra.mxu0 0.0
      %2169 = vmatprep.subr.mxu0 0.0
      %2170 = vmatpush1.msra.mxu0 0.0
      %2171 = vmatprep.subr.mxu0 0.0
      %2172 = vmatpush1.msra.mxu0 0.0
      %2173 = vmatprep.subr.mxu0 0.0
      %2174 = vmatpush1.msra.mxu0 0.0
      %2175 = vmatprep.subr.mxu0 0.0
      %2176 = vmatpush1.msra.mxu0 0.0
      %2177 = vmatprep.subr.mxu0 0.0
      %2178 = vmatpush1.msra.mxu0 0.0
      %2179 = vmatprep.subr.mxu0 0.0
      %2180 = vmatpush1.msra.mxu0 0.0
      %2181 = vmatprep.subr.mxu0 0.0
      %2182 = vmatpush1.msra.mxu0 0.0
      %2183 = vmatprep.subr.mxu0 0.0
      %2184 = vmatpush1.msra.mxu0 0.0
      %2185 = vmatprep.subr.mxu0 0.0
      %2186 = vmatpush1.msra.mxu0 0.0
      %2187 = vmatprep.subr.mxu0 0.0
      %2188 = vmatpush1.msra.mxu0 %v1798
      %2189 = vmatprep.subr.mxu0 0.0
      %2190 = vmatpush1.msra.mxu0 %v1785
      %2191 = vmatprep.subr.mxu0 0.0
      %2192 = vmatpush1.msra.mxu0 %v1784
      %2193 = vmatprep.subr.mxu0 0.0
      %2194 = vmatpush1.msra.mxu0 %v1783
      %2195 = vmatprep.subr.mxu0 0.0
      %2196 = vmatpush1.msra.mxu0 %v1782
      %2197 = vmatprep.subr.mxu0 0.0
      %2198 = vmatpush2.msra.mxu0 0.0
      %2199 = vmatprep.subr.mxu0 0.0
      %2200 = vmatpush2.msra.mxu0 0.0
      %2201 = vmatprep.subr.mxu0 0.0
      %2202 = vmatpush2.msra.mxu0 0.0
      %2203 = vmatprep.subr.mxu0 0.0
      %2204 = vmatpush2.msra.mxu0 0.0
      %2205 = vmatprep.subr.mxu0 0.0
      %2206 = vmatpush2.msra.mxu0 0.0
      %2207 = vmatprep.subr.mxu0 0.0
      %2208 = vmatpush2.msra.mxu0 0.0
      %2209 = vmatprep.subr.mxu0 0.0
      %2210 = vmatpush2.msra.mxu0 0.0
      %2211 = vmatprep.subr.mxu0 0.0
      %2212 = vmatpush2.msra.mxu0 0.0
      %2213 = vmatprep.subr.mxu0 0.0
      %2214 = vmatpush2.msra.mxu0 0.0
      %2215 = vmatprep.subr.mxu0 0.0
      %2216 = vmatpush2.msra.mxu0 0.0
      %2217 = vmatprep.subr.mxu0 0.0
      %2218 = vmatpush2.msra.mxu0 0.0
      %2219 = vmatprep.subr.mxu0 0.0
      %2220 = vmatpush2.msra.mxu0 0.0
      %2221 = vmatprep.subr.mxu0 0.0
      %2222 = vmatpush2.msra.mxu0 0.0
      %2223 = vmatprep.subr.mxu0 0.0
      %2224 = vmatpush2.msra.mxu0 0.0
      %2225 = vmatprep.subr.mxu0 0.0
      %2226 = vmatpush2.msra.mxu0 0.0
      %2227 = vmatprep.subr.mxu0 0.0
      %2228 = vmatpush2.msra.mxu0 0.0
      %2229 = vmatprep.mubr.f32.mxu0 0.0
      %2230 = vmatmul.mubr.f32.gmra.mxu0 %v2160
      %v2231 = vpop.f32.mrf.mxu0
      %v2232 = vadd.f32 0.0, %v2231
      %v2233 = vpop.f32.mrf.mxu0
      %2234 = vmatprep.mubr.f32.mxu0 0.0
      %2235 = vmatmul.mubr.f32.gmra.mxu0 %v2163
      %v2236 = vpop.f32.mrf.mxu0
      %v2237 = vadd.f32 0.0, %v2236
      %v2238 = vpop.f32.mrf.mxu0
      %2239 = vdwg.mxu0
      %s2240 = scalar_lea.vmem %s8, 208
      %v2241 = vld [vmem:[%s2240] sm:$0xff]
      %v2242 = vld [vmem:[%s2240 + $0x8] sm:$0xff]
      %v2243 = vld [vmem:[%s2240 + $0x10] sm:$0xff]
      %v2244 = vld [vmem:[%s2240 + $0x18] sm:$0xff]
      %v2245 = vld [vmem:[%s2240 + $0x20] sm:$0xff]
      %v2246 = vld [vmem:[%s2240 + $0x28] sm:$0xff]
      %v2247 = vld [vmem:[%s2240 + $0x30] sm:$0xff]
      %v2248 = vld [vmem:[%s2240 + $0x38] sm:$0xff]
      %v2249 = vld [vmem:[%s2240 + $0x40] sm:$0xff]
      %v2250 = vld [vmem:[%s2240 + $0x48] sm:$0xff]
      %v2251 = vld [vmem:[%s2240 + $0x50] sm:$0xff]
      %v2252 = vld [vmem:[%s2240 + $0x58] sm:$0xff]
      %v2253 = vld [vmem:[%s2240 + $0x60] sm:$0x7]
      %v2255 = vsel %vm1986, %v2232, 0
      %v2258 = vsel %vm1986, %v2237, 0
      %v2261 = vsel %vm1993, %v2253, 0
      %2263 = vmatprep.subr.mxu0 0.0
      %2264 = vmatpush1.msra.mxu0 0.0
      %2265 = vmatprep.subr.mxu0 0.0
      %2266 = vmatpush1.msra.mxu0 0.0
      %2267 = vmatprep.subr.mxu0 0.0
      %2268 = vmatpush1.msra.mxu0 0.0
      %2269 = vmatprep.subr.mxu0 0.0
      %2270 = vmatpush1.msra.mxu0 %v2261
      %2271 = vmatprep.subr.mxu0 0.0
      %2272 = vmatpush1.msra.mxu0 %v2252
      %2273 = vmatprep.subr.mxu0 0.0
      %2274 = vmatpush1.msra.mxu0 %v2251
      %2275 = vmatprep.subr.mxu0 0.0
      %2276 = vmatpush1.msra.mxu0 %v2250
      %2277 = vmatprep.subr.mxu0 0.0
      %2278 = vmatpush1.msra.mxu0 %v2249
      %2279 = vmatprep.subr.mxu0 0.0
      %2280 = vmatpush1.msra.mxu0 %v2248
      %2281 = vmatprep.subr.mxu0 0.0
      %2282 = vmatpush1.msra.mxu0 %v2247
      %2283 = vmatprep.subr.mxu0 0.0
      %2284 = vmatpush1.msra.mxu0 %v2246
      %2285 = vmatprep.subr.mxu0 0.0
      %2286 = vmatpush1.msra.mxu0 %v2245
      %2287 = vmatprep.subr.mxu0 0.0
      %2288 = vmatpush1.msra.mxu0 %v2244
      %2289 = vmatprep.subr.mxu0 0.0
      %2290 = vmatpush1.msra.mxu0 %v2243
      %2291 = vmatprep.subr.mxu0 0.0
      %2292 = vmatpush1.msra.mxu0 %v2242
      %2293 = vmatprep.subr.mxu0 0.0
      %2294 = vmatpush1.msra.mxu0 %v2241
      %2295 = vmatprep.subr.mxu0 0.0
      %2296 = vmatpush2.msra.mxu0 0.0
      %2297 = vmatprep.subr.mxu0 0.0
      %2298 = vmatpush2.msra.mxu0 0.0
      %2299 = vmatprep.subr.mxu0 0.0
      %2300 = vmatpush2.msra.mxu0 0.0
      %2301 = vmatprep.subr.mxu0 0.0
      %2302 = vmatpush2.msra.mxu0 0.0
      %2303 = vmatprep.subr.mxu0 0.0
      %2304 = vmatpush2.msra.mxu0 0.0
      %2305 = vmatprep.subr.mxu0 0.0
      %2306 = vmatpush2.msra.mxu0 0.0
      %2307 = vmatprep.subr.mxu0 0.0
      %2308 = vmatpush2.msra.mxu0 0.0
      %2309 = vmatprep.subr.mxu0 0.0
      %2310 = vmatpush2.msra.mxu0 0.0
      %2311 = vmatprep.subr.mxu0 0.0
      %2312 = vmatpush2.msra.mxu0 0.0
      %2313 = vmatprep.subr.mxu0 0.0
      %2314 = vmatpush2.msra.mxu0 0.0
      %2315 = vmatprep.subr.mxu0 0.0
      %2316 = vmatpush2.msra.mxu0 0.0
      %2317 = vmatprep.subr.mxu0 0.0
      %2318 = vmatpush2.msra.mxu0 0.0
      %2319 = vmatprep.subr.mxu0 0.0
      %2320 = vmatpush2.msra.mxu0 0.0
      %2321 = vmatprep.subr.mxu0 0.0
      %2322 = vmatpush2.msra.mxu0 0.0
      %2323 = vmatprep.subr.mxu0 0.0
      %2324 = vmatpush2.msra.mxu0 0.0
      %2325 = vmatprep.subr.mxu0 0.0
      %2326 = vmatpush2.msra.mxu0 0.0
      %2327 = vmatprep.mubr.f32.mxu0 0.0
      %2328 = vmatmul.mubr.f32.gmra.mxu0 %v2255
      %v2329 = vpop.f32.mrf.mxu0
      %v2330 = vadd.f32 0.0, %v2329
      %v2331 = vpop.f32.mrf.mxu0
      %2332 = vmatprep.mubr.f32.mxu0 0.0
      %2333 = vmatmul.mubr.f32.gmra.mxu0 %v2258
      %v2334 = vpop.f32.mrf.mxu0
      %v2335 = vadd.f32 0.0, %v2334
      %v2336 = vpop.f32.mrf.mxu0
      %2337 = vdwg.mxu0
      %v2338 = vadd.f32 %v2148, %v2330
      %v2339 = vadd.f32 %v2153, %v2335
      %s2340 = scalar_lea.vmem %s7, 48
      %v2341 = vld [vmem:[%s2340] sm:$0xff]
      %v2342 = vld [vmem:[%s2340 + $0x8] sm:$0x7]
      %v2344 = vsel %vm1789, %v2341, 0
      %v2347 = vsel %vm1789, %v2342, 0
      %2349 = vmatprep.subr.mxu0 0.0
      %2350 = vmatpush1.msra.mxu0 0.0
      %2351 = vmatprep.subr.mxu0 0.0
      %2352 = vmatpush1.msra.mxu0 0.0
      %2353 = vmatprep.subr.mxu0 0.0
      %2354 = vmatpush1.msra.mxu0 0.0
      %2355 = vmatprep.subr.mxu0 0.0
      %2356 = vmatpush1.msra.mxu0 0.0
      %2357 = vmatprep.subr.mxu0 0.0
      %2358 = vmatpush1.msra.mxu0 0.0
      %2359 = vmatprep.subr.mxu0 0.0
      %2360 = vmatpush1.msra.mxu0 0.0
      %2361 = vmatprep.subr.mxu0 0.0
      %2362 = vmatpush1.msra.mxu0 0.0
      %2363 = vmatprep.subr.mxu0 0.0
      %2364 = vmatpush1.msra.mxu0 0.0
      %2365 = vmatprep.subr.mxu0 0.0
      %2366 = vmatpush1.msra.mxu0 0.0
      %2367 = vmatprep.subr.mxu0 0.0
      %2368 = vmatpush1.msra.mxu0 0.0
      %2369 = vmatprep.subr.mxu0 0.0
      %2370 = vmatpush1.msra.mxu0 0.0
      %2371 = vmatprep.subr.mxu0 0.0
      %2372 = vmatpush1.msra.mxu0 %v1798
      %2373 = vmatprep.subr.mxu0 0.0
      %2374 = vmatpush1.msra.mxu0 %v1785
      %2375 = vmatprep.subr.mxu0 0.0
      %2376 = vmatpush1.msra.mxu0 %v1784
      %2377 = vmatprep.subr.mxu0 0.0
      %2378 = vmatpush1.msra.mxu0 %v1783
      %2379 = vmatprep.subr.mxu0 0.0
      %2380 = vmatpush1.msra.mxu0 %v1782
      %2381 = vmatprep.subr.mxu0 0.0
      %2382 = vmatpush2.msra.mxu0 0.0
      %2383 = vmatprep.subr.mxu0 0.0
      %2384 = vmatpush2.msra.mxu0 0.0
      %2385 = vmatprep.subr.mxu0 0.0
      %2386 = vmatpush2.msra.mxu0 0.0
      %2387 = vmatprep.subr.mxu0 0.0
      %2388 = vmatpush2.msra.mxu0 0.0
      %2389 = vmatprep.subr.mxu0 0.0
      %2390 = vmatpush2.msra.mxu0 0.0
      %2391 = vmatprep.subr.mxu0 0.0
      %2392 = vmatpush2.msra.mxu0 0.0
      %2393 = vmatprep.subr.mxu0 0.0
      %2394 = vmatpush2.msra.mxu0 0.0
      %2395 = vmatprep.subr.mxu0 0.0
      %2396 = vmatpush2.msra.mxu0 0.0
      %2397 = vmatprep.subr.mxu0 0.0
      %2398 = vmatpush2.msra.mxu0 0.0
      %2399 = vmatprep.subr.mxu0 0.0
      %2400 = vmatpush2.msra.mxu0 0.0
      %2401 = vmatprep.subr.mxu0 0.0
      %2402 = vmatpush2.msra.mxu0 0.0
      %2403 = vmatprep.subr.mxu0 0.0
      %2404 = vmatpush2.msra.mxu0 0.0
      %2405 = vmatprep.subr.mxu0 0.0
      %2406 = vmatpush2.msra.mxu0 0.0
      %2407 = vmatprep.subr.mxu0 0.0
      %2408 = vmatpush2.msra.mxu0 0.0
      %2409 = vmatprep.subr.mxu0 0.0
      %2410 = vmatpush2.msra.mxu0 0.0
      %2411 = vmatprep.subr.mxu0 0.0
      %2412 = vmatpush2.msra.mxu0 0.0
      %2413 = vmatprep.mubr.f32.mxu0 0.0
      %2414 = vmatmul.mubr.f32.gmra.mxu0 %v2344
      %v2415 = vpop.f32.mrf.mxu0
      %v2416 = vadd.f32 0.0, %v2415
      %v2417 = vpop.f32.mrf.mxu0
      %2418 = vmatprep.mubr.f32.mxu0 0.0
      %2419 = vmatmul.mubr.f32.gmra.mxu0 %v2347
      %v2420 = vpop.f32.mrf.mxu0
      %v2421 = vadd.f32 0.0, %v2420
      %v2422 = vpop.f32.mrf.mxu0
      %2423 = vdwg.mxu0
      %s2424 = scalar_lea.vmem %s8, 312
      %v2425 = vld [vmem:[%s2424] sm:$0xff]
      %v2426 = vld [vmem:[%s2424 + $0x8] sm:$0xff]
      %v2427 = vld [vmem:[%s2424 + $0x10] sm:$0xff]
      %v2428 = vld [vmem:[%s2424 + $0x18] sm:$0xff]
      %v2429 = vld [vmem:[%s2424 + $0x20] sm:$0xff]
      %v2430 = vld [vmem:[%s2424 + $0x28] sm:$0xff]
      %v2431 = vld [vmem:[%s2424 + $0x30] sm:$0xff]
      %v2432 = vld [vmem:[%s2424 + $0x38] sm:$0xff]
      %v2433 = vld [vmem:[%s2424 + $0x40] sm:$0xff]
      %v2434 = vld [vmem:[%s2424 + $0x48] sm:$0xff]
      %v2435 = vld [vmem:[%s2424 + $0x50] sm:$0xff]
      %v2436 = vld [vmem:[%s2424 + $0x58] sm:$0xff]
      %v2437 = vld [vmem:[%s2424 + $0x60] sm:$0x7]
      %v2439 = vsel %vm1986, %v2416, 0
      %v2442 = vsel %vm1986, %v2421, 0
      %v2445 = vsel %vm1993, %v2437, 0
      %2447 = vmatprep.subr.mxu0 0.0
      %2448 = vmatpush1.msra.mxu0 0.0
      %2449 = vmatprep.subr.mxu0 0.0
      %2450 = vmatpush1.msra.mxu0 0.0
      %2451 = vmatprep.subr.mxu0 0.0
      %2452 = vmatpush1.msra.mxu0 0.0
      %2453 = vmatprep.subr.mxu0 0.0
      %2454 = vmatpush1.msra.mxu0 %v2445
      %2455 = vmatprep.subr.mxu0 0.0
      %2456 = vmatpush1.msra.mxu0 %v2436
      %2457 = vmatprep.subr.mxu0 0.0
      %2458 = vmatpush1.msra.mxu0 %v2435
      %2459 = vmatprep.subr.mxu0 0.0
      %2460 = vmatpush1.msra.mxu0 %v2434
      %2461 = vmatprep.subr.mxu0 0.0
      %2462 = vmatpush1.msra.mxu0 %v2433
      %2463 = vmatprep.subr.mxu0 0.0
      %2464 = vmatpush1.msra.mxu0 %v2432
      %2465 = vmatprep.subr.mxu0 0.0
      %2466 = vmatpush1.msra.mxu0 %v2431
      %2467 = vmatprep.subr.mxu0 0.0
      %2468 = vmatpush1.msra.mxu0 %v2430
      %2469 = vmatprep.subr.mxu0 0.0
      %2470 = vmatpush1.msra.mxu0 %v2429
      %2471 = vmatprep.subr.mxu0 0.0
      %2472 = vmatpush1.msra.mxu0 %v2428
      %2473 = vmatprep.subr.mxu0 0.0
      %2474 = vmatpush1.msra.mxu0 %v2427
      %2475 = vmatprep.subr.mxu0 0.0
      %2476 = vmatpush1.msra.mxu0 %v2426
      %2477 = vmatprep.subr.mxu0 0.0
      %2478 = vmatpush1.msra.mxu0 %v2425
      %2479 = vmatprep.subr.mxu0 0.0
      %2480 = vmatpush2.msra.mxu0 0.0
      %2481 = vmatprep.subr.mxu0 0.0
      %2482 = vmatpush2.msra.mxu0 0.0
      %2483 = vmatprep.subr.mxu0 0.0
      %2484 = vmatpush2.msra.mxu0 0.0
      %2485 = vmatprep.subr.mxu0 0.0
      %2486 = vmatpush2.msra.mxu0 0.0
      %2487 = vmatprep.subr.mxu0 0.0
      %2488 = vmatpush2.msra.mxu0 0.0
      %2489 = vmatprep.subr.mxu0 0.0
      %2490 = vmatpush2.msra.mxu0 0.0
      %2491 = vmatprep.subr.mxu0 0.0
      %2492 = vmatpush2.msra.mxu0 0.0
      %2493 = vmatprep.subr.mxu0 0.0
      %2494 = vmatpush2.msra.mxu0 0.0
      %2495 = vmatprep.subr.mxu0 0.0
      %2496 = vmatpush2.msra.mxu0 0.0
      %2497 = vmatprep.subr.mxu0 0.0
      %2498 = vmatpush2.msra.mxu0 0.0
      %2499 = vmatprep.subr.mxu0 0.0
      %2500 = vmatpush2.msra.mxu0 0.0
      %2501 = vmatprep.subr.mxu0 0.0
      %2502 = vmatpush2.msra.mxu0 0.0
      %2503 = vmatprep.subr.mxu0 0.0
      %2504 = vmatpush2.msra.mxu0 0.0
      %2505 = vmatprep.subr.mxu0 0.0
      %2506 = vmatpush2.msra.mxu0 0.0
      %2507 = vmatprep.subr.mxu0 0.0
      %2508 = vmatpush2.msra.mxu0 0.0
      %2509 = vmatprep.subr.mxu0 0.0
      %2510 = vmatpush2.msra.mxu0 0.0
      %2511 = vmatprep.mubr.f32.mxu0 0.0
      %2512 = vmatmul.mubr.f32.gmra.mxu0 %v2439
      %v2513 = vpop.f32.mrf.mxu0
      %v2514 = vadd.f32 0.0, %v2513
      %v2515 = vpop.f32.mrf.mxu0
      %2516 = vmatprep.mubr.f32.mxu0 0.0
      %2517 = vmatmul.mubr.f32.gmra.mxu0 %v2442
      %v2518 = vpop.f32.mrf.mxu0
      %v2519 = vadd.f32 0.0, %v2518
      %v2520 = vpop.f32.mrf.mxu0
      %2521 = vdwg.mxu0
      %v2522 = vadd.f32 %v2338, %v2514
      %v2523 = vadd.f32 %v2339, %v2519
      %s2524 = scalar_lea.vmem %s7, 64
      %v2525 = vld [vmem:[%s2524] sm:$0xff]
      %v2526 = vld [vmem:[%s2524 + $0x8] sm:$0x7]
      %v2528 = vsel %vm1789, %v2525, 0
      %v2531 = vsel %vm1789, %v2526, 0
      %2533 = vmatprep.subr.mxu0 0.0
      %2534 = vmatpush1.msra.mxu0 0.0
      %2535 = vmatprep.subr.mxu0 0.0
      %2536 = vmatpush1.msra.mxu0 0.0
      %2537 = vmatprep.subr.mxu0 0.0
      %2538 = vmatpush1.msra.mxu0 0.0
      %2539 = vmatprep.subr.mxu0 0.0
      %2540 = vmatpush1.msra.mxu0 0.0
      %2541 = vmatprep.subr.mxu0 0.0
      %2542 = vmatpush1.msra.mxu0 0.0
      %2543 = vmatprep.subr.mxu0 0.0
      %2544 = vmatpush1.msra.mxu0 0.0
      %2545 = vmatprep.subr.mxu0 0.0
      %2546 = vmatpush1.msra.mxu0 0.0
      %2547 = vmatprep.subr.mxu0 0.0
      %2548 = vmatpush1.msra.mxu0 0.0
      %2549 = vmatprep.subr.mxu0 0.0
      %2550 = vmatpush1.msra.mxu0 0.0
      %2551 = vmatprep.subr.mxu0 0.0
      %2552 = vmatpush1.msra.mxu0 0.0
      %2553 = vmatprep.subr.mxu0 0.0
      %2554 = vmatpush1.msra.mxu0 0.0
      %2555 = vmatprep.subr.mxu0 0.0
      %2556 = vmatpush1.msra.mxu0 %v1798
      %2557 = vmatprep.subr.mxu0 0.0
      %2558 = vmatpush1.msra.mxu0 %v1785
      %2559 = vmatprep.subr.mxu0 0.0
      %2560 = vmatpush1.msra.mxu0 %v1784
      %2561 = vmatprep.subr.mxu0 0.0
      %2562 = vmatpush1.msra.mxu0 %v1783
      %2563 = vmatprep.subr.mxu0 0.0
      %2564 = vmatpush1.msra.mxu0 %v1782
      %2565 = vmatprep.subr.mxu0 0.0
      %2566 = vmatpush2.msra.mxu0 0.0
      %2567 = vmatprep.subr.mxu0 0.0
      %2568 = vmatpush2.msra.mxu0 0.0
      %2569 = vmatprep.subr.mxu0 0.0
      %2570 = vmatpush2.msra.mxu0 0.0
      %2571 = vmatprep.subr.mxu0 0.0
      %2572 = vmatpush2.msra.mxu0 0.0
      %2573 = vmatprep.subr.mxu0 0.0
      %2574 = vmatpush2.msra.mxu0 0.0
      %2575 = vmatprep.subr.mxu0 0.0
      %2576 = vmatpush2.msra.mxu0 0.0
      %2577 = vmatprep.subr.mxu0 0.0
      %2578 = vmatpush2.msra.mxu0 0.0
      %2579 = vmatprep.subr.mxu0 0.0
      %2580 = vmatpush2.msra.mxu0 0.0
      %2581 = vmatprep.subr.mxu0 0.0
      %2582 = vmatpush2.msra.mxu0 0.0
      %2583 = vmatprep.subr.mxu0 0.0
      %2584 = vmatpush2.msra.mxu0 0.0
      %2585 = vmatprep.subr.mxu0 0.0
      %2586 = vmatpush2.msra.mxu0 0.0
      %2587 = vmatprep.subr.mxu0 0.0
      %2588 = vmatpush2.msra.mxu0 0.0
      %2589 = vmatprep.subr.mxu0 0.0
      %2590 = vmatpush2.msra.mxu0 0.0
      %2591 = vmatprep.subr.mxu0 0.0
      %2592 = vmatpush2.msra.mxu0 0.0
      %2593 = vmatprep.subr.mxu0 0.0
      %2594 = vmatpush2.msra.mxu0 0.0
      %2595 = vmatprep.subr.mxu0 0.0
      %2596 = vmatpush2.msra.mxu0 0.0
      %2597 = vmatprep.mubr.f32.mxu0 0.0
      %2598 = vmatmul.mubr.f32.gmra.mxu0 %v2528
      %v2599 = vpop.f32.mrf.mxu0
      %v2600 = vadd.f32 0.0, %v2599
      %v2601 = vpop.f32.mrf.mxu0
      %2602 = vmatprep.mubr.f32.mxu0 0.0
      %2603 = vmatmul.mubr.f32.gmra.mxu0 %v2531
      %v2604 = vpop.f32.mrf.mxu0
      %v2605 = vadd.f32 0.0, %v2604
      %v2606 = vpop.f32.mrf.mxu0
      %2607 = vdwg.mxu0
      %s2608 = scalar_lea.vmem %s8, 416
      %v2609 = vld [vmem:[%s2608] sm:$0xff]
      %v2610 = vld [vmem:[%s2608 + $0x8] sm:$0xff]
      %v2611 = vld [vmem:[%s2608 + $0x10] sm:$0xff]
      %v2612 = vld [vmem:[%s2608 + $0x18] sm:$0xff]
      %v2613 = vld [vmem:[%s2608 + $0x20] sm:$0xff]
      %v2614 = vld [vmem:[%s2608 + $0x28] sm:$0xff]
      %v2615 = vld [vmem:[%s2608 + $0x30] sm:$0xff]
      %v2616 = vld [vmem:[%s2608 + $0x38] sm:$0xff]
      %v2617 = vld [vmem:[%s2608 + $0x40] sm:$0xff]
      %v2618 = vld [vmem:[%s2608 + $0x48] sm:$0xff]
      %v2619 = vld [vmem:[%s2608 + $0x50] sm:$0xff]
      %v2620 = vld [vmem:[%s2608 + $0x58] sm:$0xff]
      %v2621 = vld [vmem:[%s2608 + $0x60] sm:$0x7]
      %v2623 = vsel %vm1986, %v2600, 0
      %v2626 = vsel %vm1986, %v2605, 0
      %v2629 = vsel %vm1993, %v2621, 0
      %2631 = vmatprep.subr.mxu0 0.0
      %2632 = vmatpush1.msra.mxu0 0.0
      %2633 = vmatprep.subr.mxu0 0.0
      %2634 = vmatpush1.msra.mxu0 0.0
      %2635 = vmatprep.subr.mxu0 0.0
      %2636 = vmatpush1.msra.mxu0 0.0
      %2637 = vmatprep.subr.mxu0 0.0
      %2638 = vmatpush1.msra.mxu0 %v2629
      %2639 = vmatprep.subr.mxu0 0.0
      %2640 = vmatpush1.msra.mxu0 %v2620
      %2641 = vmatprep.subr.mxu0 0.0
      %2642 = vmatpush1.msra.mxu0 %v2619
      %2643 = vmatprep.subr.mxu0 0.0
      %2644 = vmatpush1.msra.mxu0 %v2618
      %2645 = vmatprep.subr.mxu0 0.0
      %2646 = vmatpush1.msra.mxu0 %v2617
      %2647 = vmatprep.subr.mxu0 0.0
      %2648 = vmatpush1.msra.mxu0 %v2616
      %2649 = vmatprep.subr.mxu0 0.0
      %2650 = vmatpush1.msra.mxu0 %v2615
      %2651 = vmatprep.subr.mxu0 0.0
      %2652 = vmatpush1.msra.mxu0 %v2614
      %2653 = vmatprep.subr.mxu0 0.0
      %2654 = vmatpush1.msra.mxu0 %v2613
      %2655 = vmatprep.subr.mxu0 0.0
      %2656 = vmatpush1.msra.mxu0 %v2612
      %2657 = vmatprep.subr.mxu0 0.0
      %2658 = vmatpush1.msra.mxu0 %v2611
      %2659 = vmatprep.subr.mxu0 0.0
      %2660 = vmatpush1.msra.mxu0 %v2610
      %2661 = vmatprep.subr.mxu0 0.0
      %2662 = vmatpush1.msra.mxu0 %v2609
      %2663 = vmatprep.subr.mxu0 0.0
      %2664 = vmatpush2.msra.mxu0 0.0
      %2665 = vmatprep.subr.mxu0 0.0
      %2666 = vmatpush2.msra.mxu0 0.0
      %2667 = vmatprep.subr.mxu0 0.0
      %2668 = vmatpush2.msra.mxu0 0.0
      %2669 = vmatprep.subr.mxu0 0.0
      %2670 = vmatpush2.msra.mxu0 0.0
      %2671 = vmatprep.subr.mxu0 0.0
      %2672 = vmatpush2.msra.mxu0 0.0
      %2673 = vmatprep.subr.mxu0 0.0
      %2674 = vmatpush2.msra.mxu0 0.0
      %2675 = vmatprep.subr.mxu0 0.0
      %2676 = vmatpush2.msra.mxu0 0.0
      %2677 = vmatprep.subr.mxu0 0.0
      %2678 = vmatpush2.msra.mxu0 0.0
      %2679 = vmatprep.subr.mxu0 0.0
      %2680 = vmatpush2.msra.mxu0 0.0
      %2681 = vmatprep.subr.mxu0 0.0
      %2682 = vmatpush2.msra.mxu0 0.0
      %2683 = vmatprep.subr.mxu0 0.0
      %2684 = vmatpush2.msra.mxu0 0.0
      %2685 = vmatprep.subr.mxu0 0.0
      %2686 = vmatpush2.msra.mxu0 0.0
      %2687 = vmatprep.subr.mxu0 0.0
      %2688 = vmatpush2.msra.mxu0 0.0
      %2689 = vmatprep.subr.mxu0 0.0
      %2690 = vmatpush2.msra.mxu0 0.0
      %2691 = vmatprep.subr.mxu0 0.0
      %2692 = vmatpush2.msra.mxu0 0.0
      %2693 = vmatprep.subr.mxu0 0.0
      %2694 = vmatpush2.msra.mxu0 0.0
      %2695 = vmatprep.mubr.f32.mxu0 0.0
      %2696 = vmatmul.mubr.f32.gmra.mxu0 %v2623
      %v2697 = vpop.f32.mrf.mxu0
      %v2698 = vadd.f32 0.0, %v2697
      %v2699 = vpop.f32.mrf.mxu0
      %2700 = vmatprep.mubr.f32.mxu0 0.0
      %2701 = vmatmul.mubr.f32.gmra.mxu0 %v2626
      %v2702 = vpop.f32.mrf.mxu0
      %v2703 = vadd.f32 0.0, %v2702
      %v2704 = vpop.f32.mrf.mxu0
      %2705 = vdwg.mxu0
      %v2706 = vadd.f32 %v2522, %v2698
      %v2707 = vadd.f32 %v2523, %v2703
      %v2708 = vld [vmem:[%s9] sm:$0x1]
      %v2710 = vlaneseq
      %v2711 = vshrl.u32 %v2710, 7
      %v2712 = vsub.s32 0, %v2711
      %v2713 = vrot.slane %v2708, %v2712
      %v2715 = vadd.f32 %v2706, %v2713
      %v2716 = vadd.f32 %v2707, %v2713
      %v2717 = vmax.f32 %v2715, 0.0
      %v2718 = vmax.f32 %v2716, 0.0
      %v2719 = vld [vmem:[%s10] sm:$0xff]
      %v2720 = vld [vmem:[%s10 + $0x8] sm:$0x1]
      %vm2721 = vcmask 89088
      %v2723 = vsel %vm2721, %v2719, 0
      %v2726 = vsel %vm2721, %v2720, 0
      %v2729 = vsel %vm1993, %v2718, 0
      %2731 = vmatprep.subr.mxu0 0.0
      %2732 = vmatpush1.msra.mxu0 0.0
      %2733 = vmatprep.subr.mxu0 0.0
      %2734 = vmatpush1.msra.mxu0 0.0
      %2735 = vmatprep.subr.mxu0 0.0
      %2736 = vmatpush1.msra.mxu0 0.0
      %2737 = vmatprep.subr.mxu0 0.0
      %2738 = vmatpush1.msra.mxu0 0.0
      %2739 = vmatprep.subr.mxu0 0.0
      %2740 = vmatpush1.msra.mxu0 0.0
      %2741 = vmatprep.subr.mxu0 0.0
      %2742 = vmatpush1.msra.mxu0 0.0
      %2743 = vmatprep.subr.mxu0 0.0
      %2744 = vmatpush1.msra.mxu0 0.0
      %2745 = vmatprep.subr.mxu0 0.0
      %2746 = vmatpush1.msra.mxu0 0.0
      %2747 = vmatprep.subr.mxu0 0.0
      %2748 = vmatpush1.msra.mxu0 0.0
      %2749 = vmatprep.subr.mxu0 0.0
      %2750 = vmatpush1.msra.mxu0 0.0
      %2751 = vmatprep.subr.mxu0 0.0
      %2752 = vmatpush1.msra.mxu0 0.0
      %2753 = vmatprep.subr.mxu0 0.0
      %2754 = vmatpush1.msra.mxu0 0.0
      %2755 = vmatprep.subr.mxu0 0.0
      %2756 = vmatpush1.msra.mxu0 0.0
      %2757 = vmatprep.subr.mxu0 0.0
      %2758 = vmatpush1.msra.mxu0 0.0
      %2759 = vmatprep.subr.mxu0 0.0
      %2760 = vmatpush1.msra.mxu0 %v2729
      %2761 = vmatprep.subr.mxu0 0.0
      %2762 = vmatpush1.msra.mxu0 %v2717
      %2763 = vmatprep.subr.mxu0 0.0
      %2764 = vmatpush2.msra.mxu0 0.0
      %2765 = vmatprep.subr.mxu0 0.0
      %2766 = vmatpush2.msra.mxu0 0.0
      %2767 = vmatprep.subr.mxu0 0.0
      %2768 = vmatpush2.msra.mxu0 0.0
      %2769 = vmatprep.subr.mxu0 0.0
      %2770 = vmatpush2.msra.mxu0 0.0
      %2771 = vmatprep.subr.mxu0 0.0
      %2772 = vmatpush2.msra.mxu0 0.0
      %2773 = vmatprep.subr.mxu0 0.0
      %2774 = vmatpush2.msra.mxu0 0.0
      %2775 = vmatprep.subr.mxu0 0.0
      %2776 = vmatpush2.msra.mxu0 0.0
      %2777 = vmatprep.subr.mxu0 0.0
      %2778 = vmatpush2.msra.mxu0 0.0
      %2779 = vmatprep.subr.mxu0 0.0
      %2780 = vmatpush2.msra.mxu0 0.0
      %2781 = vmatprep.subr.mxu0 0.0
      %2782 = vmatpush2.msra.mxu0 0.0
      %2783 = vmatprep.subr.mxu0 0.0
      %2784 = vmatpush2.msra.mxu0 0.0
      %2785 = vmatprep.subr.mxu0 0.0
      %2786 = vmatpush2.msra.mxu0 0.0
      %2787 = vmatprep.subr.mxu0 0.0
      %2788 = vmatpush2.msra.mxu0 0.0
      %2789 = vmatprep.subr.mxu0 0.0
      %2790 = vmatpush2.msra.mxu0 0.0
      %2791 = vmatprep.subr.mxu0 0.0
      %2792 = vmatpush2.msra.mxu0 0.0
      %2793 = vmatprep.subr.mxu0 0.0
      %2794 = vmatpush2.msra.mxu0 0.0
      %2795 = vmatprep.mubr.f32.mxu0 0.0
      %2796 = vmatmul.mubr.f32.gmra.mxu0 %v2723
      %v2797 = vpop.f32.mrf.mxu0
      %v2798 = vadd.f32 0.0, %v2797
      %v2799 = vpop.f32.mrf.mxu0
      %2800 = vmatprep.mubr.f32.mxu0 0.0
      %2801 = vmatmul.mubr.f32.gmra.mxu0 %v2726
      %v2802 = vpop.f32.mrf.mxu0
      %v2803 = vadd.f32 0.0, %v2802
      %v2804 = vpop.f32.mrf.mxu0
      %2805 = vdwg.mxu0
      %v2806 = vld [vmem:[%s11] sm:$0xff]
      %v2807 = vld [vmem:[%s11 + $0x8] sm:$0xff]
      %v2808 = vld [vmem:[%s11 + $0x10] sm:$0xff]
      %v2809 = vld [vmem:[%s11 + $0x18] sm:$0xff]
      %v2810 = vld [vmem:[%s11 + $0x20] sm:$0x1]
      %s2811 = scalar_lea.vmem %s10, 16
      %v2812 = vld [vmem:[%s2811] sm:$0xff]
      %v2813 = vld [vmem:[%s2811 + $0x8] sm:$0x1]
      %v2815 = vsel %vm2721, %v2812, 0
      %v2818 = vsel %vm2721, %v2813, 0
      %2820 = vmatprep.subr.mxu0 0.0
      %2821 = vmatpush1.msra.mxu0 0.0
      %2822 = vmatprep.subr.mxu0 0.0
      %2823 = vmatpush1.msra.mxu0 0.0
      %2824 = vmatprep.subr.mxu0 0.0
      %2825 = vmatpush1.msra.mxu0 0.0
      %2826 = vmatprep.subr.mxu0 0.0
      %2827 = vmatpush1.msra.mxu0 0.0
      %2828 = vmatprep.subr.mxu0 0.0
      %2829 = vmatpush1.msra.mxu0 0.0
      %2830 = vmatprep.subr.mxu0 0.0
      %2831 = vmatpush1.msra.mxu0 0.0
      %2832 = vmatprep.subr.mxu0 0.0
      %2833 = vmatpush1.msra.mxu0 0.0
      %2834 = vmatprep.subr.mxu0 0.0
      %2835 = vmatpush1.msra.mxu0 0.0
      %2836 = vmatprep.subr.mxu0 0.0
      %2837 = vmatpush1.msra.mxu0 0.0
      %2838 = vmatprep.subr.mxu0 0.0
      %2839 = vmatpush1.msra.mxu0 0.0
      %2840 = vmatprep.subr.mxu0 0.0
      %2841 = vmatpush1.msra.mxu0 0.0
      %2842 = vmatprep.subr.mxu0 0.0
      %2843 = vmatpush1.msra.mxu0 0.0
      %2844 = vmatprep.subr.mxu0 0.0
      %2845 = vmatpush1.msra.mxu0 0.0
      %2846 = vmatprep.subr.mxu0 0.0
      %2847 = vmatpush1.msra.mxu0 0.0
      %2848 = vmatprep.subr.mxu0 0.0
      %2849 = vmatpush1.msra.mxu0 %v2729
      %2850 = vmatprep.subr.mxu0 0.0
      %2851 = vmatpush1.msra.mxu0 %v2717
      %2852 = vmatprep.subr.mxu0 0.0
      %2853 = vmatpush2.msra.mxu0 0.0
      %2854 = vmatprep.subr.mxu0 0.0
      %2855 = vmatpush2.msra.mxu0 0.0
      %2856 = vmatprep.subr.mxu0 0.0
      %2857 = vmatpush2.msra.mxu0 0.0
      %2858 = vmatprep.subr.mxu0 0.0
      %2859 = vmatpush2.msra.mxu0 0.0
      %2860 = vmatprep.subr.mxu0 0.0
      %2861 = vmatpush2.msra.mxu0 0.0
      %2862 = vmatprep.subr.mxu0 0.0
      %2863 = vmatpush2.msra.mxu0 0.0
      %2864 = vmatprep.subr.mxu0 0.0
      %2865 = vmatpush2.msra.mxu0 0.0
      %2866 = vmatprep.subr.mxu0 0.0
      %2867 = vmatpush2.msra.mxu0 0.0
      %2868 = vmatprep.subr.mxu0 0.0
      %2869 = vmatpush2.msra.mxu0 0.0
      %2870 = vmatprep.subr.mxu0 0.0
      %2871 = vmatpush2.msra.mxu0 0.0
      %2872 = vmatprep.subr.mxu0 0.0
      %2873 = vmatpush2.msra.mxu0 0.0
      %2874 = vmatprep.subr.mxu0 0.0
      %2875 = vmatpush2.msra.mxu0 0.0
      %2876 = vmatprep.subr.mxu0 0.0
      %2877 = vmatpush2.msra.mxu0 0.0
      %2878 = vmatprep.subr.mxu0 0.0
      %2879 = vmatpush2.msra.mxu0 0.0
      %2880 = vmatprep.subr.mxu0 0.0
      %2881 = vmatpush2.msra.mxu0 0.0
      %2882 = vmatprep.subr.mxu0 0.0
      %2883 = vmatpush2.msra.mxu0 0.0
      %2884 = vmatprep.mubr.f32.mxu0 0.0
      %2885 = vmatmul.mubr.f32.gmra.mxu0 %v2815
      %v2886 = vpop.f32.mrf.mxu0
      %v2887 = vadd.f32 0.0, %v2886
      %v2888 = vpop.f32.mrf.mxu0
      %2889 = vmatprep.mubr.f32.mxu0 0.0
      %2890 = vmatmul.mubr.f32.gmra.mxu0 %v2818
      %v2891 = vpop.f32.mrf.mxu0
      %v2892 = vadd.f32 0.0, %v2891
      %v2893 = vpop.f32.mrf.mxu0
      %2894 = vdwg.mxu0
      %s2895 = scalar_lea.vmem %s11, 40
      %v2896 = vld [vmem:[%s2895] sm:$0xff]
      %v2897 = vld [vmem:[%s2895 + $0x8] sm:$0xff]
      %v2898 = vld [vmem:[%s2895 + $0x10] sm:$0xff]
      %v2899 = vld [vmem:[%s2895 + $0x18] sm:$0xff]
      %v2900 = vld [vmem:[%s2895 + $0x20] sm:$0x1]
      %v2902 = vsel %vm1789, %v2887, 0
      %v2905 = vsel %vm1789, %v2892, 0
      %v2908 = vsel %vm1796, %v2900, 0
      %2910 = vmatprep.subr.mxu0 0.0
      %2911 = vmatpush1.msra.mxu0 0.0
      %2912 = vmatprep.subr.mxu0 0.0
      %2913 = vmatpush1.msra.mxu0 0.0
      %2914 = vmatprep.subr.mxu0 0.0
      %2915 = vmatpush1.msra.mxu0 0.0
      %2916 = vmatprep.subr.mxu0 0.0
      %2917 = vmatpush1.msra.mxu0 0.0
      %2918 = vmatprep.subr.mxu0 0.0
      %2919 = vmatpush1.msra.mxu0 0.0
      %2920 = vmatprep.subr.mxu0 0.0
      %2921 = vmatpush1.msra.mxu0 0.0
      %2922 = vmatprep.subr.mxu0 0.0
      %2923 = vmatpush1.msra.mxu0 0.0
      %2924 = vmatprep.subr.mxu0 0.0
      %2925 = vmatpush1.msra.mxu0 0.0
      %2926 = vmatprep.subr.mxu0 0.0
      %2927 = vmatpush1.msra.mxu0 0.0
      %2928 = vmatprep.subr.mxu0 0.0
      %2929 = vmatpush1.msra.mxu0 0.0
      %2930 = vmatprep.subr.mxu0 0.0
      %2931 = vmatpush1.msra.mxu0 0.0
      %2932 = vmatprep.subr.mxu0 0.0
      %2933 = vmatpush1.msra.mxu0 %v2908
      %2934 = vmatprep.subr.mxu0 0.0
      %2935 = vmatpush1.msra.mxu0 %v2899
      %2936 = vmatprep.subr.mxu0 0.0
      %2937 = vmatpush1.msra.mxu0 %v2898
      %2938 = vmatprep.subr.mxu0 0.0
      %2939 = vmatpush1.msra.mxu0 %v2897
      %2940 = vmatprep.subr.mxu0 0.0
      %2941 = vmatpush1.msra.mxu0 %v2896
      %2942 = vmatprep.subr.mxu0 0.0
      %2943 = vmatpush2.msra.mxu0 0.0
      %2944 = vmatprep.subr.mxu0 0.0
      %2945 = vmatpush2.msra.mxu0 0.0
      %2946 = vmatprep.subr.mxu0 0.0
      %2947 = vmatpush2.msra.mxu0 0.0
      %2948 = vmatprep.subr.mxu0 0.0
      %2949 = vmatpush2.msra.mxu0 0.0
      %2950 = vmatprep.subr.mxu0 0.0
      %2951 = vmatpush2.msra.mxu0 0.0
      %2952 = vmatprep.subr.mxu0 0.0
      %2953 = vmatpush2.msra.mxu0 0.0
      %2954 = vmatprep.subr.mxu0 0.0
      %2955 = vmatpush2.msra.mxu0 0.0
      %2956 = vmatprep.subr.mxu0 0.0
      %2957 = vmatpush2.msra.mxu0 0.0
      %2958 = vmatprep.subr.mxu0 0.0
      %2959 = vmatpush2.msra.mxu0 0.0
      %2960 = vmatprep.subr.mxu0 0.0
      %2961 = vmatpush2.msra.mxu0 0.0
      %2962 = vmatprep.subr.mxu0 0.0
      %2963 = vmatpush2.msra.mxu0 0.0
      %2964 = vmatprep.subr.mxu0 0.0
      %2965 = vmatpush2.msra.mxu0 0.0
      %2966 = vmatprep.subr.mxu0 0.0
      %2967 = vmatpush2.msra.mxu0 0.0
      %2968 = vmatprep.subr.mxu0 0.0
      %2969 = vmatpush2.msra.mxu0 0.0
      %2970 = vmatprep.subr.mxu0 0.0
      %2971 = vmatpush2.msra.mxu0 0.0
      %2972 = vmatprep.subr.mxu0 0.0
      %2973 = vmatpush2.msra.mxu0 0.0
      %2974 = vmatprep.mubr.f32.mxu0 0.0
      %2975 = vmatmul.mubr.f32.gmra.mxu0 %v2902
      %v2976 = vpop.f32.mrf.mxu0
      %v2977 = vadd.f32 0.0, %v2976
      %v2978 = vpop.f32.mrf.mxu0
      %2979 = vmatprep.mubr.f32.mxu0 0.0
      %2980 = vmatmul.mubr.f32.gmra.mxu0 %v2905
      %v2981 = vpop.f32.mrf.mxu0
      %v2982 = vadd.f32 0.0, %v2981
      %v2983 = vpop.f32.mrf.mxu0
      %2984 = vdwg.mxu0
      %v2986 = vsel %vm1789, %v2798, 0
      %v2989 = vsel %vm1789, %v2803, 0
      %v2992 = vsel %vm1796, %v2810, 0
      %2994 = vmatprep.subr.mxu0 0.0
      %2995 = vmatpush1.msra.mxu0 0.0
      %2996 = vmatprep.subr.mxu0 0.0
      %2997 = vmatpush1.msra.mxu0 0.0
      %2998 = vmatprep.subr.mxu0 0.0
      %2999 = vmatpush1.msra.mxu0 0.0
      %3000 = vmatprep.subr.mxu0 0.0
      %3001 = vmatpush1.msra.mxu0 0.0
      %3002 = vmatprep.subr.mxu0 0.0
      %3003 = vmatpush1.msra.mxu0 0.0
      %3004 = vmatprep.subr.mxu0 0.0
      %3005 = vmatpush1.msra.mxu0 0.0
      %3006 = vmatprep.subr.mxu0 0.0
      %3007 = vmatpush1.msra.mxu0 0.0
      %3008 = vmatprep.subr.mxu0 0.0
      %3009 = vmatpush1.msra.mxu0 0.0
      %3010 = vmatprep.subr.mxu0 0.0
      %3011 = vmatpush1.msra.mxu0 0.0
      %3012 = vmatprep.subr.mxu0 0.0
      %3013 = vmatpush1.msra.mxu0 0.0
      %3014 = vmatprep.subr.mxu0 0.0
      %3015 = vmatpush1.msra.mxu0 0.0
      %3016 = vmatprep.subr.mxu0 0.0
      %3017 = vmatpush1.msra.mxu0 %v2992
      %3018 = vmatprep.subr.mxu0 0.0
      %3019 = vmatpush1.msra.mxu0 %v2809
      %3020 = vmatprep.subr.mxu0 0.0
      %3021 = vmatpush1.msra.mxu0 %v2808
      %3022 = vmatprep.subr.mxu0 0.0
      %3023 = vmatpush1.msra.mxu0 %v2807
      %3024 = vmatprep.subr.mxu0 0.0
      %3025 = vmatpush1.msra.mxu0 %v2806
      %3026 = vmatprep.subr.mxu0 0.0
      %3027 = vmatpush2.msra.mxu0 0.0
      %3028 = vmatprep.subr.mxu0 0.0
      %3029 = vmatpush2.msra.mxu0 0.0
      %3030 = vmatprep.subr.mxu0 0.0
      %3031 = vmatpush2.msra.mxu0 0.0
      %3032 = vmatprep.subr.mxu0 0.0
      %3033 = vmatpush2.msra.mxu0 0.0
      %3034 = vmatprep.subr.mxu0 0.0
      %3035 = vmatpush2.msra.mxu0 0.0
      %3036 = vmatprep.subr.mxu0 0.0
      %3037 = vmatpush2.msra.mxu0 0.0
      %3038 = vmatprep.subr.mxu0 0.0
      %3039 = vmatpush2.msra.mxu0 0.0
      %3040 = vmatprep.subr.mxu0 0.0
      %3041 = vmatpush2.msra.mxu0 0.0
      %3042 = vmatprep.subr.mxu0 0.0
      %3043 = vmatpush2.msra.mxu0 0.0
      %3044 = vmatprep.subr.mxu0 0.0
      %3045 = vmatpush2.msra.mxu0 0.0
      %3046 = vmatprep.subr.mxu0 0.0
      %3047 = vmatpush2.msra.mxu0 0.0
      %3048 = vmatprep.subr.mxu0 0.0
      %3049 = vmatpush2.msra.mxu0 0.0
      %3050 = vmatprep.subr.mxu0 0.0
      %3051 = vmatpush2.msra.mxu0 0.0
      %3052 = vmatprep.subr.mxu0 0.0
      %3053 = vmatpush2.msra.mxu0 0.0
      %3054 = vmatprep.subr.mxu0 0.0
      %3055 = vmatpush2.msra.mxu0 0.0
      %3056 = vmatprep.subr.mxu0 0.0
      %3057 = vmatpush2.msra.mxu0 0.0
      %3058 = vmatprep.mubr.f32.mxu0 0.0
      %3059 = vmatmul.mubr.f32.gmra.mxu0 %v2986
      %v3060 = vpop.f32.mrf.mxu0
      %v3061 = vadd.f32 %v2977, %v3060
      %v3062 = vpop.f32.mrf.mxu0
      %3063 = vmatprep.mubr.f32.mxu0 0.0
      %3064 = vmatmul.mubr.f32.gmra.mxu0 %v2989
      %v3065 = vpop.f32.mrf.mxu0
      %v3066 = vadd.f32 %v2982, %v3065
      %v3067 = vpop.f32.mrf.mxu0
      %3068 = vdwg.mxu0
      %s3069 = scalar_lea.vmem %s10, 32
      %v3070 = vld [vmem:[%s3069] sm:$0xff]
      %v3071 = vld [vmem:[%s3069 + $0x8] sm:$0x1]
      %v3073 = vsel %vm2721, %v3070, 0
      %v3076 = vsel %vm2721, %v3071, 0
      %3078 = vmatprep.subr.mxu0 0.0
      %3079 = vmatpush1.msra.mxu0 0.0
      %3080 = vmatprep.subr.mxu0 0.0
      %3081 = vmatpush1.msra.mxu0 0.0
      %3082 = vmatprep.subr.mxu0 0.0
      %3083 = vmatpush1.msra.mxu0 0.0
      %3084 = vmatprep.subr.mxu0 0.0
      %3085 = vmatpush1.msra.mxu0 0.0
      %3086 = vmatprep.subr.mxu0 0.0
      %3087 = vmatpush1.msra.mxu0 0.0
      %3088 = vmatprep.subr.mxu0 0.0
      %3089 = vmatpush1.msra.mxu0 0.0
      %3090 = vmatprep.subr.mxu0 0.0
      %3091 = vmatpush1.msra.mxu0 0.0
      %3092 = vmatprep.subr.mxu0 0.0
      %3093 = vmatpush1.msra.mxu0 0.0
      %3094 = vmatprep.subr.mxu0 0.0
      %3095 = vmatpush1.msra.mxu0 0.0
      %3096 = vmatprep.subr.mxu0 0.0
      %3097 = vmatpush1.msra.mxu0 0.0
      %3098 = vmatprep.subr.mxu0 0.0
      %3099 = vmatpush1.msra.mxu0 0.0
      %3100 = vmatprep.subr.mxu0 0.0
      %3101 = vmatpush1.msra.mxu0 0.0
      %3102 = vmatprep.subr.mxu0 0.0
      %3103 = vmatpush1.msra.mxu0 0.0
      %3104 = vmatprep.subr.mxu0 0.0
      %3105 = vmatpush1.msra.mxu0 0.0
      %3106 = vmatprep.subr.mxu0 0.0
      %3107 = vmatpush1.msra.mxu0 %v2729
      %3108 = vmatprep.subr.mxu0 0.0
      %3109 = vmatpush1.msra.mxu0 %v2717
      %3110 = vmatprep.subr.mxu0 0.0
      %3111 = vmatpush2.msra.mxu0 0.0
      %3112 = vmatprep.subr.mxu0 0.0
      %3113 = vmatpush2.msra.mxu0 0.0
      %3114 = vmatprep.subr.mxu0 0.0
      %3115 = vmatpush2.msra.mxu0 0.0
      %3116 = vmatprep.subr.mxu0 0.0
      %3117 = vmatpush2.msra.mxu0 0.0
      %3118 = vmatprep.subr.mxu0 0.0
      %3119 = vmatpush2.msra.mxu0 0.0
      %3120 = vmatprep.subr.mxu0 0.0
      %3121 = vmatpush2.msra.mxu0 0.0
      %3122 = vmatprep.subr.mxu0 0.0
      %3123 = vmatpush2.msra.mxu0 0.0
      %3124 = vmatprep.subr.mxu0 0.0
      %3125 = vmatpush2.msra.mxu0 0.0
      %3126 = vmatprep.subr.mxu0 0.0
      %3127 = vmatpush2.msra.mxu0 0.0
      %3128 = vmatprep.subr.mxu0 0.0
      %3129 = vmatpush2.msra.mxu0 0.0
      %3130 = vmatprep.subr.mxu0 0.0
      %3131 = vmatpush2.msra.mxu0 0.0
      %3132 = vmatprep.subr.mxu0 0.0
      %3133 = vmatpush2.msra.mxu0 0.0
      %3134 = vmatprep.subr.mxu0 0.0
      %3135 = vmatpush2.msra.mxu0 0.0
      %3136 = vmatprep.subr.mxu0 0.0
      %3137 = vmatpush2.msra.mxu0 0.0
      %3138 = vmatprep.subr.mxu0 0.0
      %3139 = vmatpush2.msra.mxu0 0.0
      %3140 = vmatprep.subr.mxu0 0.0
      %3141 = vmatpush2.msra.mxu0 0.0
      %3142 = vmatprep.mubr.f32.mxu0 0.0
      %3143 = vmatmul.mubr.f32.gmra.mxu0 %v3073
      %v3144 = vpop.f32.mrf.mxu0
      %v3145 = vadd.f32 0.0, %v3144
      %v3146 = vpop.f32.mrf.mxu0
      %3147 = vmatprep.mubr.f32.mxu0 0.0
      %3148 = vmatmul.mubr.f32.gmra.mxu0 %v3076
      %v3149 = vpop.f32.mrf.mxu0
      %v3150 = vadd.f32 0.0, %v3149
      %v3151 = vpop.f32.mrf.mxu0
      %3152 = vdwg.mxu0
      %s3153 = scalar_lea.vmem %s11, 80
      %v3154 = vld [vmem:[%s3153] sm:$0xff]
      %v3155 = vld [vmem:[%s3153 + $0x8] sm:$0xff]
      %v3156 = vld [vmem:[%s3153 + $0x10] sm:$0xff]
      %v3157 = vld [vmem:[%s3153 + $0x18] sm:$0xff]
      %v3158 = vld [vmem:[%s3153 + $0x20] sm:$0x1]
      %v3160 = vsel %vm1789, %v3145, 0
      %v3163 = vsel %vm1789, %v3150, 0
      %v3166 = vsel %vm1796, %v3158, 0
      %3168 = vmatprep.subr.mxu0 0.0
      %3169 = vmatpush1.msra.mxu0 0.0
      %3170 = vmatprep.subr.mxu0 0.0
      %3171 = vmatpush1.msra.mxu0 0.0
      %3172 = vmatprep.subr.mxu0 0.0
      %3173 = vmatpush1.msra.mxu0 0.0
      %3174 = vmatprep.subr.mxu0 0.0
      %3175 = vmatpush1.msra.mxu0 0.0
      %3176 = vmatprep.subr.mxu0 0.0
      %3177 = vmatpush1.msra.mxu0 0.0
      %3178 = vmatprep.subr.mxu0 0.0
      %3179 = vmatpush1.msra.mxu0 0.0
      %3180 = vmatprep.subr.mxu0 0.0
      %3181 = vmatpush1.msra.mxu0 0.0
      %3182 = vmatprep.subr.mxu0 0.0
      %3183 = vmatpush1.msra.mxu0 0.0
      %3184 = vmatprep.subr.mxu0 0.0
      %3185 = vmatpush1.msra.mxu0 0.0
      %3186 = vmatprep.subr.mxu0 0.0
      %3187 = vmatpush1.msra.mxu0 0.0
      %3188 = vmatprep.subr.mxu0 0.0
      %3189 = vmatpush1.msra.mxu0 0.0
      %3190 = vmatprep.subr.mxu0 0.0
      %3191 = vmatpush1.msra.mxu0 %v3166
      %3192 = vmatprep.subr.mxu0 0.0
      %3193 = vmatpush1.msra.mxu0 %v3157
      %3194 = vmatprep.subr.mxu0 0.0
      %3195 = vmatpush1.msra.mxu0 %v3156
      %3196 = vmatprep.subr.mxu0 0.0
      %3197 = vmatpush1.msra.mxu0 %v3155
      %3198 = vmatprep.subr.mxu0 0.0
      %3199 = vmatpush1.msra.mxu0 %v3154
      %3200 = vmatprep.subr.mxu0 0.0
      %3201 = vmatpush2.msra.mxu0 0.0
      %3202 = vmatprep.subr.mxu0 0.0
      %3203 = vmatpush2.msra.mxu0 0.0
      %3204 = vmatprep.subr.mxu0 0.0
      %3205 = vmatpush2.msra.mxu0 0.0
      %3206 = vmatprep.subr.mxu0 0.0
      %3207 = vmatpush2.msra.mxu0 0.0
      %3208 = vmatprep.subr.mxu0 0.0
      %3209 = vmatpush2.msra.mxu0 0.0
      %3210 = vmatprep.subr.mxu0 0.0
      %3211 = vmatpush2.msra.mxu0 0.0
      %3212 = vmatprep.subr.mxu0 0.0
      %3213 = vmatpush2.msra.mxu0 0.0
      %3214 = vmatprep.subr.mxu0 0.0
      %3215 = vmatpush2.msra.mxu0 0.0
      %3216 = vmatprep.subr.mxu0 0.0
      %3217 = vmatpush2.msra.mxu0 0.0
      %3218 = vmatprep.subr.mxu0 0.0
      %3219 = vmatpush2.msra.mxu0 0.0
      %3220 = vmatprep.subr.mxu0 0.0
      %3221 = vmatpush2.msra.mxu0 0.0
      %3222 = vmatprep.subr.mxu0 0.0
      %3223 = vmatpush2.msra.mxu0 0.0
      %3224 = vmatprep.subr.mxu0 0.0
      %3225 = vmatpush2.msra.mxu0 0.0
      %3226 = vmatprep.subr.mxu0 0.0
      %3227 = vmatpush2.msra.mxu0 0.0
      %3228 = vmatprep.subr.mxu0 0.0
      %3229 = vmatpush2.msra.mxu0 0.0
      %3230 = vmatprep.subr.mxu0 0.0
      %3231 = vmatpush2.msra.mxu0 0.0
      %3232 = vmatprep.mubr.f32.mxu0 0.0
      %3233 = vmatmul.mubr.f32.gmra.mxu0 %v3160
      %v3234 = vpop.f32.mrf.mxu0
      %v3235 = vadd.f32 0.0, %v3234
      %v3236 = vpop.f32.mrf.mxu0
      %3237 = vmatprep.mubr.f32.mxu0 0.0
      %3238 = vmatmul.mubr.f32.gmra.mxu0 %v3163
      %v3239 = vpop.f32.mrf.mxu0
      %v3240 = vadd.f32 0.0, %v3239
      %v3241 = vpop.f32.mrf.mxu0
      %3242 = vdwg.mxu0
      %v3243 = vadd.f32 %v3061, %v3235
      %v3244 = vadd.f32 %v3066, %v3240
      %v3245 = vld [vmem:[%s12] sm:$0x1]
      %v3247 = vlaneseq
      %v3248 = vshrl.u32 %v3247, 7
      %v3249 = vsub.s32 0, %v3248
      %v3250 = vrot.slane %v3245, %v3249
      %v3252 = vadd.f32 %v3243, %v3250
      %v3253 = vadd.f32 %v3244, %v3250
      %v3254 = vmax.f32 %v3252, 0.0
      %v3255 = vmax.f32 %v3253, 0.0
      %v3256 = vld [vmem:[%s13] sm:$0xff]
      %v3257 = vld [vmem:[%s13 + $0x8] sm:$0x1]
      %s3258 = scalar_lea.vmem %s13, 16
      %v3259 = vld [vmem:[%s3258] sm:$0xff]
      %v3260 = vld [vmem:[%s3258 + $0x8] sm:$0x1]
      %v3262 = vrot.slane %v3254, 1
      %vm3263 = vcmask 72704
      %v3264 = vsel %vm3263, %v3262, 0
      %v3267 = vsel %vm1796, %v3260, 0
      %3269 = vmatprep.subr.mxu0 0.0
      %3270 = vmatpush1.msra.mxu0 0.0
      %3271 = vmatprep.subr.mxu0 0.0
      %3272 = vmatpush1.msra.mxu0 0.0
      %3273 = vmatprep.subr.mxu0 0.0
      %3274 = vmatpush1.msra.mxu0 0.0
      %3275 = vmatprep.subr.mxu0 0.0
      %3276 = vmatpush1.msra.mxu0 0.0
      %3277 = vmatprep.subr.mxu0 0.0
      %3278 = vmatpush1.msra.mxu0 0.0
      %3279 = vmatprep.subr.mxu0 0.0
      %3280 = vmatpush1.msra.mxu0 0.0
      %3281 = vmatprep.subr.mxu0 0.0
      %3282 = vmatpush1.msra.mxu0 0.0
      %3283 = vmatprep.subr.mxu0 0.0
      %3284 = vmatpush1.msra.mxu0 0.0
      %3285 = vmatprep.subr.mxu0 0.0
      %3286 = vmatpush1.msra.mxu0 0.0
      %3287 = vmatprep.subr.mxu0 0.0
      %3288 = vmatpush1.msra.mxu0 0.0
      %3289 = vmatprep.subr.mxu0 0.0
      %3290 = vmatpush1.msra.mxu0 0.0
      %3291 = vmatprep.subr.mxu0 0.0
      %3292 = vmatpush1.msra.mxu0 0.0
      %3293 = vmatprep.subr.mxu0 0.0
      %3294 = vmatpush1.msra.mxu0 0.0
      %3295 = vmatprep.subr.mxu0 0.0
      %3296 = vmatpush1.msra.mxu0 0.0
      %3297 = vmatprep.subr.mxu0 0.0
      %3298 = vmatpush1.msra.mxu0 %v3267
      %3299 = vmatprep.subr.mxu0 0.0
      %3300 = vmatpush1.msra.mxu0 %v3259
      %3301 = vmatprep.subr.mxu0 0.0
      %3302 = vmatpush2.msra.mxu0 0.0
      %3303 = vmatprep.subr.mxu0 0.0
      %3304 = vmatpush2.msra.mxu0 0.0
      %3305 = vmatprep.subr.mxu0 0.0
      %3306 = vmatpush2.msra.mxu0 0.0
      %3307 = vmatprep.subr.mxu0 0.0
      %3308 = vmatpush2.msra.mxu0 0.0
      %3309 = vmatprep.subr.mxu0 0.0
      %3310 = vmatpush2.msra.mxu0 0.0
      %3311 = vmatprep.subr.mxu0 0.0
      %3312 = vmatpush2.msra.mxu0 0.0
      %3313 = vmatprep.subr.mxu0 0.0
      %3314 = vmatpush2.msra.mxu0 0.0
      %3315 = vmatprep.subr.mxu0 0.0
      %3316 = vmatpush2.msra.mxu0 0.0
      %3317 = vmatprep.subr.mxu0 0.0
      %3318 = vmatpush2.msra.mxu0 0.0
      %3319 = vmatprep.subr.mxu0 0.0
      %3320 = vmatpush2.msra.mxu0 0.0
      %3321 = vmatprep.subr.mxu0 0.0
      %3322 = vmatpush2.msra.mxu0 0.0
      %3323 = vmatprep.subr.mxu0 0.0
      %3324 = vmatpush2.msra.mxu0 0.0
      %3325 = vmatprep.subr.mxu0 0.0
      %3326 = vmatpush2.msra.mxu0 0.0
      %3327 = vmatprep.subr.mxu0 0.0
      %3328 = vmatpush2.msra.mxu0 0.0
      %3329 = vmatprep.subr.mxu0 0.0
      %3330 = vmatpush2.msra.mxu0 0.0
      %3331 = vmatprep.subr.mxu0 0.0
      %3332 = vmatpush2.msra.mxu0 0.0
      %3333 = vmatprep.mubr.f32.mxu0 0.0
      %3334 = vmatmul.mubr.f32.gmra.mxu0 %v3264
      %v3335 = vpop.f32.mrf.mxu0
      %v3336 = vadd.f32 0.0, %v3335
      %v3337 = vpop.f32.mrf.mxu0
      %3338 = vdwg.mxu0
      %v3339 = vsel %vm3263, %v3254, 0
      %v3342 = vsel %vm1796, %v3257, 0
      %3344 = vmatprep.subr.mxu0 0.0
      %3345 = vmatpush1.msra.mxu0 0.0
      %3346 = vmatprep.subr.mxu0 0.0
      %3347 = vmatpush1.msra.mxu0 0.0
      %3348 = vmatprep.subr.mxu0 0.0
      %3349 = vmatpush1.msra.mxu0 0.0
      %3350 = vmatprep.subr.mxu0 0.0
      %3351 = vmatpush1.msra.mxu0 0.0
      %3352 = vmatprep.subr.mxu0 0.0
      %3353 = vmatpush1.msra.mxu0 0.0
      %3354 = vmatprep.subr.mxu0 0.0
      %3355 = vmatpush1.msra.mxu0 0.0
      %3356 = vmatprep.subr.mxu0 0.0
      %3357 = vmatpush1.msra.mxu0 0.0
      %3358 = vmatprep.subr.mxu0 0.0
      %3359 = vmatpush1.msra.mxu0 0.0
      %3360 = vmatprep.subr.mxu0 0.0
      %3361 = vmatpush1.msra.mxu0 0.0
      %3362 = vmatprep.subr.mxu0 0.0
      %3363 = vmatpush1.msra.mxu0 0.0
      %3364 = vmatprep.subr.mxu0 0.0
      %3365 = vmatpush1.msra.mxu0 0.0
      %3366 = vmatprep.subr.mxu0 0.0
      %3367 = vmatpush1.msra.mxu0 0.0
      %3368 = vmatprep.subr.mxu0 0.0
      %3369 = vmatpush1.msra.mxu0 0.0
      %3370 = vmatprep.subr.mxu0 0.0
      %3371 = vmatpush1.msra.mxu0 0.0
      %3372 = vmatprep.subr.mxu0 0.0
      %3373 = vmatpush1.msra.mxu0 %v3342
      %3374 = vmatprep.subr.mxu0 0.0
      %3375 = vmatpush1.msra.mxu0 %v3256
      %3376 = vmatprep.subr.mxu0 0.0
      %3377 = vmatpush2.msra.mxu0 0.0
      %3378 = vmatprep.subr.mxu0 0.0
      %3379 = vmatpush2.msra.mxu0 0.0
      %3380 = vmatprep.subr.mxu0 0.0
      %3381 = vmatpush2.msra.mxu0 0.0
      %3382 = vmatprep.subr.mxu0 0.0
      %3383 = vmatpush2.msra.mxu0 0.0
      %3384 = vmatprep.subr.mxu0 0.0
      %3385 = vmatpush2.msra.mxu0 0.0
      %3386 = vmatprep.subr.mxu0 0.0
      %3387 = vmatpush2.msra.mxu0 0.0
      %3388 = vmatprep.subr.mxu0 0.0
      %3389 = vmatpush2.msra.mxu0 0.0
      %3390 = vmatprep.subr.mxu0 0.0
      %3391 = vmatpush2.msra.mxu0 0.0
      %3392 = vmatprep.subr.mxu0 0.0
      %3393 = vmatpush2.msra.mxu0 0.0
      %3394 = vmatprep.subr.mxu0 0.0
      %3395 = vmatpush2.msra.mxu0 0.0
      %3396 = vmatprep.subr.mxu0 0.0
      %3397 = vmatpush2.msra.mxu0 0.0
      %3398 = vmatprep.subr.mxu0 0.0
      %3399 = vmatpush2.msra.mxu0 0.0
      %3400 = vmatprep.subr.mxu0 0.0
      %3401 = vmatpush2.msra.mxu0 0.0
      %3402 = vmatprep.subr.mxu0 0.0
      %3403 = vmatpush2.msra.mxu0 0.0
      %3404 = vmatprep.subr.mxu0 0.0
      %3405 = vmatpush2.msra.mxu0 0.0
      %3406 = vmatprep.subr.mxu0 0.0
      %3407 = vmatpush2.msra.mxu0 0.0
      %3408 = vmatprep.mubr.f32.mxu0 0.0
      %3409 = vmatmul.mubr.f32.gmra.mxu0 %v3339
      %v3410 = vpop.f32.mrf.mxu0
      %v3411 = vadd.f32 %v3336, %v3410
      %v3412 = vpop.f32.mrf.mxu0
      %3413 = vdwg.mxu0
      %s3414 = scalar_lea.vmem %s13, 32
      %v3415 = vld [vmem:[%s3414] sm:$0xff]
      %v3416 = vld [vmem:[%s3414 + $0x8] sm:$0x1]
      %v3417 = vrot.slane %v3254, 2
      %v3418 = vsel %vm3263, %v3417, 0
      %v3421 = vsel %vm1796, %v3416, 0
      %3423 = vmatprep.subr.mxu0 0.0
      %3424 = vmatpush1.msra.mxu0 0.0
      %3425 = vmatprep.subr.mxu0 0.0
      %3426 = vmatpush1.msra.mxu0 0.0
      %3427 = vmatprep.subr.mxu0 0.0
      %3428 = vmatpush1.msra.mxu0 0.0
      %3429 = vmatprep.subr.mxu0 0.0
      %3430 = vmatpush1.msra.mxu0 0.0
      %3431 = vmatprep.subr.mxu0 0.0
      %3432 = vmatpush1.msra.mxu0 0.0
      %3433 = vmatprep.subr.mxu0 0.0
      %3434 = vmatpush1.msra.mxu0 0.0
      %3435 = vmatprep.subr.mxu0 0.0
      %3436 = vmatpush1.msra.mxu0 0.0
      %3437 = vmatprep.subr.mxu0 0.0
      %3438 = vmatpush1.msra.mxu0 0.0
      %3439 = vmatprep.subr.mxu0 0.0
      %3440 = vmatpush1.msra.mxu0 0.0
      %3441 = vmatprep.subr.mxu0 0.0
      %3442 = vmatpush1.msra.mxu0 0.0
      %3443 = vmatprep.subr.mxu0 0.0
      %3444 = vmatpush1.msra.mxu0 0.0
      %3445 = vmatprep.subr.mxu0 0.0
      %3446 = vmatpush1.msra.mxu0 0.0
      %3447 = vmatprep.subr.mxu0 0.0
      %3448 = vmatpush1.msra.mxu0 0.0
      %3449 = vmatprep.subr.mxu0 0.0
      %3450 = vmatpush1.msra.mxu0 0.0
      %3451 = vmatprep.subr.mxu0 0.0
      %3452 = vmatpush1.msra.mxu0 %v3421
      %3453 = vmatprep.subr.mxu0 0.0
      %3454 = vmatpush1.msra.mxu0 %v3415
      %3455 = vmatprep.subr.mxu0 0.0
      %3456 = vmatpush2.msra.mxu0 0.0
      %3457 = vmatprep.subr.mxu0 0.0
      %3458 = vmatpush2.msra.mxu0 0.0
      %3459 = vmatprep.subr.mxu0 0.0
      %3460 = vmatpush2.msra.mxu0 0.0
      %3461 = vmatprep.subr.mxu0 0.0
      %3462 = vmatpush2.msra.mxu0 0.0
      %3463 = vmatprep.subr.mxu0 0.0
      %3464 = vmatpush2.msra.mxu0 0.0
      %3465 = vmatprep.subr.mxu0 0.0
      %3466 = vmatpush2.msra.mxu0 0.0
      %3467 = vmatprep.subr.mxu0 0.0
      %3468 = vmatpush2.msra.mxu0 0.0
      %3469 = vmatprep.subr.mxu0 0.0
      %3470 = vmatpush2.msra.mxu0 0.0
      %3471 = vmatprep.subr.mxu0 0.0
      %3472 = vmatpush2.msra.mxu0 0.0
      %3473 = vmatprep.subr.mxu0 0.0
      %3474 = vmatpush2.msra.mxu0 0.0
      %3475 = vmatprep.subr.mxu0 0.0
      %3476 = vmatpush2.msra.mxu0 0.0
      %3477 = vmatprep.subr.mxu0 0.0
      %3478 = vmatpush2.msra.mxu0 0.0
      %3479 = vmatprep.subr.mxu0 0.0
      %3480 = vmatpush2.msra.mxu0 0.0
      %3481 = vmatprep.subr.mxu0 0.0
      %3482 = vmatpush2.msra.mxu0 0.0
      %3483 = vmatprep.subr.mxu0 0.0
      %3484 = vmatpush2.msra.mxu0 0.0
      %3485 = vmatprep.subr.mxu0 0.0
      %3486 = vmatpush2.msra.mxu0 0.0
      %3487 = vmatprep.mubr.f32.mxu0 0.0
      %3488 = vmatmul.mubr.f32.gmra.mxu0 %v3418
      %v3489 = vpop.f32.mrf.mxu0
      %v3490 = vadd.f32 0.0, %v3489
      %v3491 = vpop.f32.mrf.mxu0
      %3492 = vdwg.mxu0
      %v3493 = vadd.f32 %v3411, %v3490
      %s3494 = scalar_lea.vmem %s13, 48
      %v3495 = vld [vmem:[%s3494] sm:$0xff]
      %v3496 = vld [vmem:[%s3494 + $0x8] sm:$0x1]
      %v3497 = vrot.slane %v3254, 3
      %v3498 = vsel %vm3263, %v3497, 0
      %v3501 = vsel %vm1796, %v3496, 0
      %3503 = vmatprep.subr.mxu0 0.0
      %3504 = vmatpush1.msra.mxu0 0.0
      %3505 = vmatprep.subr.mxu0 0.0
      %3506 = vmatpush1.msra.mxu0 0.0
      %3507 = vmatprep.subr.mxu0 0.0
      %3508 = vmatpush1.msra.mxu0 0.0
      %3509 = vmatprep.subr.mxu0 0.0
      %3510 = vmatpush1.msra.mxu0 0.0
      %3511 = vmatprep.subr.mxu0 0.0
      %3512 = vmatpush1.msra.mxu0 0.0
      %3513 = vmatprep.subr.mxu0 0.0
      %3514 = vmatpush1.msra.mxu0 0.0
      %3515 = vmatprep.subr.mxu0 0.0
      %3516 = vmatpush1.msra.mxu0 0.0
      %3517 = vmatprep.subr.mxu0 0.0
      %3518 = vmatpush1.msra.mxu0 0.0
      %3519 = vmatprep.subr.mxu0 0.0
      %3520 = vmatpush1.msra.mxu0 0.0
      %3521 = vmatprep.subr.mxu0 0.0
      %3522 = vmatpush1.msra.mxu0 0.0
      %3523 = vmatprep.subr.mxu0 0.0
      %3524 = vmatpush1.msra.mxu0 0.0
      %3525 = vmatprep.subr.mxu0 0.0
      %3526 = vmatpush1.msra.mxu0 0.0
      %3527 = vmatprep.subr.mxu0 0.0
      %3528 = vmatpush1.msra.mxu0 0.0
      %3529 = vmatprep.subr.mxu0 0.0
      %3530 = vmatpush1.msra.mxu0 0.0
      %3531 = vmatprep.subr.mxu0 0.0
      %3532 = vmatpush1.msra.mxu0 %v3501
      %3533 = vmatprep.subr.mxu0 0.0
      %3534 = vmatpush1.msra.mxu0 %v3495
      %3535 = vmatprep.subr.mxu0 0.0
      %3536 = vmatpush2.msra.mxu0 0.0
      %3537 = vmatprep.subr.mxu0 0.0
      %3538 = vmatpush2.msra.mxu0 0.0
      %3539 = vmatprep.subr.mxu0 0.0
      %3540 = vmatpush2.msra.mxu0 0.0
      %3541 = vmatprep.subr.mxu0 0.0
      %3542 = vmatpush2.msra.mxu0 0.0
      %3543 = vmatprep.subr.mxu0 0.0
      %3544 = vmatpush2.msra.mxu0 0.0
      %3545 = vmatprep.subr.mxu0 0.0
      %3546 = vmatpush2.msra.mxu0 0.0
      %3547 = vmatprep.subr.mxu0 0.0
      %3548 = vmatpush2.msra.mxu0 0.0
      %3549 = vmatprep.subr.mxu0 0.0
      %3550 = vmatpush2.msra.mxu0 0.0
      %3551 = vmatprep.subr.mxu0 0.0
      %3552 = vmatpush2.msra.mxu0 0.0
      %3553 = vmatprep.subr.mxu0 0.0
      %3554 = vmatpush2.msra.mxu0 0.0
      %3555 = vmatprep.subr.mxu0 0.0
      %3556 = vmatpush2.msra.mxu0 0.0
      %3557 = vmatprep.subr.mxu0 0.0
      %3558 = vmatpush2.msra.mxu0 0.0
      %3559 = vmatprep.subr.mxu0 0.0
      %3560 = vmatpush2.msra.mxu0 0.0
      %3561 = vmatprep.subr.mxu0 0.0
      %3562 = vmatpush2.msra.mxu0 0.0
      %3563 = vmatprep.subr.mxu0 0.0
      %3564 = vmatpush2.msra.mxu0 0.0
      %3565 = vmatprep.subr.mxu0 0.0
      %3566 = vmatpush2.msra.mxu0 0.0
      %3567 = vmatprep.mubr.f32.mxu0 0.0
      %3568 = vmatmul.mubr.f32.gmra.mxu0 %v3498
      %v3569 = vpop.f32.mrf.mxu0
      %v3570 = vadd.f32 0.0, %v3569
      %v3571 = vpop.f32.mrf.mxu0
      %3572 = vdwg.mxu0
      %v3573 = vadd.f32 %v3493, %v3570
      %s3574 = scalar_lea.vmem %s13, 64
      %v3575 = vld [vmem:[%s3574] sm:$0xff]
      %v3576 = vld [vmem:[%s3574 + $0x8] sm:$0x1]
      %v3577 = vrot.slane %v3254, 4
      %v3578 = vsel %vm3263, %v3577, 0
      %v3581 = vsel %vm1796, %v3576, 0
      %3583 = vmatprep.subr.mxu0 0.0
      %3584 = vmatpush1.msra.mxu0 0.0
      %3585 = vmatprep.subr.mxu0 0.0
      %3586 = vmatpush1.msra.mxu0 0.0
      %3587 = vmatprep.subr.mxu0 0.0
      %3588 = vmatpush1.msra.mxu0 0.0
      %3589 = vmatprep.subr.mxu0 0.0
      %3590 = vmatpush1.msra.mxu0 0.0
      %3591 = vmatprep.subr.mxu0 0.0
      %3592 = vmatpush1.msra.mxu0 0.0
      %3593 = vmatprep.subr.mxu0 0.0
      %3594 = vmatpush1.msra.mxu0 0.0
      %3595 = vmatprep.subr.mxu0 0.0
      %3596 = vmatpush1.msra.mxu0 0.0
      %3597 = vmatprep.subr.mxu0 0.0
      %3598 = vmatpush1.msra.mxu0 0.0
      %3599 = vmatprep.subr.mxu0 0.0
      %3600 = vmatpush1.msra.mxu0 0.0
      %3601 = vmatprep.subr.mxu0 0.0
      %3602 = vmatpush1.msra.mxu0 0.0
      %3603 = vmatprep.subr.mxu0 0.0
      %3604 = vmatpush1.msra.mxu0 0.0
      %3605 = vmatprep.subr.mxu0 0.0
      %3606 = vmatpush1.msra.mxu0 0.0
      %3607 = vmatprep.subr.mxu0 0.0
      %3608 = vmatpush1.msra.mxu0 0.0
      %3609 = vmatprep.subr.mxu0 0.0
      %3610 = vmatpush1.msra.mxu0 0.0
      %3611 = vmatprep.subr.mxu0 0.0
      %3612 = vmatpush1.msra.mxu0 %v3581
      %3613 = vmatprep.subr.mxu0 0.0
      %3614 = vmatpush1.msra.mxu0 %v3575
      %3615 = vmatprep.subr.mxu0 0.0
      %3616 = vmatpush2.msra.mxu0 0.0
      %3617 = vmatprep.subr.mxu0 0.0
      %3618 = vmatpush2.msra.mxu0 0.0
      %3619 = vmatprep.subr.mxu0 0.0
      %3620 = vmatpush2.msra.mxu0 0.0
      %3621 = vmatprep.subr.mxu0 0.0
      %3622 = vmatpush2.msra.mxu0 0.0
      %3623 = vmatprep.subr.mxu0 0.0
      %3624 = vmatpush2.msra.mxu0 0.0
      %3625 = vmatprep.subr.mxu0 0.0
      %3626 = vmatpush2.msra.mxu0 0.0
      %3627 = vmatprep.subr.mxu0 0.0
      %3628 = vmatpush2.msra.mxu0 0.0
      %3629 = vmatprep.subr.mxu0 0.0
      %3630 = vmatpush2.msra.mxu0 0.0
      %3631 = vmatprep.subr.mxu0 0.0
      %3632 = vmatpush2.msra.mxu0 0.0
      %3633 = vmatprep.subr.mxu0 0.0
      %3634 = vmatpush2.msra.mxu0 0.0
      %3635 = vmatprep.subr.mxu0 0.0
      %3636 = vmatpush2.msra.mxu0 0.0
      %3637 = vmatprep.subr.mxu0 0.0
      %3638 = vmatpush2.msra.mxu0 0.0
      %3639 = vmatprep.subr.mxu0 0.0
      %3640 = vmatpush2.msra.mxu0 0.0
      %3641 = vmatprep.subr.mxu0 0.0
      %3642 = vmatpush2.msra.mxu0 0.0
      %3643 = vmatprep.subr.mxu0 0.0
      %3644 = vmatpush2.msra.mxu0 0.0
      %3645 = vmatprep.subr.mxu0 0.0
      %3646 = vmatpush2.msra.mxu0 0.0
      %3647 = vmatprep.mubr.f32.mxu0 0.0
      %3648 = vmatmul.mubr.f32.gmra.mxu0 %v3578
      %v3649 = vpop.f32.mrf.mxu0
      %v3650 = vadd.f32 0.0, %v3649
      %v3651 = vpop.f32.mrf.mxu0
      %3652 = vdwg.mxu0
      %v3653 = vadd.f32 %v3573, %v3650
      %s3654 = scalar_lea.vmem %s13, 80
      %v3655 = vld [vmem:[%s3654] sm:$0xff]
      %v3656 = vld [vmem:[%s3654 + $0x8] sm:$0x1]
      %v3657 = vrot.slane %v3254, 5
      %v3658 = vsel %vm3263, %v3657, 0
      %v3661 = vsel %vm1796, %v3656, 0
      %3663 = vmatprep.subr.mxu0 0.0
      %3664 = vmatpush1.msra.mxu0 0.0
      %3665 = vmatprep.subr.mxu0 0.0
      %3666 = vmatpush1.msra.mxu0 0.0
      %3667 = vmatprep.subr.mxu0 0.0
      %3668 = vmatpush1.msra.mxu0 0.0
      %3669 = vmatprep.subr.mxu0 0.0
      %3670 = vmatpush1.msra.mxu0 0.0
      %3671 = vmatprep.subr.mxu0 0.0
      %3672 = vmatpush1.msra.mxu0 0.0
      %3673 = vmatprep.subr.mxu0 0.0
      %3674 = vmatpush1.msra.mxu0 0.0
      %3675 = vmatprep.subr.mxu0 0.0
      %3676 = vmatpush1.msra.mxu0 0.0
      %3677 = vmatprep.subr.mxu0 0.0
      %3678 = vmatpush1.msra.mxu0 0.0
      %3679 = vmatprep.subr.mxu0 0.0
      %3680 = vmatpush1.msra.mxu0 0.0
      %3681 = vmatprep.subr.mxu0 0.0
      %3682 = vmatpush1.msra.mxu0 0.0
      %3683 = vmatprep.subr.mxu0 0.0
      %3684 = vmatpush1.msra.mxu0 0.0
      %3685 = vmatprep.subr.mxu0 0.0
      %3686 = vmatpush1.msra.mxu0 0.0
      %3687 = vmatprep.subr.mxu0 0.0
      %3688 = vmatpush1.msra.mxu0 0.0
      %3689 = vmatprep.subr.mxu0 0.0
      %3690 = vmatpush1.msra.mxu0 0.0
      %3691 = vmatprep.subr.mxu0 0.0
      %3692 = vmatpush1.msra.mxu0 %v3661
      %3693 = vmatprep.subr.mxu0 0.0
      %3694 = vmatpush1.msra.mxu0 %v3655
      %3695 = vmatprep.subr.mxu0 0.0
      %3696 = vmatpush2.msra.mxu0 0.0
      %3697 = vmatprep.subr.mxu0 0.0
      %3698 = vmatpush2.msra.mxu0 0.0
      %3699 = vmatprep.subr.mxu0 0.0
      %3700 = vmatpush2.msra.mxu0 0.0
      %3701 = vmatprep.subr.mxu0 0.0
      %3702 = vmatpush2.msra.mxu0 0.0
      %3703 = vmatprep.subr.mxu0 0.0
      %3704 = vmatpush2.msra.mxu0 0.0
      %3705 = vmatprep.subr.mxu0 0.0
      %3706 = vmatpush2.msra.mxu0 0.0
      %3707 = vmatprep.subr.mxu0 0.0
      %3708 = vmatpush2.msra.mxu0 0.0
      %3709 = vmatprep.subr.mxu0 0.0
      %3710 = vmatpush2.msra.mxu0 0.0
      %3711 = vmatprep.subr.mxu0 0.0
      %3712 = vmatpush2.msra.mxu0 0.0
      %3713 = vmatprep.subr.mxu0 0.0
      %3714 = vmatpush2.msra.mxu0 0.0
      %3715 = vmatprep.subr.mxu0 0.0
      %3716 = vmatpush2.msra.mxu0 0.0
      %3717 = vmatprep.subr.mxu0 0.0
      %3718 = vmatpush2.msra.mxu0 0.0
      %3719 = vmatprep.subr.mxu0 0.0
      %3720 = vmatpush2.msra.mxu0 0.0
      %3721 = vmatprep.subr.mxu0 0.0
      %3722 = vmatpush2.msra.mxu0 0.0
      %3723 = vmatprep.subr.mxu0 0.0
      %3724 = vmatpush2.msra.mxu0 0.0
      %3725 = vmatprep.subr.mxu0 0.0
      %3726 = vmatpush2.msra.mxu0 0.0
      %3727 = vmatprep.mubr.f32.mxu0 0.0
      %3728 = vmatmul.mubr.f32.gmra.mxu0 %v3658
      %v3729 = vpop.f32.mrf.mxu0
      %v3730 = vadd.f32 0.0, %v3729
      %v3731 = vpop.f32.mrf.mxu0
      %3732 = vdwg.mxu0
      %v3733 = vadd.f32 %v3653, %v3730
      %s3734 = scalar_lea.vmem %s13, 96
      %v3735 = vld [vmem:[%s3734] sm:$0xff]
      %v3736 = vld [vmem:[%s3734 + $0x8] sm:$0x1]
      %v3737 = vrot.slane %v3254, 6
      %v3738 = vsel %vm3263, %v3737, 0
      %v3741 = vsel %vm1796, %v3736, 0
      %3743 = vmatprep.subr.mxu0 0.0
      %3744 = vmatpush1.msra.mxu0 0.0
      %3745 = vmatprep.subr.mxu0 0.0
      %3746 = vmatpush1.msra.mxu0 0.0
      %3747 = vmatprep.subr.mxu0 0.0
      %3748 = vmatpush1.msra.mxu0 0.0
      %3749 = vmatprep.subr.mxu0 0.0
      %3750 = vmatpush1.msra.mxu0 0.0
      %3751 = vmatprep.subr.mxu0 0.0
      %3752 = vmatpush1.msra.mxu0 0.0
      %3753 = vmatprep.subr.mxu0 0.0
      %3754 = vmatpush1.msra.mxu0 0.0
      %3755 = vmatprep.subr.mxu0 0.0
      %3756 = vmatpush1.msra.mxu0 0.0
      %3757 = vmatprep.subr.mxu0 0.0
      %3758 = vmatpush1.msra.mxu0 0.0
      %3759 = vmatprep.subr.mxu0 0.0
      %3760 = vmatpush1.msra.mxu0 0.0
      %3761 = vmatprep.subr.mxu0 0.0
      %3762 = vmatpush1.msra.mxu0 0.0
      %3763 = vmatprep.subr.mxu0 0.0
      %3764 = vmatpush1.msra.mxu0 0.0
      %3765 = vmatprep.subr.mxu0 0.0
      %3766 = vmatpush1.msra.mxu0 0.0
      %3767 = vmatprep.subr.mxu0 0.0
      %3768 = vmatpush1.msra.mxu0 0.0
      %3769 = vmatprep.subr.mxu0 0.0
      %3770 = vmatpush1.msra.mxu0 0.0
      %3771 = vmatprep.subr.mxu0 0.0
      %3772 = vmatpush1.msra.mxu0 %v3741
      %3773 = vmatprep.subr.mxu0 0.0
      %3774 = vmatpush1.msra.mxu0 %v3735
      %3775 = vmatprep.subr.mxu0 0.0
      %3776 = vmatpush2.msra.mxu0 0.0
      %3777 = vmatprep.subr.mxu0 0.0
      %3778 = vmatpush2.msra.mxu0 0.0
      %3779 = vmatprep.subr.mxu0 0.0
      %3780 = vmatpush2.msra.mxu0 0.0
      %3781 = vmatprep.subr.mxu0 0.0
      %3782 = vmatpush2.msra.mxu0 0.0
      %3783 = vmatprep.subr.mxu0 0.0
      %3784 = vmatpush2.msra.mxu0 0.0
      %3785 = vmatprep.subr.mxu0 0.0
      %3786 = vmatpush2.msra.mxu0 0.0
      %3787 = vmatprep.subr.mxu0 0.0
      %3788 = vmatpush2.msra.mxu0 0.0
      %3789 = vmatprep.subr.mxu0 0.0
      %3790 = vmatpush2.msra.mxu0 0.0
      %3791 = vmatprep.subr.mxu0 0.0
      %3792 = vmatpush2.msra.mxu0 0.0
      %3793 = vmatprep.subr.mxu0 0.0
      %3794 = vmatpush2.msra.mxu0 0.0
      %3795 = vmatprep.subr.mxu0 0.0
      %3796 = vmatpush2.msra.mxu0 0.0
      %3797 = vmatprep.subr.mxu0 0.0
      %3798 = vmatpush2.msra.mxu0 0.0
      %3799 = vmatprep.subr.mxu0 0.0
      %3800 = vmatpush2.msra.mxu0 0.0
      %3801 = vmatprep.subr.mxu0 0.0
      %3802 = vmatpush2.msra.mxu0 0.0
      %3803 = vmatprep.subr.mxu0 0.0
      %3804 = vmatpush2.msra.mxu0 0.0
      %3805 = vmatprep.subr.mxu0 0.0
      %3806 = vmatpush2.msra.mxu0 0.0
      %3807 = vmatprep.mubr.f32.mxu0 0.0
      %3808 = vmatmul.mubr.f32.gmra.mxu0 %v3738
      %v3809 = vpop.f32.mrf.mxu0
      %v3810 = vadd.f32 0.0, %v3809
      %v3811 = vpop.f32.mrf.mxu0
      %3812 = vdwg.mxu0
      %v3813 = vadd.f32 %v3733, %v3810
      %s3814 = scalar_lea.vmem %s13, 112
      %v3815 = vld [vmem:[%s3814] sm:$0xff]
      %v3816 = vld [vmem:[%s3814 + $0x8] sm:$0x1]
      %v3817 = vrot.slane %v3254, 7
      %v3818 = vsel %vm3263, %v3817, 0
      %v3821 = vsel %vm1796, %v3816, 0
      %3823 = vmatprep.subr.mxu0 0.0
      %3824 = vmatpush1.msra.mxu0 0.0
      %3825 = vmatprep.subr.mxu0 0.0
      %3826 = vmatpush1.msra.mxu0 0.0
      %3827 = vmatprep.subr.mxu0 0.0
      %3828 = vmatpush1.msra.mxu0 0.0
      %3829 = vmatprep.subr.mxu0 0.0
      %3830 = vmatpush1.msra.mxu0 0.0
      %3831 = vmatprep.subr.mxu0 0.0
      %3832 = vmatpush1.msra.mxu0 0.0
      %3833 = vmatprep.subr.mxu0 0.0
      %3834 = vmatpush1.msra.mxu0 0.0
      %3835 = vmatprep.subr.mxu0 0.0
      %3836 = vmatpush1.msra.mxu0 0.0
      %3837 = vmatprep.subr.mxu0 0.0
      %3838 = vmatpush1.msra.mxu0 0.0
      %3839 = vmatprep.subr.mxu0 0.0
      %3840 = vmatpush1.msra.mxu0 0.0
      %3841 = vmatprep.subr.mxu0 0.0
      %3842 = vmatpush1.msra.mxu0 0.0
      %3843 = vmatprep.subr.mxu0 0.0
      %3844 = vmatpush1.msra.mxu0 0.0
      %3845 = vmatprep.subr.mxu0 0.0
      %3846 = vmatpush1.msra.mxu0 0.0
      %3847 = vmatprep.subr.mxu0 0.0
      %3848 = vmatpush1.msra.mxu0 0.0
      %3849 = vmatprep.subr.mxu0 0.0
      %3850 = vmatpush1.msra.mxu0 0.0
      %3851 = vmatprep.subr.mxu0 0.0
      %3852 = vmatpush1.msra.mxu0 %v3821
      %3853 = vmatprep.subr.mxu0 0.0
      %3854 = vmatpush1.msra.mxu0 %v3815
      %3855 = vmatprep.subr.mxu0 0.0
      %3856 = vmatpush2.msra.mxu0 0.0
      %3857 = vmatprep.subr.mxu0 0.0
      %3858 = vmatpush2.msra.mxu0 0.0
      %3859 = vmatprep.subr.mxu0 0.0
      %3860 = vmatpush2.msra.mxu0 0.0
      %3861 = vmatprep.subr.mxu0 0.0
      %3862 = vmatpush2.msra.mxu0 0.0
      %3863 = vmatprep.subr.mxu0 0.0
      %3864 = vmatpush2.msra.mxu0 0.0
      %3865 = vmatprep.subr.mxu0 0.0
      %3866 = vmatpush2.msra.mxu0 0.0
      %3867 = vmatprep.subr.mxu0 0.0
      %3868 = vmatpush2.msra.mxu0 0.0
      %3869 = vmatprep.subr.mxu0 0.0
      %3870 = vmatpush2.msra.mxu0 0.0
      %3871 = vmatprep.subr.mxu0 0.0
      %3872 = vmatpush2.msra.mxu0 0.0
      %3873 = vmatprep.subr.mxu0 0.0
      %3874 = vmatpush2.msra.mxu0 0.0
      %3875 = vmatprep.subr.mxu0 0.0
      %3876 = vmatpush2.msra.mxu0 0.0
      %3877 = vmatprep.subr.mxu0 0.0
      %3878 = vmatpush2.msra.mxu0 0.0
      %3879 = vmatprep.subr.mxu0 0.0
      %3880 = vmatpush2.msra.mxu0 0.0
      %3881 = vmatprep.subr.mxu0 0.0
      %3882 = vmatpush2.msra.mxu0 0.0
      %3883 = vmatprep.subr.mxu0 0.0
      %3884 = vmatpush2.msra.mxu0 0.0
      %3885 = vmatprep.subr.mxu0 0.0
      %3886 = vmatpush2.msra.mxu0 0.0
      %3887 = vmatprep.mubr.f32.mxu0 0.0
      %3888 = vmatmul.mubr.f32.gmra.mxu0 %v3818
      %v3889 = vpop.f32.mrf.mxu0
      %v3890 = vadd.f32 0.0, %v3889
      %v3891 = vpop.f32.mrf.mxu0
      %3892 = vdwg.mxu0
      %v3893 = vadd.f32 %v3813, %v3890
      %s3894 = scalar_lea.vmem %s13, 128
      %v3895 = vld [vmem:[%s3894] sm:$0xff]
      %v3896 = vld [vmem:[%s3894 + $0x8] sm:$0x1]
      %v3898 = vsel %vm3263, %v3255, 0
      %v3901 = vsel %vm1796, %v3896, 0
      %3903 = vmatprep.subr.mxu0 0.0
      %3904 = vmatpush1.msra.mxu0 0.0
      %3905 = vmatprep.subr.mxu0 0.0
      %3906 = vmatpush1.msra.mxu0 0.0
      %3907 = vmatprep.subr.mxu0 0.0
      %3908 = vmatpush1.msra.mxu0 0.0
      %3909 = vmatprep.subr.mxu0 0.0
      %3910 = vmatpush1.msra.mxu0 0.0
      %3911 = vmatprep.subr.mxu0 0.0
      %3912 = vmatpush1.msra.mxu0 0.0
      %3913 = vmatprep.subr.mxu0 0.0
      %3914 = vmatpush1.msra.mxu0 0.0
      %3915 = vmatprep.subr.mxu0 0.0
      %3916 = vmatpush1.msra.mxu0 0.0
      %3917 = vmatprep.subr.mxu0 0.0
      %3918 = vmatpush1.msra.mxu0 0.0
      %3919 = vmatprep.subr.mxu0 0.0
      %3920 = vmatpush1.msra.mxu0 0.0
      %3921 = vmatprep.subr.mxu0 0.0
      %3922 = vmatpush1.msra.mxu0 0.0
      %3923 = vmatprep.subr.mxu0 0.0
      %3924 = vmatpush1.msra.mxu0 0.0
      %3925 = vmatprep.subr.mxu0 0.0
      %3926 = vmatpush1.msra.mxu0 0.0
      %3927 = vmatprep.subr.mxu0 0.0
      %3928 = vmatpush1.msra.mxu0 0.0
      %3929 = vmatprep.subr.mxu0 0.0
      %3930 = vmatpush1.msra.mxu0 0.0
      %3931 = vmatprep.subr.mxu0 0.0
      %3932 = vmatpush1.msra.mxu0 %v3901
      %3933 = vmatprep.subr.mxu0 0.0
      %3934 = vmatpush1.msra.mxu0 %v3895
      %3935 = vmatprep.subr.mxu0 0.0
      %3936 = vmatpush2.msra.mxu0 0.0
      %3937 = vmatprep.subr.mxu0 0.0
      %3938 = vmatpush2.msra.mxu0 0.0
      %3939 = vmatprep.subr.mxu0 0.0
      %3940 = vmatpush2.msra.mxu0 0.0
      %3941 = vmatprep.subr.mxu0 0.0
      %3942 = vmatpush2.msra.mxu0 0.0
      %3943 = vmatprep.subr.mxu0 0.0
      %3944 = vmatpush2.msra.mxu0 0.0
      %3945 = vmatprep.subr.mxu0 0.0
      %3946 = vmatpush2.msra.mxu0 0.0
      %3947 = vmatprep.subr.mxu0 0.0
      %3948 = vmatpush2.msra.mxu0 0.0
      %3949 = vmatprep.subr.mxu0 0.0
      %3950 = vmatpush2.msra.mxu0 0.0
      %3951 = vmatprep.subr.mxu0 0.0
      %3952 = vmatpush2.msra.mxu0 0.0
      %3953 = vmatprep.subr.mxu0 0.0
      %3954 = vmatpush2.msra.mxu0 0.0
      %3955 = vmatprep.subr.mxu0 0.0
      %3956 = vmatpush2.msra.mxu0 0.0
      %3957 = vmatprep.subr.mxu0 0.0
      %3958 = vmatpush2.msra.mxu0 0.0
      %3959 = vmatprep.subr.mxu0 0.0
      %3960 = vmatpush2.msra.mxu0 0.0
      %3961 = vmatprep.subr.mxu0 0.0
      %3962 = vmatpush2.msra.mxu0 0.0
      %3963 = vmatprep.subr.mxu0 0.0
      %3964 = vmatpush2.msra.mxu0 0.0
      %3965 = vmatprep.subr.mxu0 0.0
      %3966 = vmatpush2.msra.mxu0 0.0
      %3967 = vmatprep.mubr.f32.mxu0 0.0
      %3968 = vmatmul.mubr.f32.gmra.mxu0 %v3898
      %v3969 = vpop.f32.mrf.mxu0
      %v3970 = vadd.f32 0.0, %v3969
      %v3971 = vpop.f32.mrf.mxu0
      %3972 = vdwg.mxu0
      %v3973 = vadd.f32 %v3893, %v3970
      %s3974 = scalar_lea.vmem [#allocation2], %s91
      %vm3975 = vcmask 188416
      %3976 = vst.msk [vmem:[%s3974] sm:$0x1] %vm3975, %v3973
    $region114: #{dqn_forward.1} parent=1 // loop_footer
      %s95 = sadd.s32 1, %s91
    $region115: #{dqn_forward.1} parent=1 // loop_footer_branch
      %90 = sbr.rel target = $region111
    $region116: #{dqn_forward.1} parent=1 // loop_exit
      _
    %v3977 = vld [vmem:[%s0] sm:$0x3]
    %v3978 = vld [vmem:[%s15] sm:$0xff]
    %v3979 = vld [vmem:[%s15 + $0x8] sm:$0xff]
    %v3980 = vld [vmem:[%s15 + $0x10] sm:$0x3]
    %v3981 = vld [vmem:[%s16] sm:$0x1]
    %v3983 = vlaneseq
    %v3984 = vshrl.u32 %v3983, 7
    %v3985 = vsub.s32 0, %v3984
    %v3986 = vrot.slane %v3981, %v3985
    %vm3988 = vcmask 146432
    %v3990 = vsel %vm3988, %v3977, 0
    %vm3992 = vcmask 1041408
    %v3994 = vsel %vm3992, %v3980, 0
    %3996 = vmatprep.subr.mxu0 0.0
    %3997 = vmatpush1.msra.mxu0 0.0
    %3998 = vmatprep.subr.mxu0 0.0
    %3999 = vmatpush1.msra.mxu0 0.0
    %4000 = vmatprep.subr.mxu0 0.0
    %4001 = vmatpush1.msra.mxu0 0.0
    %4002 = vmatprep.subr.mxu0 0.0
    %4003 = vmatpush1.msra.mxu0 0.0
    %4004 = vmatprep.subr.mxu0 0.0
    %4005 = vmatpush1.msra.mxu0 0.0
    %4006 = vmatprep.subr.mxu0 0.0
    %4007 = vmatpush1.msra.mxu0 0.0
    %4008 = vmatprep.subr.mxu0 0.0
    %4009 = vmatpush1.msra.mxu0 0.0
    %4010 = vmatprep.subr.mxu0 0.0
    %4011 = vmatpush1.msra.mxu0 0.0
    %4012 = vmatprep.subr.mxu0 0.0
    %4013 = vmatpush1.msra.mxu0 0.0
    %4014 = vmatprep.subr.mxu0 0.0
    %4015 = vmatpush1.msra.mxu0 0.0
    %4016 = vmatprep.subr.mxu0 0.0
    %4017 = vmatpush1.msra.mxu0 0.0
    %4018 = vmatprep.subr.mxu0 0.0
    %4019 = vmatpush1.msra.mxu0 0.0
    %4020 = vmatprep.subr.mxu0 0.0
    %4021 = vmatpush1.msra.mxu0 0.0
    %4022 = vmatprep.subr.mxu0 0.0
    %4023 = vmatpush1.msra.mxu0 %v3994
    %4024 = vmatprep.subr.mxu0 0.0
    %4025 = vmatpush1.msra.mxu0 %v3979
    %4026 = vmatprep.subr.mxu0 0.0
    %4027 = vmatpush1.msra.mxu0 %v3978
    %4028 = vmatprep.subr.mxu0 0.0
    %4029 = vmatpush2.msra.mxu0 0.0
    %4030 = vmatprep.subr.mxu0 0.0
    %4031 = vmatpush2.msra.mxu0 0.0
    %4032 = vmatprep.subr.mxu0 0.0
    %4033 = vmatpush2.msra.mxu0 0.0
    %4034 = vmatprep.subr.mxu0 0.0
    %4035 = vmatpush2.msra.mxu0 0.0
    %4036 = vmatprep.subr.mxu0 0.0
    %4037 = vmatpush2.msra.mxu0 0.0
    %4038 = vmatprep.subr.mxu0 0.0
    %4039 = vmatpush2.msra.mxu0 0.0
    %4040 = vmatprep.subr.mxu0 0.0
    %4041 = vmatpush2.msra.mxu0 0.0
    %4042 = vmatprep.subr.mxu0 0.0
    %4043 = vmatpush2.msra.mxu0 0.0
    %4044 = vmatprep.subr.mxu0 0.0
    %4045 = vmatpush2.msra.mxu0 0.0
    %4046 = vmatprep.subr.mxu0 0.0
    %4047 = vmatpush2.msra.mxu0 0.0
    %4048 = vmatprep.subr.mxu0 0.0
    %4049 = vmatpush2.msra.mxu0 0.0
    %4050 = vmatprep.subr.mxu0 0.0
    %4051 = vmatpush2.msra.mxu0 0.0
    %4052 = vmatprep.subr.mxu0 0.0
    %4053 = vmatpush2.msra.mxu0 0.0
    %4054 = vmatprep.subr.mxu0 0.0
    %4055 = vmatpush2.msra.mxu0 0.0
    %4056 = vmatprep.subr.mxu0 0.0
    %4057 = vmatpush2.msra.mxu0 0.0
    %4058 = vmatprep.subr.mxu0 0.0
    %4059 = vmatpush2.msra.mxu0 0.0
    %4060 = vmatprep.mubr.f32.mxu0 0.0
    %4061 = vmatmul.mubr.f32.gmra.mxu0 %v3990
    %v4062 = vpop.f32.mrf.mxu0
    %v4063 = vadd.f32 %v3986, %v4062
    %v4064 = vpop.f32.mrf.mxu0
    %4065 = vdwg.mxu0
    %vm4066 = vcmp.gt.f32.partialorder %v4063, 0.0
    %v4067 = vmin.f32 %v4063, 0.0
    %v4068 = vmul.f32 %v4067, 1.442695
    %v4069 = vpow.pop %v4068
    %v4070 = vsub.f32 %v4069, 1.0
    %v4071 = vsel %vm4066, %v4063, %v4070
    %v4072 = vld [vmem:[#allocation2] sm:$0x3]
    %v4073 = vld [vmem:[%s14] sm:$0x1]
    %v4075 = vlaneseq
    %v4076 = vshrl.u32 %v4075, 7
    %v4077 = vsub.s32 0, %v4076
    %v4078 = vrot.slane %v4073, %v4077
    %v4080 = vadd.f32 %v4072, %v4078
    %vm4081 = vcmp.gt.f32.partialorder %v4080, 0.0
    %v4082 = vmin.f32 %v4080, 0.0
    %v4083 = vmul.f32 %v4082, 1.442695
    %v4084 = vpow.pop %v4083
    %v4085 = vsub.f32 %v4084, 1.0
    %v4086 = vsel %vm4081, %v4080, %v4085
    %v4087 = vld [vmem:[%s1] sm:$0x3]
    %v4088 = vld [vmem:[%s17] sm:$0x1f]
    %v4089 = vld [vmem:[%s18] sm:$0x1]
    %v4091 = vlaneseq
    %v4092 = vshrl.u32 %v4091, 7
    %v4093 = vsub.s32 0, %v4092
    %v4094 = vrot.slane %v4089, %v4093
    %vm4096 = vcmask 39936
    %v4098 = vsel %vm4096, %v4087, 0
    %vm4100 = vcmask 1044480
    %v4102 = vsel %vm4100, %v4088, 0
    %4104 = vmatprep.subr.mxu0 0.0
    %4105 = vmatpush1.msra.mxu0 0.0
    %4106 = vmatprep.subr.mxu0 0.0
    %4107 = vmatpush1.msra.mxu0 0.0
    %4108 = vmatprep.subr.mxu0 0.0
    %4109 = vmatpush1.msra.mxu0 0.0
    %4110 = vmatprep.subr.mxu0 0.0
    %4111 = vmatpush1.msra.mxu0 0.0
    %4112 = vmatprep.subr.mxu0 0.0
    %4113 = vmatpush1.msra.mxu0 0.0
    %4114 = vmatprep.subr.mxu0 0.0
    %4115 = vmatpush1.msra.mxu0 0.0
    %4116 = vmatprep.subr.mxu0 0.0
    %4117 = vmatpush1.msra.mxu0 0.0
    %4118 = vmatprep.subr.mxu0 0.0
    %4119 = vmatpush1.msra.mxu0 0.0
    %4120 = vmatprep.subr.mxu0 0.0
    %4121 = vmatpush1.msra.mxu0 0.0
    %4122 = vmatprep.subr.mxu0 0.0
    %4123 = vmatpush1.msra.mxu0 0.0
    %4124 = vmatprep.subr.mxu0 0.0
    %4125 = vmatpush1.msra.mxu0 0.0
    %4126 = vmatprep.subr.mxu0 0.0
    %4127 = vmatpush1.msra.mxu0 0.0
    %4128 = vmatprep.subr.mxu0 0.0
    %4129 = vmatpush1.msra.mxu0 0.0
    %4130 = vmatprep.subr.mxu0 0.0
    %4131 = vmatpush1.msra.mxu0 0.0
    %4132 = vmatprep.subr.mxu0 0.0
    %4133 = vmatpush1.msra.mxu0 0.0
    %4134 = vmatprep.subr.mxu0 0.0
    %4135 = vmatpush1.msra.mxu0 %v4102
    %4136 = vmatprep.subr.mxu0 0.0
    %4137 = vmatpush2.msra.mxu0 0.0
    %4138 = vmatprep.subr.mxu0 0.0
    %4139 = vmatpush2.msra.mxu0 0.0
    %4140 = vmatprep.subr.mxu0 0.0
    %4141 = vmatpush2.msra.mxu0 0.0
    %4142 = vmatprep.subr.mxu0 0.0
    %4143 = vmatpush2.msra.mxu0 0.0
    %4144 = vmatprep.subr.mxu0 0.0
    %4145 = vmatpush2.msra.mxu0 0.0
    %4146 = vmatprep.subr.mxu0 0.0
    %4147 = vmatpush2.msra.mxu0 0.0
    %4148 = vmatprep.subr.mxu0 0.0
    %4149 = vmatpush2.msra.mxu0 0.0
    %4150 = vmatprep.subr.mxu0 0.0
    %4151 = vmatpush2.msra.mxu0 0.0
    %4152 = vmatprep.subr.mxu0 0.0
    %4153 = vmatpush2.msra.mxu0 0.0
    %4154 = vmatprep.subr.mxu0 0.0
    %4155 = vmatpush2.msra.mxu0 0.0
    %4156 = vmatprep.subr.mxu0 0.0
    %4157 = vmatpush2.msra.mxu0 0.0
    %4158 = vmatprep.subr.mxu0 0.0
    %4159 = vmatpush2.msra.mxu0 0.0
    %4160 = vmatprep.subr.mxu0 0.0
    %4161 = vmatpush2.msra.mxu0 0.0
    %4162 = vmatprep.subr.mxu0 0.0
    %4163 = vmatpush2.msra.mxu0 0.0
    %4164 = vmatprep.subr.mxu0 0.0
    %4165 = vmatpush2.msra.mxu0 0.0
    %4166 = vmatprep.subr.mxu0 0.0
    %4167 = vmatpush2.msra.mxu0 0.0
    %4168 = vmatprep.mubr.f32.mxu0 0.0
    %4169 = vmatmul.mubr.f32.gmra.mxu0 %v4098
    %v4170 = vpop.f32.mrf.mxu0
    %v4171 = vadd.f32 %v4094, %v4170
    %v4172 = vpop.f32.mrf.mxu0
    %4173 = vdwg.mxu0
    %v4174 = vld [vmem:[%s19] sm:$0x1f]
    %v4176 = vsel %vm4096, %v4171, 0
    %v4179 = vsel %vm4100, %v4174, 0
    %4181 = vmatprep.subr.mxu0 0.0
    %4182 = vmatpush1.msra.mxu0 0.0
    %4183 = vmatprep.subr.mxu0 0.0
    %4184 = vmatpush1.msra.mxu0 0.0
    %4185 = vmatprep.subr.mxu0 0.0
    %4186 = vmatpush1.msra.mxu0 0.0
    %4187 = vmatprep.subr.mxu0 0.0
    %4188 = vmatpush1.msra.mxu0 0.0
    %4189 = vmatprep.subr.mxu0 0.0
    %4190 = vmatpush1.msra.mxu0 0.0
    %4191 = vmatprep.subr.mxu0 0.0
    %4192 = vmatpush1.msra.mxu0 0.0
    %4193 = vmatprep.subr.mxu0 0.0
    %4194 = vmatpush1.msra.mxu0 0.0
    %4195 = vmatprep.subr.mxu0 0.0
    %4196 = vmatpush1.msra.mxu0 0.0
    %4197 = vmatprep.subr.mxu0 0.0
    %4198 = vmatpush1.msra.mxu0 0.0
    %4199 = vmatprep.subr.mxu0 0.0
    %4200 = vmatpush1.msra.mxu0 0.0
    %4201 = vmatprep.subr.mxu0 0.0
    %4202 = vmatpush1.msra.mxu0 0.0
    %4203 = vmatprep.subr.mxu0 0.0
    %4204 = vmatpush1.msra.mxu0 0.0
    %4205 = vmatprep.subr.mxu0 0.0
    %4206 = vmatpush1.msra.mxu0 0.0
    %4207 = vmatprep.subr.mxu0 0.0
    %4208 = vmatpush1.msra.mxu0 0.0
    %4209 = vmatprep.subr.mxu0 0.0
    %4210 = vmatpush1.msra.mxu0 0.0
    %4211 = vmatprep.subr.mxu0 0.0
    %4212 = vmatpush1.msra.mxu0 %v4179
    %4213 = vmatprep.subr.mxu0 0.0
    %4214 = vmatpush2.msra.mxu0 0.0
    %4215 = vmatprep.subr.mxu0 0.0
    %4216 = vmatpush2.msra.mxu0 0.0
    %4217 = vmatprep.subr.mxu0 0.0
    %4218 = vmatpush2.msra.mxu0 0.0
    %4219 = vmatprep.subr.mxu0 0.0
    %4220 = vmatpush2.msra.mxu0 0.0
    %4221 = vmatprep.subr.mxu0 0.0
    %4222 = vmatpush2.msra.mxu0 0.0
    %4223 = vmatprep.subr.mxu0 0.0
    %4224 = vmatpush2.msra.mxu0 0.0
    %4225 = vmatprep.subr.mxu0 0.0
    %4226 = vmatpush2.msra.mxu0 0.0
    %4227 = vmatprep.subr.mxu0 0.0
    %4228 = vmatpush2.msra.mxu0 0.0
    %4229 = vmatprep.subr.mxu0 0.0
    %4230 = vmatpush2.msra.mxu0 0.0
    %4231 = vmatprep.subr.mxu0 0.0
    %4232 = vmatpush2.msra.mxu0 0.0
    %4233 = vmatprep.subr.mxu0 0.0
    %4234 = vmatpush2.msra.mxu0 0.0
    %4235 = vmatprep.subr.mxu0 0.0
    %4236 = vmatpush2.msra.mxu0 0.0
    %4237 = vmatprep.subr.mxu0 0.0
    %4238 = vmatpush2.msra.mxu0 0.0
    %4239 = vmatprep.subr.mxu0 0.0
    %4240 = vmatpush2.msra.mxu0 0.0
    %4241 = vmatprep.subr.mxu0 0.0
    %4242 = vmatpush2.msra.mxu0 0.0
    %4243 = vmatprep.subr.mxu0 0.0
    %4244 = vmatpush2.msra.mxu0 0.0
    %4245 = vmatprep.mubr.f32.mxu0 0.0
    %4246 = vmatmul.mubr.f32.gmra.mxu0 %v4176
    %v4247 = vpop.f32.mrf.mxu0
    %v4248 = vadd.f32 0.0, %v4247
    %v4249 = vpop.f32.mrf.mxu0
    %4250 = vdwg.mxu0
    %v4251 = vld [vmem:[%s20] sm:$0x1]
    %v4253 = vlaneseq
    %v4254 = vshrl.u32 %v4253, 7
    %v4255 = vsub.s32 0, %v4254
    %v4256 = vrot.slane %v4251, %v4255
    %v4258 = vmul.f32 %v4171, %v4256
    %vm4259 = vcmask 33792
    %v4260 = vsel %vm4259, %v4258, 0.0
    %4261 = vadd.xlane.f32.xlu0 %v4260
    %v4262 = vpop.xlane.xlu0 %4261
    %v4263 = vld [vmem:[%s2] sm:$0x7]
    %v4264 = vld [vmem:[%s2 + $0x4] sm:$0x7]
    %v4267 = vunpack.c.l.s4 1966171168
    %v4268 = vunpack.c.0.s8 %v4267
    %v4269 = vlaneseq
    %v4270 = vshrl.u32 %v4269, 7
    %v4271 = vsub.s32 %v4268, %v4270
    %v4272 = vrot.slane %v4248, %v4271
    %v4273 = vcombine.high %v4272, %v4272
    %v4275 = vunpack.c.l.s4 1966171168
    %v4276 = vunpack.c.0.s8 %v4275
    %v4277 = vlaneseq
    %v4278 = vshrl.u32 %v4277, 7
    %v4279 = vsub.s32 %v4276, %v4278
    %v4280 = vrot.slane %v4272, %v4279
    %v4282 = vunpack.c.l.s4 1966171168
    %v4283 = vunpack.c.0.s8 %v4282
    %v4284 = vlaneseq
    %v4285 = vshrl.u32 %v4284, 7
    %v4286 = vsub.s32 %v4283, %v4285
    %v4287 = vrot.slane %v4273, %v4286
    %v4288 = vlaneseq
    %v4289 = vshrl.u32 %v4288, 7
    %v4290 = vsub.s32 0, %v4289
    %v4291 = vrot.slane %v4280, %v4290
    %v4292 = vlaneseq
    %v4293 = vshrl.u32 %v4292, 7
    %v4294 = vsub.s32 0, %v4293
    %v4295 = vrot.slane %v4287, %v4294
    %v4298 = vmul.f32 %v4263, %v4291
    %v4299 = vmul.f32 %v4264, %v4295
    %vm4300 = vcmask 34816
    %v4301 = vsel %vm4300, %v4298, 0.0
    %4302 = vadd.xlane.f32.xlu0 %v4301
    %v4303 = vpop.xlane.xlu0 %4302
    %v4304 = vsel %vm4300, %v4299, 0.0
    %4305 = vadd.xlane.f32.xlu0 %v4304
    %v4306 = vpop.xlane.xlu0 %4305
    %v4308 = vlaneseq
    %v4309 = vshrl.u32 %v4308, 7
    %v4310 = vsub.s32 0, %v4309
    %v4311 = vrot.slane %v4262, %v4310
    %v4312 = vlaneseq
    %v4313 = vshrl.u32 %v4312, 7
    %v4314 = vsub.s32 1, %v4313
    %v4315 = vrot.slane %v4262, %v4314
    %v4318 = vadd.f32 %v4303, %v4311
    %v4319 = vadd.f32 %v4306, %v4315
    %4322 = vset.pattern.permute.xlu0 0
    %4323 = vperm.xlu0 %4322, %v4318
    %v4324 = vpop.permute.xlu0 %4323
    %4325 = vset.pattern.permute.xlu0 0
    %4326 = vperm.xlu0 %4325, %v4319
    %v4327 = vpop.permute.xlu0 %4326
    %v4328 = vlaneseq
    %v4329 = vand.u32 %v4328, 127
    %v4330 = vlaneseq
    %v4331 = vshrl.u32 %v4330, 7
    %v4332 = vsub.s32 %v4329, %v4331
    %v4333 = vrot.slane %v4324, %v4332
    %v4334 = vlaneseq
    %v4335 = vshrl.u32 %v4334, 7
    %v4336 = vsub.s32 %v4329, %v4335
    %v4337 = vrot.slane %v4327, %v4336
    %vm4338 = vcmask 1041409
    %v4339 = vsel %vm4338, %v4337, %v4333
    %vm4341 = vcmask 17408
    %v4342 = vsel %vm4341, %v4339, -inf
    %4343 = vmax.xlane.f32.xlu0 %v4342
    %v4344 = vpop.xlane.xlu0 %4343
    %v4346 = vlaneseq
    %v4347 = vshrl.u32 %v4346, 7
    %v4348 = vsub.s32 0, %v4347
    %v4349 = vrot.slane %v4344, %v4348
    %v4350 = vlaneseq
    %v4351 = vshrl.u32 %v4350, 7
    %v4352 = vsub.s32 1, %v4351
    %v4353 = vrot.slane %v4344, %v4352
    %v4356 = vsub.f32 %v4318, %v4349
    %v4357 = vsub.f32 %v4319, %v4353
    %v4358 = vmul.f32 %v4356, 1.442695
    %v4359 = vpow.pop %v4358
    %v4360 = vmul.f32 %v4357, 1.442695
    %v4361 = vpow.pop %v4360
    %4364 = vset.pattern.permute.xlu0 0
    %4365 = vperm.xlu0 %4364, %v4359
    %v4366 = vpop.permute.xlu0 %4365
    %4367 = vset.pattern.permute.xlu0 0
    %4368 = vperm.xlu0 %4367, %v4361
    %v4369 = vpop.permute.xlu0 %4368
    %v4370 = vlaneseq
    %v4371 = vshrl.u32 %v4370, 7
    %v4372 = vsub.s32 %v4329, %v4371
    %v4373 = vrot.slane %v4366, %v4372
    %v4374 = vlaneseq
    %v4375 = vshrl.u32 %v4374, 7
    %v4376 = vsub.s32 %v4329, %v4375
    %v4377 = vrot.slane %v4369, %v4376
    %v4378 = vsel %vm4338, %v4377, %v4373
    %v4380 = vsel %vm4341, %v4378, 0.0
    %4381 = vadd.xlane.f32.xlu0 %v4380
    %v4382 = vpop.xlane.xlu0 %4381
    %v4383 = vrcp.pop %v4382
    %v4384 = vmul.f32 %v4382, %v4383
    %v4385 = vsub.f32 2.0, %v4384
    %v4386 = vmul.f32 %v4383, %v4385
    %v4388 = vlaneseq
    %v4389 = vshrl.u32 %v4388, 7
    %v4390 = vsub.s32 0, %v4389
    %v4391 = vrot.slane %v4386, %v4390
    %v4392 = vlaneseq
    %v4393 = vshrl.u32 %v4392, 7
    %v4394 = vsub.s32 1, %v4393
    %v4395 = vrot.slane %v4386, %v4394
    %v4398 = vmul.f32 %v4359, %v4391
    %v4399 = vmul.f32 %v4361, %v4395
    %4402 = vset.pattern.permute.xlu0 0
    %4403 = vperm.xlu0 %4402, %v4398
    %v4404 = vpop.permute.xlu0 %4403
    %4405 = vset.pattern.permute.xlu0 0
    %4406 = vperm.xlu0 %4405, %v4399
    %v4407 = vpop.permute.xlu0 %4406
    %v4408 = vlaneseq
    %v4409 = vshrl.u32 %v4408, 7
    %v4410 = vsub.s32 %v4329, %v4409
    %v4411 = vrot.slane %v4404, %v4410
    %v4412 = vlaneseq
    %v4413 = vshrl.u32 %v4412, 7
    %v4414 = vsub.s32 %v4329, %v4413
    %v4415 = vrot.slane %v4407, %v4414
    %v4416 = vsel %vm4338, %v4415, %v4411
    %4418 = vst.msk [vmem:[#allocation5] sm:$0x3] %vm4341, %v4416
    %v4419 = vld [vmem:[%s21] sm:$0xff]
    %v4420 = vld [vmem:[%s21 + $0x8] sm:$0xff]
    %v4421 = vld [vmem:[%s21 + $0x10] sm:$0xff]
    %v4422 = vld [vmem:[%s21 + $0x18] sm:$0xff]
    %v4423 = vld [vmem:[%s22] sm:$0xff]
    %v4424 = vld [vmem:[%s22 + $0x8] sm:$0xff]
    %v4425 = vld [vmem:[%s22 + $0x10] sm:$0xff]
    %vm4426 = vcmask 195584
    %v4428 = vsel %vm4426, %v4086, 0
    %4430 = vmatprep.subr.mxu0 0.0
    %4431 = vmatpush1.msra.mxu0 0.0
    %4432 = vmatprep.subr.mxu0 0.0
    %4433 = vmatpush1.msra.mxu0 0.0
    %4434 = vmatprep.subr.mxu0 0.0
    %4435 = vmatpush1.msra.mxu0 0.0
    %4436 = vmatprep.subr.mxu0 0.0
    %4437 = vmatpush1.msra.mxu0 0.0
    %4438 = vmatprep.subr.mxu0 0.0
    %4439 = vmatpush1.msra.mxu0 0.0
    %4440 = vmatprep.subr.mxu0 0.0
    %4441 = vmatpush1.msra.mxu0 0.0
    %4442 = vmatprep.subr.mxu0 0.0
    %4443 = vmatpush1.msra.mxu0 0.0
    %4444 = vmatprep.subr.mxu0 0.0
    %4445 = vmatpush1.msra.mxu0 0.0
    %4446 = vmatprep.subr.mxu0 0.0
    %4447 = vmatpush1.msra.mxu0 0.0
    %4448 = vmatprep.subr.mxu0 0.0
    %4449 = vmatpush1.msra.mxu0 0.0
    %4450 = vmatprep.subr.mxu0 0.0
    %4451 = vmatpush1.msra.mxu0 0.0
    %4452 = vmatprep.subr.mxu0 0.0
    %4453 = vmatpush1.msra.mxu0 0.0
    %4454 = vmatprep.subr.mxu0 0.0
    %4455 = vmatpush1.msra.mxu0 0.0
    %4456 = vmatprep.subr.mxu0 0.0
    %4457 = vmatpush1.msra.mxu0 %v4425
    %4458 = vmatprep.subr.mxu0 0.0
    %4459 = vmatpush1.msra.mxu0 %v4424
    %4460 = vmatprep.subr.mxu0 0.0
    %4461 = vmatpush1.msra.mxu0 %v4423
    %4462 = vmatprep.subr.mxu0 0.0
    %4463 = vmatpush2.msra.mxu0 0.0
    %4464 = vmatprep.subr.mxu0 0.0
    %4465 = vmatpush2.msra.mxu0 0.0
    %4466 = vmatprep.subr.mxu0 0.0
    %4467 = vmatpush2.msra.mxu0 0.0
    %4468 = vmatprep.subr.mxu0 0.0
    %4469 = vmatpush2.msra.mxu0 0.0
    %4470 = vmatprep.subr.mxu0 0.0
    %4471 = vmatpush2.msra.mxu0 0.0
    %4472 = vmatprep.subr.mxu0 0.0
    %4473 = vmatpush2.msra.mxu0 0.0
    %4474 = vmatprep.subr.mxu0 0.0
    %4475 = vmatpush2.msra.mxu0 0.0
    %4476 = vmatprep.subr.mxu0 0.0
    %4477 = vmatpush2.msra.mxu0 0.0
    %4478 = vmatprep.subr.mxu0 0.0
    %4479 = vmatpush2.msra.mxu0 0.0
    %4480 = vmatprep.subr.mxu0 0.0
    %4481 = vmatpush2.msra.mxu0 0.0
    %4482 = vmatprep.subr.mxu0 0.0
    %4483 = vmatpush2.msra.mxu0 0.0
    %4484 = vmatprep.subr.mxu0 0.0
    %4485 = vmatpush2.msra.mxu0 0.0
    %4486 = vmatprep.subr.mxu0 0.0
    %4487 = vmatpush2.msra.mxu0 0.0
    %4488 = vmatprep.subr.mxu0 0.0
    %4489 = vmatpush2.msra.mxu0 0.0
    %4490 = vmatprep.subr.mxu0 0.0
    %4491 = vmatpush2.msra.mxu0 0.0
    %4492 = vmatprep.subr.mxu0 0.0
    %4493 = vmatpush2.msra.mxu0 0.0
    %4494 = vmatprep.mubr.f32.mxu0 0.0
    %4495 = vmatmul.mubr.f32.gmra.mxu0 %v4428
    %v4496 = vpop.f32.mrf.mxu0
    %v4497 = vadd.f32 0.0, %v4496
    %v4498 = vpop.f32.mrf.mxu0
    %4499 = vdwg.mxu0
    %vm4500 = vcmask 261120
    %v4502 = vsel %vm4500, %v4071, 0
    %4504 = vmatprep.subr.mxu0 0.0
    %4505 = vmatpush1.msra.mxu0 0.0
    %4506 = vmatprep.subr.mxu0 0.0
    %4507 = vmatpush1.msra.mxu0 0.0
    %4508 = vmatprep.subr.mxu0 0.0
    %4509 = vmatpush1.msra.mxu0 0.0
    %4510 = vmatprep.subr.mxu0 0.0
    %4511 = vmatpush1.msra.mxu0 0.0
    %4512 = vmatprep.subr.mxu0 0.0
    %4513 = vmatpush1.msra.mxu0 0.0
    %4514 = vmatprep.subr.mxu0 0.0
    %4515 = vmatpush1.msra.mxu0 0.0
    %4516 = vmatprep.subr.mxu0 0.0
    %4517 = vmatpush1.msra.mxu0 0.0
    %4518 = vmatprep.subr.mxu0 0.0
    %4519 = vmatpush1.msra.mxu0 0.0
    %4520 = vmatprep.subr.mxu0 0.0
    %4521 = vmatpush1.msra.mxu0 0.0
    %4522 = vmatprep.subr.mxu0 0.0
    %4523 = vmatpush1.msra.mxu0 0.0
    %4524 = vmatprep.subr.mxu0 0.0
    %4525 = vmatpush1.msra.mxu0 0.0
    %4526 = vmatprep.subr.mxu0 0.0
    %4527 = vmatpush1.msra.mxu0 0.0
    %4528 = vmatprep.subr.mxu0 0.0
    %4529 = vmatpush1.msra.mxu0 %v4422
    %4530 = vmatprep.subr.mxu0 0.0
    %4531 = vmatpush1.msra.mxu0 %v4421
    %4532 = vmatprep.subr.mxu0 0.0
    %4533 = vmatpush1.msra.mxu0 %v4420
    %4534 = vmatprep.subr.mxu0 0.0
    %4535 = vmatpush1.msra.mxu0 %v4419
    %4536 = vmatprep.subr.mxu0 0.0
    %4537 = vmatpush2.msra.mxu0 0.0
    %4538 = vmatprep.subr.mxu0 0.0
    %4539 = vmatpush2.msra.mxu0 0.0
    %4540 = vmatprep.subr.mxu0 0.0
    %4541 = vmatpush2.msra.mxu0 0.0
    %4542 = vmatprep.subr.mxu0 0.0
    %4543 = vmatpush2.msra.mxu0 0.0
    %4544 = vmatprep.subr.mxu0 0.0
    %4545 = vmatpush2.msra.mxu0 0.0
    %4546 = vmatprep.subr.mxu0 0.0
    %4547 = vmatpush2.msra.mxu0 0.0
    %4548 = vmatprep.subr.mxu0 0.0
    %4549 = vmatpush2.msra.mxu0 0.0
    %4550 = vmatprep.subr.mxu0 0.0
    %4551 = vmatpush2.msra.mxu0 0.0
    %4552 = vmatprep.subr.mxu0 0.0
    %4553 = vmatpush2.msra.mxu0 0.0
    %4554 = vmatprep.subr.mxu0 0.0
    %4555 = vmatpush2.msra.mxu0 0.0
    %4556 = vmatprep.subr.mxu0 0.0
    %4557 = vmatpush2.msra.mxu0 0.0
    %4558 = vmatprep.subr.mxu0 0.0
    %4559 = vmatpush2.msra.mxu0 0.0
    %4560 = vmatprep.subr.mxu0 0.0
    %4561 = vmatpush2.msra.mxu0 0.0
    %4562 = vmatprep.subr.mxu0 0.0
    %4563 = vmatpush2.msra.mxu0 0.0
    %4564 = vmatprep.subr.mxu0 0.0
    %4565 = vmatpush2.msra.mxu0 0.0
    %4566 = vmatprep.subr.mxu0 0.0
    %4567 = vmatpush2.msra.mxu0 0.0
    %4568 = vmatprep.mubr.f32.mxu0 0.0
    %4569 = vmatmul.mubr.f32.gmra.mxu0 %v4502
    %v4570 = vpop.f32.mrf.mxu0
    %v4571 = vadd.f32 %v4497, %v4570
    %v4572 = vpop.f32.mrf.mxu0
    %4573 = vdwg.mxu0
    %v4574 = vld [vmem:[%s23] sm:$0x7]
    %vm4575 = vcmask 23552
    %v4576 = vsel %vm4575, %v4416, 0
    %vm4578 = vcmask 1042432
    %v4580 = vsel %vm4578, %v4574, 0
    %4582 = vmatprep.subr.mxu0 0.0
    %4583 = vmatpush1.msra.mxu0 0.0
    %4584 = vmatprep.subr.mxu0 0.0
    %4585 = vmatpush1.msra.mxu0 0.0
    %4586 = vmatprep.subr.mxu0 0.0
    %4587 = vmatpush1.msra.mxu0 0.0
    %4588 = vmatprep.subr.mxu0 0.0
    %4589 = vmatpush1.msra.mxu0 0.0
    %4590 = vmatprep.subr.mxu0 0.0
    %4591 = vmatpush1.msra.mxu0 0.0
    %4592 = vmatprep.subr.mxu0 0.0
    %4593 = vmatpush1.msra.mxu0 0.0
    %4594 = vmatprep.subr.mxu0 0.0
    %4595 = vmatpush1.msra.mxu0 0.0
    %4596 = vmatprep.subr.mxu0 0.0
    %4597 = vmatpush1.msra.mxu0 0.0
    %4598 = vmatprep.subr.mxu0 0.0
    %4599 = vmatpush1.msra.mxu0 0.0
    %4600 = vmatprep.subr.mxu0 0.0
    %4601 = vmatpush1.msra.mxu0 0.0
    %4602 = vmatprep.subr.mxu0 0.0
    %4603 = vmatpush1.msra.mxu0 0.0
    %4604 = vmatprep.subr.mxu0 0.0
    %4605 = vmatpush1.msra.mxu0 0.0
    %4606 = vmatprep.subr.mxu0 0.0
    %4607 = vmatpush1.msra.mxu0 0.0
    %4608 = vmatprep.subr.mxu0 0.0
    %4609 = vmatpush1.msra.mxu0 0.0
    %4610 = vmatprep.subr.mxu0 0.0
    %4611 = vmatpush1.msra.mxu0 0.0
    %4612 = vmatprep.subr.mxu0 0.0
    %4613 = vmatpush1.msra.mxu0 %v4580
    %4614 = vmatprep.subr.mxu0 0.0
    %4615 = vmatpush2.msra.mxu0 0.0
    %4616 = vmatprep.subr.mxu0 0.0
    %4617 = vmatpush2.msra.mxu0 0.0
    %4618 = vmatprep.subr.mxu0 0.0
    %4619 = vmatpush2.msra.mxu0 0.0
    %4620 = vmatprep.subr.mxu0 0.0
    %4621 = vmatpush2.msra.mxu0 0.0
    %4622 = vmatprep.subr.mxu0 0.0
    %4623 = vmatpush2.msra.mxu0 0.0
    %4624 = vmatprep.subr.mxu0 0.0
    %4625 = vmatpush2.msra.mxu0 0.0
    %4626 = vmatprep.subr.mxu0 0.0
    %4627 = vmatpush2.msra.mxu0 0.0
    %4628 = vmatprep.subr.mxu0 0.0
    %4629 = vmatpush2.msra.mxu0 0.0
    %4630 = vmatprep.subr.mxu0 0.0
    %4631 = vmatpush2.msra.mxu0 0.0
    %4632 = vmatprep.subr.mxu0 0.0
    %4633 = vmatpush2.msra.mxu0 0.0
    %4634 = vmatprep.subr.mxu0 0.0
    %4635 = vmatpush2.msra.mxu0 0.0
    %4636 = vmatprep.subr.mxu0 0.0
    %4637 = vmatpush2.msra.mxu0 0.0
    %4638 = vmatprep.subr.mxu0 0.0
    %4639 = vmatpush2.msra.mxu0 0.0
    %4640 = vmatprep.subr.mxu0 0.0
    %4641 = vmatpush2.msra.mxu0 0.0
    %4642 = vmatprep.subr.mxu0 0.0
    %4643 = vmatpush2.msra.mxu0 0.0
    %4644 = vmatprep.subr.mxu0 0.0
    %4645 = vmatpush2.msra.mxu0 0.0
    %4646 = vmatprep.mubr.f32.mxu0 0.0
    %4647 = vmatmul.mubr.f32.gmra.mxu0 %v4576
    %v4648 = vpop.f32.mrf.mxu0
    %v4649 = vadd.f32 0.0, %v4648
    %v4650 = vpop.f32.mrf.mxu0
    %4651 = vdwg.mxu0
    %v4652 = vadd.f32 %v4571, %v4649
    %v4653 = vld [vmem:[%s24] sm:$0x1]
    %v4655 = vlaneseq
    %v4656 = vshrl.u32 %v4655, 7
    %v4657 = vsub.s32 0, %v4656
    %v4658 = vrot.slane %v4653, %v4657
    %v4660 = vadd.f32 %v4652, %v4658
    %vm4661 = vcmp.gt.f32.partialorder %v4660, 0.0
    %v4662 = vmin.f32 %v4660, 0.0
    %v4663 = vmul.f32 %v4662, 1.442695
    %v4664 = vpow.pop %v4663
    %v4665 = vsub.f32 %v4664, 1.0
    %v4666 = vsel %vm4661, %v4660, %v4665
    %v4667 = vld [vmem:[%s25] sm:$0xff]
    %v4668 = vld [vmem:[%s25 + $0x8] sm:$0xff]
    %v4669 = vld [vmem:[%s25 + $0x10] sm:$0xff]
    %v4670 = vld [vmem:[%s25 + $0x18] sm:$0xff]
    %v4671 = vld [vmem:[%s25 + $0x20] sm:$0xff]
    %v4672 = vld [vmem:[%s25 + $0x28] sm:$0xff]
    %v4673 = vld [vmem:[%s26] sm:$0x1]
    %v4675 = vlaneseq
    %v4676 = vshrl.u32 %v4675, 7
    %v4677 = vsub.s32 0, %v4676
    %v4678 = vrot.slane %v4673, %v4677
    %vm4680 = vcmask 392192
    %v4682 = vsel %vm4680, %v4666, 0
    %4684 = vmatprep.subr.mxu0 0.0
    %4685 = vmatpush1.msra.mxu0 0.0
    %4686 = vmatprep.subr.mxu0 0.0
    %4687 = vmatpush1.msra.mxu0 0.0
    %4688 = vmatprep.subr.mxu0 0.0
    %4689 = vmatpush1.msra.mxu0 0.0
    %4690 = vmatprep.subr.mxu0 0.0
    %4691 = vmatpush1.msra.mxu0 0.0
    %4692 = vmatprep.subr.mxu0 0.0
    %4693 = vmatpush1.msra.mxu0 0.0
    %4694 = vmatprep.subr.mxu0 0.0
    %4695 = vmatpush1.msra.mxu0 0.0
    %4696 = vmatprep.subr.mxu0 0.0
    %4697 = vmatpush1.msra.mxu0 0.0
    %4698 = vmatprep.subr.mxu0 0.0
    %4699 = vmatpush1.msra.mxu0 0.0
    %4700 = vmatprep.subr.mxu0 0.0
    %4701 = vmatpush1.msra.mxu0 0.0
    %4702 = vmatprep.subr.mxu0 0.0
    %4703 = vmatpush1.msra.mxu0 0.0
    %4704 = vmatprep.subr.mxu0 0.0
    %4705 = vmatpush1.msra.mxu0 %v4672
    %4706 = vmatprep.subr.mxu0 0.0
    %4707 = vmatpush1.msra.mxu0 %v4671
    %4708 = vmatprep.subr.mxu0 0.0
    %4709 = vmatpush1.msra.mxu0 %v4670
    %4710 = vmatprep.subr.mxu0 0.0
    %4711 = vmatpush1.msra.mxu0 %v4669
    %4712 = vmatprep.subr.mxu0 0.0
    %4713 = vmatpush1.msra.mxu0 %v4668
    %4714 = vmatprep.subr.mxu0 0.0
    %4715 = vmatpush1.msra.mxu0 %v4667
    %4716 = vmatprep.subr.mxu0 0.0
    %4717 = vmatpush2.msra.mxu0 0.0
    %4718 = vmatprep.subr.mxu0 0.0
    %4719 = vmatpush2.msra.mxu0 0.0
    %4720 = vmatprep.subr.mxu0 0.0
    %4721 = vmatpush2.msra.mxu0 0.0
    %4722 = vmatprep.subr.mxu0 0.0
    %4723 = vmatpush2.msra.mxu0 0.0
    %4724 = vmatprep.subr.mxu0 0.0
    %4725 = vmatpush2.msra.mxu0 0.0
    %4726 = vmatprep.subr.mxu0 0.0
    %4727 = vmatpush2.msra.mxu0 0.0
    %4728 = vmatprep.subr.mxu0 0.0
    %4729 = vmatpush2.msra.mxu0 0.0
    %4730 = vmatprep.subr.mxu0 0.0
    %4731 = vmatpush2.msra.mxu0 0.0
    %4732 = vmatprep.subr.mxu0 0.0
    %4733 = vmatpush2.msra.mxu0 0.0
    %4734 = vmatprep.subr.mxu0 0.0
    %4735 = vmatpush2.msra.mxu0 0.0
    %4736 = vmatprep.subr.mxu0 0.0
    %4737 = vmatpush2.msra.mxu0 0.0
    %4738 = vmatprep.subr.mxu0 0.0
    %4739 = vmatpush2.msra.mxu0 0.0
    %4740 = vmatprep.subr.mxu0 0.0
    %4741 = vmatpush2.msra.mxu0 0.0
    %4742 = vmatprep.subr.mxu0 0.0
    %4743 = vmatpush2.msra.mxu0 0.0
    %4744 = vmatprep.subr.mxu0 0.0
    %4745 = vmatpush2.msra.mxu0 0.0
    %4746 = vmatprep.subr.mxu0 0.0
    %4747 = vmatpush2.msra.mxu0 0.0
    %4748 = vmatprep.mubr.f32.mxu0 0.0
    %4749 = vmatmul.mubr.f32.gmra.mxu0 %v4682
    %v4750 = vpop.f32.mrf.mxu0
    %v4751 = vadd.f32 %v4678, %v4750
    %v4752 = vpop.f32.mrf.mxu0
    %4753 = vdwg.mxu0
    %v4754 = vsel %vm4341, %v4751, -inf
    %4755 = vmax.xlane.f32.xlu0 %v4754
    %v4756 = vpop.xlane.xlu0 %4755
    %v4757 = vsub.f32 %v4751, %v4756
    %v4758 = vmul.f32 %v4757, 1.442695
    %v4759 = vpow.pop %v4758
    %v4760 = vsel %vm4341, %v4759, 0.0
    %4761 = vadd.xlane.f32.xlu0 %v4760
    %v4762 = vpop.xlane.xlu0 %4761
    %v4763 = vrcp.pop %v4762
    %v4764 = vmul.f32 %v4762, %v4763
    %v4765 = vsub.f32 2.0, %v4764
    %v4766 = vmul.f32 %v4763, %v4765
    %v4767 = vmul.f32 %v4759, %v4766
    %4768 = vst.msk [vmem:[#allocation3] sm:$0x3] %vm4341, %v4767
    // Predicated region
    $region117: #{dqn_forward.1} parent=1 // pred_check
      _
    $region118: #{dqn_forward.1} parent=1 // pred_check_branch
      %4770 = sbr.rel (0) target = $region120
    $region119: #{dqn_forward.1} parent=1 // pred_region
      %s4772 = ssub.s32 32, 32
      %4773 = vsyncadd [#allocation4], %s4772
      %s4775 = sshll.u32 [#allocation3], 4
      %s4776 = int_to_ptr.vmem [resolvable:$true] %s4775
      %4778 = dma.vmem_to_hbm [thread:$0]  %s4776, 32, %s27, [#allocation4]
    $region120: #{dqn_forward.1} parent=1 // pred_fallthru
      _
    // Predicated region
    $region121: #{dqn_forward.1} parent=1 // pred_check
      _
    $region122: #{dqn_forward.1} parent=1 // pred_check_branch
      %4780 = sbr.rel (0) target = $region124
    $region123: #{dqn_forward.1} parent=1 // pred_region
      %s4782 = ssub.s32 32, 32
      %4783 = vsyncadd [#allocation6], %s4782
      %s4785 = sshll.u32 [#allocation5], 4
      %s4786 = int_to_ptr.vmem [resolvable:$true] %s4785
      %4788 = dma.vmem_to_hbm [thread:$0]  %s4786, 32, %s28, [#allocation6]
    $region124: #{dqn_forward.1} parent=1 // pred_fallthru
      _
    // Predicated region
    $region125: #{dqn_forward.1} parent=1 // pred_check
      _
    $region126: #{dqn_forward.1} parent=1 // pred_check_branch
      %4790 = sbr.rel (0) target = $region128
    $region127: #{dqn_forward.1} parent=1 // pred_region
      %4791 = dma.done [#allocation4], 32
    $region128: #{dqn_forward.1} parent=1 // pred_fallthru
      _
    // Predicated region
    $region129: #{dqn_forward.1} parent=1 // pred_check
      _
    $region130: #{dqn_forward.1} parent=1 // pred_check_branch
      %4793 = sbr.rel (0) target = $region132
    $region131: #{dqn_forward.1} parent=1 // pred_region
      %4794 = dma.done [#allocation6], 32
    $region132: #{dqn_forward.1} parent=1 // pred_fallthru
      _
    %4795 = vsyncpa [#allocation4], 1
    %4796 = vsyncpa [#allocation6], 1

</llo_original>
